<compile_context>
chip_gen: v7x
topology: tpu7x:2x2x1
jax: 0.10.0
libtpu: 0.0.40
codegen_flags: <defaults>
</compile_context>

<pallas_src>
import functools
import math

import jax
import jax.numpy as jnp
from jax.experimental import pallas as pl
from jax.experimental.pallas import tpu as pltpu

LANE = 128


# ----------------------------------------------------------------------------
# Architecture helpers (mirror ConvBottleneck.__init__)
# ----------------------------------------------------------------------------
def bottleneck_arch(size):
    """List of (in_d, out_d, kernel_size) for the three conv layers."""
    layers = []
    in_d = size
    first = True
    for i in range(3):
        out_d = int((in_d - 64) // 2 + 64)
        k = 9 if first else 8
        first = False
        if i == 2:
            out_d = 64
        layers.append((in_d, out_d, k))
        in_d = out_d
    return layers


def seq_lengths(seq_len, layers):
    """Per-layer (L_in, L_conv, L_pool) for Conv1d(k) + MaxPool1d(2)."""
    lens = []
    cur = seq_len
    for (_, _, k) in layers:
        l_conv = cur - k + 1
        l_pool = l_conv // 2          # MaxPool1d(2): floor(L/2), drops odd tail
        lens.append((cur, l_conv, l_pool))
        cur = l_pool
    return lens


# ----------------------------------------------------------------------------
# Pallas kernel
# ----------------------------------------------------------------------------
def _conv_pool_relu(h, w_ref, b_ref, conv_scr, k, l_pool):
    """h: (L_in, C_pad).  Returns relu(maxpool2(conv1d_k(h))): (l_pool, C_pad)."""
    l_use = 2 * l_pool                 # conv positions consumed by stride-2 pool
    # Conv1d as K time-shifted MXU matmuls with f32 accumulation.
    acc = jnp.dot(h[0:l_use, :], w_ref[0], preferred_element_type=jnp.float32)
    for kk in range(1, k):
        acc = acc + jnp.dot(h[kk:kk + l_use, :], w_ref[kk],
                            preferred_element_type=jnp.float32)
    acc = acc + b_ref[...]                           # (1, C_pad) broadcast
    conv_scr[...] = acc                              # (l_use, C_pad) in VMEM
    even = conv_scr[pl.ds(0, l_pool, stride=2), :]   # conv positions 0,2,4,...
    odd = conv_scr[pl.ds(1, l_pool, stride=2), :]    # conv positions 1,3,5,...
    return jnp.maximum(jnp.maximum(even, odd), 0.0)  # maxpool(2) then ReLU


def conv_bottleneck_kernel(x_ref, w0, b0, w1, b1, w2, b2, o_ref,
                           scr0, scr1, scr2, *, ks, l_pools):
    h = x_ref[0]                                     # (L0, C_pad)
    h = _conv_pool_relu(h, w0, b0, scr0, ks[0], l_pools[0])
    h = _conv_pool_relu(h, w1, b1, scr1, ks[1], l_pools[1])
    h = _conv_pool_relu(h, w2, b2, scr2, ks[2], l_pools[2])
    o_ref[0] = h                                     # (L_out, C_pad)


# ----------------------------------------------------------------------------
# Wrapper: layout prep + pallas_call
# ----------------------------------------------------------------------------
def conv_bottleneck_forward(x, weights, biases):
    """x: (B, size, L) float32 (PyTorch NCL layout).  Returns (B, 64, L_out)."""
    B, size, L = x.shape
    layers = bottleneck_arch(size)
    lens = seq_lengths(L, layers)
    ks = tuple(k for (_, _, k) in layers)
    l_pools = tuple(lp for (_, _, lp) in lens)
    c_out = layers[-1][1]
    l_out = l_pools[-1]
    c_pad = -(-max([size] + [o for (_, o, _) in layers]) // LANE) * LANE

    # Channels-last, lane-padded input: (B, L, c_pad).
    x_blc = jnp.transpose(x, (0, 2, 1))
    if size < c_pad:
        x_blc = jnp.pad(x_blc, ((0, 0), (0, 0), (0, c_pad - size)))

    # Pack weights: torch (out_d, in_d, k) -> (k, c_pad, c_pad), zero padded,
    # pre-transposed so the kernel computes x @ w[k] with no in-kernel .T.
    # Padded output channels get zero weight + zero bias -> stay exactly 0
    # through relu/pool, and padded input channels of the next layer have zero
    # weights, so padding never contaminates real outputs.
    packed = []
    in_specs = [pl.BlockSpec((1, L, c_pad), lambda b: (b, 0, 0))]
    for (in_d, out_d, k), w, bvec in zip(layers, weights, biases):
        wk = jnp.transpose(w, (2, 1, 0))                        # (k, in, out)
        wk = jnp.pad(wk, ((0, 0), (0, c_pad - in_d), (0, c_pad - out_d)))
        bk = jnp.pad(bvec, (0, c_pad - out_d)).reshape(1, c_pad)
        packed += [wk, bk]
        in_specs += [pl.BlockSpec((k, c_pad, c_pad), lambda b: (0, 0, 0)),
                     pl.BlockSpec((1, c_pad), lambda b: (0, 0))]

    kernel = functools.partial(conv_bottleneck_kernel, ks=ks, l_pools=l_pools)
    out = pl.pallas_call(
        kernel,
        out_shape=jax.ShapeDtypeStruct((B, l_out, c_pad), jnp.float32),
        grid=(B,),
        in_specs=in_specs,
        out_specs=pl.BlockSpec((1, l_out, c_pad), lambda b: (b, 0, 0)),
        scratch_shapes=[pltpu.VMEM((2 * lp, c_pad), jnp.float32)
                        for lp in l_pools],
        compiler_params=pltpu.CompilerParams(
            dimension_semantics=("parallel",)),
    )(x_blc, *packed)

    # Back to the PyTorch (B, C, L) layout, dropping the padded channels.
    return jnp.transpose(out[:, :, :c_out], (0, 2, 1))


# ----------------------------------------------------------------------------
# Pure-XLA reference (Conv1d -> MaxPool1d(2) -> ReLU per layer)
# ----------------------------------------------------------------------------
def conv_bottleneck_reference(x, weights, biases):
    h = x
    for w, bvec in zip(weights, biases):
        h = jax.lax.conv_general_dilated(
            h, w, window_strides=(1,), padding="VALID",
            dimension_numbers=("NCH", "OIH", "NCH"),
            precision=jax.lax.Precision.HIGHEST)
        h = h + bvec[None, :, None]
        Bh, Ch, Lh = h.shape
        h = h[:, :, :2 * (Lh // 2)].reshape(Bh, Ch, Lh // 2, 2).max(axis=-1)
        h = jnp.maximum(h, 0.0)
    return h


# ----------------------------------------------------------------------------
# Deterministic parameter init (PyTorch Conv1d default: U(+-1/sqrt(Cin*K)))
# ----------------------------------------------------------------------------
def init_params(key, size):
    weights, biases = [], []
    for (in_d, out_d, k) in bottleneck_arch(size):
        key, kw, kb = jax.random.split(key, 3)
        bound = 1.0 / math.sqrt(in_d * k)
        weights.append(jax.random.uniform(kw, (out_d, in_d, k), jnp.float32,
                                          -bound, bound))
        biases.append(jax.random.uniform(kb, (out_d,), jnp.float32,
                                         -bound, bound))
    return key, weights, biases


# ----------------------------------------------------------------------------
if __name__ == "__main__":
    B, SIZE, SEQ = 2, 128, 126     # TransVAE: size = d_model = 128

    key = jax.random.PRNGKey(0)
    key, weights, biases = init_params(key, SIZE)
    key, kx = jax.random.split(key)
    x = jax.random.normal(kx, (B, SIZE, SEQ), jnp.float32)

    fwd = jax.jit(conv_bottleneck_forward)
    out = fwd(x, weights, biases)
    jax.block_until_ready(out)

    # Geometry: 126 -conv9-> 118 -pool-> 59 -conv8-> 52 -pool-> 26
    #               -conv8-> 19 -pool-> 9 ; channels 128 -> 96 -> 80 -> 64.
    assert out.shape == (B, 64, 9), out.shape
    assert bool(jnp.isfinite(out).all())

    # Numerical check against the pure-XLA reference.  Tolerance covers the
    # default (reduced-precision) MXU f32 matmul path used inside the kernel.
    ref = conv_bottleneck_reference(x, weights, biases)
    assert out.shape == ref.shape
    assert bool(jnp.allclose(out, ref, atol=2e-2, rtol=2e-2)), (
        float(jnp.max(jnp.abs(out - ref))))

    print("KERNEL_OK")
</pallas_src>

<mosaic_0001>
module attributes {stable_mosaic.version = 11 : i64} {
  func.func @conv_bottleneck_kernel(%arg0: i32, %arg1: memref<1x126x128xf32, #tpu.memory_space<vmem>>, %arg2: memref<9x128x128xf32, #tpu.memory_space<vmem>>, %arg3: memref<1x128xf32, #tpu.memory_space<vmem>>, %arg4: memref<8x128x128xf32, #tpu.memory_space<vmem>>, %arg5: memref<1x128xf32, #tpu.memory_space<vmem>>, %arg6: memref<8x128x128xf32, #tpu.memory_space<vmem>>, %arg7: memref<1x128xf32, #tpu.memory_space<vmem>>, %arg8: memref<1x9x128xf32, #tpu.memory_space<vmem>>, %arg9: memref<118x128xf32, #tpu.memory_space<vmem>>, %arg10: memref<52x128xf32, #tpu.memory_space<vmem>>, %arg11: memref<18x128xf32, #tpu.memory_space<vmem>>) attributes {dimension_semantics = [#tpu.dimension_semantics<parallel>], iteration_bounds = array<i64: 2>, scalar_prefetch = 0 : i64, scratch_operands = 3 : i64, tpu.core_type = #tpu.core_type<tc>, window_params = [{transform_indices = @transform_0, window_bounds = array<i64: 1, 126, 128>}, {pipeline_mode = #tpu.pipeline_mode<synchronous>, transform_indices = @transform_1, window_bounds = array<i64: 9, 128, 128>}, {pipeline_mode = #tpu.pipeline_mode<synchronous>, transform_indices = @transform_2, window_bounds = array<i64: 1, 128>}, {pipeline_mode = #tpu.pipeline_mode<synchronous>, transform_indices = @transform_3, window_bounds = array<i64: 8, 128, 128>}, {pipeline_mode = #tpu.pipeline_mode<synchronous>, transform_indices = @transform_4, window_bounds = array<i64: 1, 128>}, {pipeline_mode = #tpu.pipeline_mode<synchronous>, transform_indices = @transform_5, window_bounds = array<i64: 8, 128, 128>}, {pipeline_mode = #tpu.pipeline_mode<synchronous>, transform_indices = @transform_6, window_bounds = array<i64: 1, 128>}, {transform_indices = @transform_7, window_bounds = array<i64: 1, 9, 128>}]} {
    %c0 = arith.constant 0 : index
    %c0_0 = arith.constant 0 : index
    %c0_1 = arith.constant 0 : index
    %0 = vector.load %arg1[%c0, %c0_0, %c0_1] : memref<1x126x128xf32, #tpu.memory_space<vmem>>, vector<1x126x128xf32>
    %1 = vector.shape_cast %0 : vector<1x126x128xf32> to vector<126x128xf32>
    %2 = vector.extract_strided_slice %1 {offsets = [0, 0], sizes = [118, 128], strides = [1, 1]} : vector<126x128xf32> to vector<118x128xf32>
    %c0_2 = arith.constant 0 : index
    %c0_3 = arith.constant 0 : index
    %c0_4 = arith.constant 0 : index
    %3 = vector.load %arg2[%c0_2, %c0_3, %c0_4] : memref<9x128x128xf32, #tpu.memory_space<vmem>>, vector<1x128x128xf32>
    %4 = vector.shape_cast %3 : vector<1x128x128xf32> to vector<128x128xf32>
    %cst = arith.constant dense<0.000000e+00> : vector<118x128xf32>
    %5 = tpu.matmul %2, %4, %cst {dimension_numbers = #tpu.dot_dimension_numbers<[1], [0], [0], [1], [0, 0, 1, 1], [], []>} : vector<118x128xf32>, vector<128x128xf32>, vector<118x128xf32> -> vector<118x128xf32>
    %6 = vector.extract_strided_slice %1 {offsets = [1, 0], sizes = [118, 128], strides = [1, 1]} : vector<126x128xf32> to vector<118x128xf32>
    %c1 = arith.constant 1 : index
    %c0_5 = arith.constant 0 : index
    %c0_6 = arith.constant 0 : index
    %7 = vector.load %arg2[%c1, %c0_5, %c0_6] : memref<9x128x128xf32, #tpu.memory_space<vmem>>, vector<1x128x128xf32>
    %8 = vector.shape_cast %7 : vector<1x128x128xf32> to vector<128x128xf32>
    %cst_7 = arith.constant dense<0.000000e+00> : vector<118x128xf32>
    %9 = tpu.matmul %6, %8, %cst_7 {dimension_numbers = #tpu.dot_dimension_numbers<[1], [0], [0], [1], [0, 0, 1, 1], [], []>} : vector<118x128xf32>, vector<128x128xf32>, vector<118x128xf32> -> vector<118x128xf32>
    %10 = arith.addf %5, %9 : vector<118x128xf32>
    %11 = vector.extract_strided_slice %1 {offsets = [2, 0], sizes = [118, 128], strides = [1, 1]} : vector<126x128xf32> to vector<118x128xf32>
    %c2 = arith.constant 2 : index
    %c0_8 = arith.constant 0 : index
    %c0_9 = arith.constant 0 : index
    %12 = vector.load %arg2[%c2, %c0_8, %c0_9] : memref<9x128x128xf32, #tpu.memory_space<vmem>>, vector<1x128x128xf32>
    %13 = vector.shape_cast %12 : vector<1x128x128xf32> to vector<128x128xf32>
    %cst_10 = arith.constant dense<0.000000e+00> : vector<118x128xf32>
    %14 = tpu.matmul %11, %13, %cst_10 {dimension_numbers = #tpu.dot_dimension_numbers<[1], [0], [0], [1], [0, 0, 1, 1], [], []>} : vector<118x128xf32>, vector<128x128xf32>, vector<118x128xf32> -> vector<118x128xf32>
    %15 = arith.addf %10, %14 : vector<118x128xf32>
    %16 = vector.extract_strided_slice %1 {offsets = [3, 0], sizes = [118, 128], strides = [1, 1]} : vector<126x128xf32> to vector<118x128xf32>
    %c3 = arith.constant 3 : index
    %c0_11 = arith.constant 0 : index
    %c0_12 = arith.constant 0 : index
    %17 = vector.load %arg2[%c3, %c0_11, %c0_12] : memref<9x128x128xf32, #tpu.memory_space<vmem>>, vector<1x128x128xf32>
    %18 = vector.shape_cast %17 : vector<1x128x128xf32> to vector<128x128xf32>
    %cst_13 = arith.constant dense<0.000000e+00> : vector<118x128xf32>
    %19 = tpu.matmul %16, %18, %cst_13 {dimension_numbers = #tpu.dot_dimension_numbers<[1], [0], [0], [1], [0, 0, 1, 1], [], []>} : vector<118x128xf32>, vector<128x128xf32>, vector<118x128xf32> -> vector<118x128xf32>
    %20 = arith.addf %15, %19 : vector<118x128xf32>
    %21 = vector.extract_strided_slice %1 {offsets = [4, 0], sizes = [118, 128], strides = [1, 1]} : vector<126x128xf32> to vector<118x128xf32>
    %c4 = arith.constant 4 : index
    %c0_14 = arith.constant 0 : index
    %c0_15 = arith.constant 0 : index
    %22 = vector.load %arg2[%c4, %c0_14, %c0_15] : memref<9x128x128xf32, #tpu.memory_space<vmem>>, vector<1x128x128xf32>
    %23 = vector.shape_cast %22 : vector<1x128x128xf32> to vector<128x128xf32>
    %cst_16 = arith.constant dense<0.000000e+00> : vector<118x128xf32>
    %24 = tpu.matmul %21, %23, %cst_16 {dimension_numbers = #tpu.dot_dimension_numbers<[1], [0], [0], [1], [0, 0, 1, 1], [], []>} : vector<118x128xf32>, vector<128x128xf32>, vector<118x128xf32> -> vector<118x128xf32>
    %25 = arith.addf %20, %24 : vector<118x128xf32>
    %26 = vector.extract_strided_slice %1 {offsets = [5, 0], sizes = [118, 128], strides = [1, 1]} : vector<126x128xf32> to vector<118x128xf32>
    %c5 = arith.constant 5 : index
    %c0_17 = arith.constant 0 : index
    %c0_18 = arith.constant 0 : index
    %27 = vector.load %arg2[%c5, %c0_17, %c0_18] : memref<9x128x128xf32, #tpu.memory_space<vmem>>, vector<1x128x128xf32>
    %28 = vector.shape_cast %27 : vector<1x128x128xf32> to vector<128x128xf32>
    %cst_19 = arith.constant dense<0.000000e+00> : vector<118x128xf32>
    %29 = tpu.matmul %26, %28, %cst_19 {dimension_numbers = #tpu.dot_dimension_numbers<[1], [0], [0], [1], [0, 0, 1, 1], [], []>} : vector<118x128xf32>, vector<128x128xf32>, vector<118x128xf32> -> vector<118x128xf32>
    %30 = arith.addf %25, %29 : vector<118x128xf32>
    %31 = vector.extract_strided_slice %1 {offsets = [6, 0], sizes = [118, 128], strides = [1, 1]} : vector<126x128xf32> to vector<118x128xf32>
    %c6 = arith.constant 6 : index
    %c0_20 = arith.constant 0 : index
    %c0_21 = arith.constant 0 : index
    %32 = vector.load %arg2[%c6, %c0_20, %c0_21] : memref<9x128x128xf32, #tpu.memory_space<vmem>>, vector<1x128x128xf32>
    %33 = vector.shape_cast %32 : vector<1x128x128xf32> to vector<128x128xf32>
    %cst_22 = arith.constant dense<0.000000e+00> : vector<118x128xf32>
    %34 = tpu.matmul %31, %33, %cst_22 {dimension_numbers = #tpu.dot_dimension_numbers<[1], [0], [0], [1], [0, 0, 1, 1], [], []>} : vector<118x128xf32>, vector<128x128xf32>, vector<118x128xf32> -> vector<118x128xf32>
    %35 = arith.addf %30, %34 : vector<118x128xf32>
    %36 = vector.extract_strided_slice %1 {offsets = [7, 0], sizes = [118, 128], strides = [1, 1]} : vector<126x128xf32> to vector<118x128xf32>
    %c7 = arith.constant 7 : index
    %c0_23 = arith.constant 0 : index
    %c0_24 = arith.constant 0 : index
    %37 = vector.load %arg2[%c7, %c0_23, %c0_24] : memref<9x128x128xf32, #tpu.memory_space<vmem>>, vector<1x128x128xf32>
    %38 = vector.shape_cast %37 : vector<1x128x128xf32> to vector<128x128xf32>
    %cst_25 = arith.constant dense<0.000000e+00> : vector<118x128xf32>
    %39 = tpu.matmul %36, %38, %cst_25 {dimension_numbers = #tpu.dot_dimension_numbers<[1], [0], [0], [1], [0, 0, 1, 1], [], []>} : vector<118x128xf32>, vector<128x128xf32>, vector<118x128xf32> -> vector<118x128xf32>
    %40 = arith.addf %35, %39 : vector<118x128xf32>
    %41 = vector.extract_strided_slice %1 {offsets = [8, 0], sizes = [118, 128], strides = [1, 1]} : vector<126x128xf32> to vector<118x128xf32>
    %c8 = arith.constant 8 : index
    %c0_26 = arith.constant 0 : index
    %c0_27 = arith.constant 0 : index
    %42 = vector.load %arg2[%c8, %c0_26, %c0_27] : memref<9x128x128xf32, #tpu.memory_space<vmem>>, vector<1x128x128xf32>
    %43 = vector.shape_cast %42 : vector<1x128x128xf32> to vector<128x128xf32>
    %cst_28 = arith.constant dense<0.000000e+00> : vector<118x128xf32>
    %44 = tpu.matmul %41, %43, %cst_28 {dimension_numbers = #tpu.dot_dimension_numbers<[1], [0], [0], [1], [0, 0, 1, 1], [], []>} : vector<118x128xf32>, vector<128x128xf32>, vector<118x128xf32> -> vector<118x128xf32>
    %45 = arith.addf %40, %44 : vector<118x128xf32>
    %c0_29 = arith.constant 0 : index
    %c0_30 = arith.constant 0 : index
    %46 = vector.load %arg3[%c0_29, %c0_30] : memref<1x128xf32, #tpu.memory_space<vmem>>, vector<1x128xf32>
    %47 = vector.broadcast %46 : vector<1x128xf32> to vector<118x128xf32>
    %48 = arith.addf %45, %47 : vector<118x128xf32>
    %c0_31 = arith.constant 0 : index
    %c0_32 = arith.constant 0 : index
    %49 = vector.load %arg9[%c0_31, %c0_32] : memref<118x128xf32, #tpu.memory_space<vmem>>, vector<118x128xf32>
    tpu.vector_store %arg9[%c0_31, %c0_32], %48 {strides = array<i32>} : memref<118x128xf32, #tpu.memory_space<vmem>>, vector<118x128xf32>,
    %c0_33 = arith.constant 0 : index
    %c0_34 = arith.constant 0 : index
    %50 = tpu.strided_load %arg9[%c0_33, %c0_34] {strides = array<i32: 2, 1>} : memref<118x128xf32, #tpu.memory_space<vmem>>, vector<59x128xf32>
    %c1_35 = arith.constant 1 : index
    %c0_36 = arith.constant 0 : index
    %51 = tpu.strided_load %arg9[%c1_35, %c0_36] {strides = array<i32: 2, 1>} : memref<118x128xf32, #tpu.memory_space<vmem>>, vector<59x128xf32>
    %52 = arith.maximumf %50, %51 : vector<59x128xf32>
    %cst_37 = arith.constant 0.000000e+00 : f32
    %53 = vector.broadcast %cst_37 : f32 to vector<59x128xf32>
    %54 = arith.maximumf %52, %53 : vector<59x128xf32>
    %55 = vector.extract_strided_slice %54 {offsets = [0, 0], sizes = [52, 128], strides = [1, 1]} : vector<59x128xf32> to vector<52x128xf32>
    %c0_38 = arith.constant 0 : index
    %c0_39 = arith.constant 0 : index
    %c0_40 = arith.constant 0 : index
    %56 = vector.load %arg4[%c0_38, %c0_39, %c0_40] : memref<8x128x128xf32, #tpu.memory_space<vmem>>, vector<1x128x128xf32>
    %57 = vector.shape_cast %56 : vector<1x128x128xf32> to vector<128x128xf32>
    %cst_41 = arith.constant dense<0.000000e+00> : vector<52x128xf32>
    %58 = tpu.matmul %55, %57, %cst_41 {dimension_numbers = #tpu.dot_dimension_numbers<[1], [0], [0], [1], [0, 0, 1, 1], [], []>} : vector<52x128xf32>, vector<128x128xf32>, vector<52x128xf32> -> vector<52x128xf32>
    %59 = vector.extract_strided_slice %54 {offsets = [1, 0], sizes = [52, 128], strides = [1, 1]} : vector<59x128xf32> to vector<52x128xf32>
    %c1_42 = arith.constant 1 : index
    %c0_43 = arith.constant 0 : index
    %c0_44 = arith.constant 0 : index
    %60 = vector.load %arg4[%c1_42, %c0_43, %c0_44] : memref<8x128x128xf32, #tpu.memory_space<vmem>>, vector<1x128x128xf32>
    %61 = vector.shape_cast %60 : vector<1x128x128xf32> to vector<128x128xf32>
    %cst_45 = arith.constant dense<0.000000e+00> : vector<52x128xf32>
    %62 = tpu.matmul %59, %61, %cst_45 {dimension_numbers = #tpu.dot_dimension_numbers<[1], [0], [0], [1], [0, 0, 1, 1], [], []>} : vector<52x128xf32>, vector<128x128xf32>, vector<52x128xf32> -> vector<52x128xf32>
    %63 = arith.addf %58, %62 : vector<52x128xf32>
    %64 = vector.extract_strided_slice %54 {offsets = [2, 0], sizes = [52, 128], strides = [1, 1]} : vector<59x128xf32> to vector<52x128xf32>
    %c2_46 = arith.constant 2 : index
    %c0_47 = arith.constant 0 : index
    %c0_48 = arith.constant 0 : index
    %65 = vector.load %arg4[%c2_46, %c0_47, %c0_48] : memref<8x128x128xf32, #tpu.memory_space<vmem>>, vector<1x128x128xf32>
    %66 = vector.shape_cast %65 : vector<1x128x128xf32> to vector<128x128xf32>
    %cst_49 = arith.constant dense<0.000000e+00> : vector<52x128xf32>
    %67 = tpu.matmul %64, %66, %cst_49 {dimension_numbers = #tpu.dot_dimension_numbers<[1], [0], [0], [1], [0, 0, 1, 1], [], []>} : vector<52x128xf32>, vector<128x128xf32>, vector<52x128xf32> -> vector<52x128xf32>
    %68 = arith.addf %63, %67 : vector<52x128xf32>
    %69 = vector.extract_strided_slice %54 {offsets = [3, 0], sizes = [52, 128], strides = [1, 1]} : vector<59x128xf32> to vector<52x128xf32>
    %c3_50 = arith.constant 3 : index
    %c0_51 = arith.constant 0 : index
    %c0_52 = arith.constant 0 : index
    %70 = vector.load %arg4[%c3_50, %c0_51, %c0_52] : memref<8x128x128xf32, #tpu.memory_space<vmem>>, vector<1x128x128xf32>
    %71 = vector.shape_cast %70 : vector<1x128x128xf32> to vector<128x128xf32>
    %cst_53 = arith.constant dense<0.000000e+00> : vector<52x128xf32>
    %72 = tpu.matmul %69, %71, %cst_53 {dimension_numbers = #tpu.dot_dimension_numbers<[1], [0], [0], [1], [0, 0, 1, 1], [], []>} : vector<52x128xf32>, vector<128x128xf32>, vector<52x128xf32> -> vector<52x128xf32>
    %73 = arith.addf %68, %72 : vector<52x128xf32>
    %74 = vector.extract_strided_slice %54 {offsets = [4, 0], sizes = [52, 128], strides = [1, 1]} : vector<59x128xf32> to vector<52x128xf32>
    %c4_54 = arith.constant 4 : index
    %c0_55 = arith.constant 0 : index
    %c0_56 = arith.constant 0 : index
    %75 = vector.load %arg4[%c4_54, %c0_55, %c0_56] : memref<8x128x128xf32, #tpu.memory_space<vmem>>, vector<1x128x128xf32>
    %76 = vector.shape_cast %75 : vector<1x128x128xf32> to vector<128x128xf32>
    %cst_57 = arith.constant dense<0.000000e+00> : vector<52x128xf32>
    %77 = tpu.matmul %74, %76, %cst_57 {dimension_numbers = #tpu.dot_dimension_numbers<[1], [0], [0], [1], [0, 0, 1, 1], [], []>} : vector<52x128xf32>, vector<128x128xf32>, vector<52x128xf32> -> vector<52x128xf32>
    %78 = arith.addf %73, %77 : vector<52x128xf32>
    %79 = vector.extract_strided_slice %54 {offsets = [5, 0], sizes = [52, 128], strides = [1, 1]} : vector<59x128xf32> to vector<52x128xf32>
    %c5_58 = arith.constant 5 : index
    %c0_59 = arith.constant 0 : index
    %c0_60 = arith.constant 0 : index
    %80 = vector.load %arg4[%c5_58, %c0_59, %c0_60] : memref<8x128x128xf32, #tpu.memory_space<vmem>>, vector<1x128x128xf32>
    %81 = vector.shape_cast %80 : vector<1x128x128xf32> to vector<128x128xf32>
    %cst_61 = arith.constant dense<0.000000e+00> : vector<52x128xf32>
    %82 = tpu.matmul %79, %81, %cst_61 {dimension_numbers = #tpu.dot_dimension_numbers<[1], [0], [0], [1], [0, 0, 1, 1], [], []>} : vector<52x128xf32>, vector<128x128xf32>, vector<52x128xf32> -> vector<52x128xf32>
    %83 = arith.addf %78, %82 : vector<52x128xf32>
    %84 = vector.extract_strided_slice %54 {offsets = [6, 0], sizes = [52, 128], strides = [1, 1]} : vector<59x128xf32> to vector<52x128xf32>
    %c6_62 = arith.constant 6 : index
    %c0_63 = arith.constant 0 : index
    %c0_64 = arith.constant 0 : index
    %85 = vector.load %arg4[%c6_62, %c0_63, %c0_64] : memref<8x128x128xf32, #tpu.memory_space<vmem>>, vector<1x128x128xf32>
    %86 = vector.shape_cast %85 : vector<1x128x128xf32> to vector<128x128xf32>
    %cst_65 = arith.constant dense<0.000000e+00> : vector<52x128xf32>
    %87 = tpu.matmul %84, %86, %cst_65 {dimension_numbers = #tpu.dot_dimension_numbers<[1], [0], [0], [1], [0, 0, 1, 1], [], []>} : vector<52x128xf32>, vector<128x128xf32>, vector<52x128xf32> -> vector<52x128xf32>
    %88 = arith.addf %83, %87 : vector<52x128xf32>
    %89 = vector.extract_strided_slice %54 {offsets = [7, 0], sizes = [52, 128], strides = [1, 1]} : vector<59x128xf32> to vector<52x128xf32>
    %c7_66 = arith.constant 7 : index
    %c0_67 = arith.constant 0 : index
    %c0_68 = arith.constant 0 : index
    %90 = vector.load %arg4[%c7_66, %c0_67, %c0_68] : memref<8x128x128xf32, #tpu.memory_space<vmem>>, vector<1x128x128xf32>
    %91 = vector.shape_cast %90 : vector<1x128x128xf32> to vector<128x128xf32>
    %cst_69 = arith.constant dense<0.000000e+00> : vector<52x128xf32>
    %92 = tpu.matmul %89, %91, %cst_69 {dimension_numbers = #tpu.dot_dimension_numbers<[1], [0], [0], [1], [0, 0, 1, 1], [], []>} : vector<52x128xf32>, vector<128x128xf32>, vector<52x128xf32> -> vector<52x128xf32>
    %93 = arith.addf %88, %92 : vector<52x128xf32>
    %c0_70 = arith.constant 0 : index
    %c0_71 = arith.constant 0 : index
    %94 = vector.load %arg5[%c0_70, %c0_71] : memref<1x128xf32, #tpu.memory_space<vmem>>, vector<1x128xf32>
    %95 = vector.broadcast %94 : vector<1x128xf32> to vector<52x128xf32>
    %96 = arith.addf %93, %95 : vector<52x128xf32>
    %c0_72 = arith.constant 0 : index
    %c0_73 = arith.constant 0 : index
    %97 = vector.load %arg10[%c0_72, %c0_73] : memref<52x128xf32, #tpu.memory_space<vmem>>, vector<52x128xf32>
    tpu.vector_store %arg10[%c0_72, %c0_73], %96 {strides = array<i32>} : memref<52x128xf32, #tpu.memory_space<vmem>>, vector<52x128xf32>,
    %c0_74 = arith.constant 0 : index
    %c0_75 = arith.constant 0 : index
    %98 = tpu.strided_load %arg10[%c0_74, %c0_75] {strides = array<i32: 2, 1>} : memref<52x128xf32, #tpu.memory_space<vmem>>, vector<26x128xf32>
    %c1_76 = arith.constant 1 : index
    %c0_77 = arith.constant 0 : index
    %99 = tpu.strided_load %arg10[%c1_76, %c0_77] {strides = array<i32: 2, 1>} : memref<52x128xf32, #tpu.memory_space<vmem>>, vector<26x128xf32>
    %100 = arith.maximumf %98, %99 : vector<26x128xf32>
    %cst_78 = arith.constant 0.000000e+00 : f32
    %101 = vector.broadcast %cst_78 : f32 to vector<26x128xf32>
    %102 = arith.maximumf %100, %101 : vector<26x128xf32>
    %103 = vector.extract_strided_slice %102 {offsets = [0, 0], sizes = [18, 128], strides = [1, 1]} : vector<26x128xf32> to vector<18x128xf32>
    %c0_79 = arith.constant 0 : index
    %c0_80 = arith.constant 0 : index
    %c0_81 = arith.constant 0 : index
    %104 = vector.load %arg6[%c0_79, %c0_80, %c0_81] : memref<8x128x128xf32, #tpu.memory_space<vmem>>, vector<1x128x128xf32>
    %105 = vector.shape_cast %104 : vector<1x128x128xf32> to vector<128x128xf32>
    %cst_82 = arith.constant dense<0.000000e+00> : vector<18x128xf32>
    %106 = tpu.matmul %103, %105, %cst_82 {dimension_numbers = #tpu.dot_dimension_numbers<[1], [0], [0], [1], [0, 0, 1, 1], [], []>} : vector<18x128xf32>, vector<128x128xf32>, vector<18x128xf32> -> vector<18x128xf32>
    %107 = vector.extract_strided_slice %102 {offsets = [1, 0], sizes = [18, 128], strides = [1, 1]} : vector<26x128xf32> to vector<18x128xf32>
    %c1_83 = arith.constant 1 : index
    %c0_84 = arith.constant 0 : index
    %c0_85 = arith.constant 0 : index
    %108 = vector.load %arg6[%c1_83, %c0_84, %c0_85] : memref<8x128x128xf32, #tpu.memory_space<vmem>>, vector<1x128x128xf32>
    %109 = vector.shape_cast %108 : vector<1x128x128xf32> to vector<128x128xf32>
    %cst_86 = arith.constant dense<0.000000e+00> : vector<18x128xf32>
    %110 = tpu.matmul %107, %109, %cst_86 {dimension_numbers = #tpu.dot_dimension_numbers<[1], [0], [0], [1], [0, 0, 1, 1], [], []>} : vector<18x128xf32>, vector<128x128xf32>, vector<18x128xf32> -> vector<18x128xf32>
    %111 = arith.addf %106, %110 : vector<18x128xf32>
    %112 = vector.extract_strided_slice %102 {offsets = [2, 0], sizes = [18, 128], strides = [1, 1]} : vector<26x128xf32> to vector<18x128xf32>
    %c2_87 = arith.constant 2 : index
    %c0_88 = arith.constant 0 : index
    %c0_89 = arith.constant 0 : index
    %113 = vector.load %arg6[%c2_87, %c0_88, %c0_89] : memref<8x128x128xf32, #tpu.memory_space<vmem>>, vector<1x128x128xf32>
    %114 = vector.shape_cast %113 : vector<1x128x128xf32> to vector<128x128xf32>
    %cst_90 = arith.constant dense<0.000000e+00> : vector<18x128xf32>
    %115 = tpu.matmul %112, %114, %cst_90 {dimension_numbers = #tpu.dot_dimension_numbers<[1], [0], [0], [1], [0, 0, 1, 1], [], []>} : vector<18x128xf32>, vector<128x128xf32>, vector<18x128xf32> -> vector<18x128xf32>
    %116 = arith.addf %111, %115 : vector<18x128xf32>
    %117 = vector.extract_strided_slice %102 {offsets = [3, 0], sizes = [18, 128], strides = [1, 1]} : vector<26x128xf32> to vector<18x128xf32>
    %c3_91 = arith.constant 3 : index
    %c0_92 = arith.constant 0 : index
    %c0_93 = arith.constant 0 : index
    %118 = vector.load %arg6[%c3_91, %c0_92, %c0_93] : memref<8x128x128xf32, #tpu.memory_space<vmem>>, vector<1x128x128xf32>
    %119 = vector.shape_cast %118 : vector<1x128x128xf32> to vector<128x128xf32>
    %cst_94 = arith.constant dense<0.000000e+00> : vector<18x128xf32>
    %120 = tpu.matmul %117, %119, %cst_94 {dimension_numbers = #tpu.dot_dimension_numbers<[1], [0], [0], [1], [0, 0, 1, 1], [], []>} : vector<18x128xf32>, vector<128x128xf32>, vector<18x128xf32> -> vector<18x128xf32>
    %121 = arith.addf %116, %120 : vector<18x128xf32>
    %122 = vector.extract_strided_slice %102 {offsets = [4, 0], sizes = [18, 128], strides = [1, 1]} : vector<26x128xf32> to vector<18x128xf32>
    %c4_95 = arith.constant 4 : index
    %c0_96 = arith.constant 0 : index
    %c0_97 = arith.constant 0 : index
    %123 = vector.load %arg6[%c4_95, %c0_96, %c0_97] : memref<8x128x128xf32, #tpu.memory_space<vmem>>, vector<1x128x128xf32>
    %124 = vector.shape_cast %123 : vector<1x128x128xf32> to vector<128x128xf32>
    %cst_98 = arith.constant dense<0.000000e+00> : vector<18x128xf32>
    %125 = tpu.matmul %122, %124, %cst_98 {dimension_numbers = #tpu.dot_dimension_numbers<[1], [0], [0], [1], [0, 0, 1, 1], [], []>} : vector<18x128xf32>, vector<128x128xf32>, vector<18x128xf32> -> vector<18x128xf32>
    %126 = arith.addf %121, %125 : vector<18x128xf32>
    %127 = vector.extract_strided_slice %102 {offsets = [5, 0], sizes = [18, 128], strides = [1, 1]} : vector<26x128xf32> to vector<18x128xf32>
    %c5_99 = arith.constant 5 : index
    %c0_100 = arith.constant 0 : index
    %c0_101 = arith.constant 0 : index
    %128 = vector.load %arg6[%c5_99, %c0_100, %c0_101] : memref<8x128x128xf32, #tpu.memory_space<vmem>>, vector<1x128x128xf32>
    %129 = vector.shape_cast %128 : vector<1x128x128xf32> to vector<128x128xf32>
    %cst_102 = arith.constant dense<0.000000e+00> : vector<18x128xf32>
    %130 = tpu.matmul %127, %129, %cst_102 {dimension_numbers = #tpu.dot_dimension_numbers<[1], [0], [0], [1], [0, 0, 1, 1], [], []>} : vector<18x128xf32>, vector<128x128xf32>, vector<18x128xf32> -> vector<18x128xf32>
    %131 = arith.addf %126, %130 : vector<18x128xf32>
    %132 = vector.extract_strided_slice %102 {offsets = [6, 0], sizes = [18, 128], strides = [1, 1]} : vector<26x128xf32> to vector<18x128xf32>
    %c6_103 = arith.constant 6 : index
    %c0_104 = arith.constant 0 : index
    %c0_105 = arith.constant 0 : index
    %133 = vector.load %arg6[%c6_103, %c0_104, %c0_105] : memref<8x128x128xf32, #tpu.memory_space<vmem>>, vector<1x128x128xf32>
    %134 = vector.shape_cast %133 : vector<1x128x128xf32> to vector<128x128xf32>
    %cst_106 = arith.constant dense<0.000000e+00> : vector<18x128xf32>
    %135 = tpu.matmul %132, %134, %cst_106 {dimension_numbers = #tpu.dot_dimension_numbers<[1], [0], [0], [1], [0, 0, 1, 1], [], []>} : vector<18x128xf32>, vector<128x128xf32>, vector<18x128xf32> -> vector<18x128xf32>
    %136 = arith.addf %131, %135 : vector<18x128xf32>
    %137 = vector.extract_strided_slice %102 {offsets = [7, 0], sizes = [18, 128], strides = [1, 1]} : vector<26x128xf32> to vector<18x128xf32>
    %c7_107 = arith.constant 7 : index
    %c0_108 = arith.constant 0 : index
    %c0_109 = arith.constant 0 : index
    %138 = vector.load %arg6[%c7_107, %c0_108, %c0_109] : memref<8x128x128xf32, #tpu.memory_space<vmem>>, vector<1x128x128xf32>
    %139 = vector.shape_cast %138 : vector<1x128x128xf32> to vector<128x128xf32>
    %cst_110 = arith.constant dense<0.000000e+00> : vector<18x128xf32>
    %140 = tpu.matmul %137, %139, %cst_110 {dimension_numbers = #tpu.dot_dimension_numbers<[1], [0], [0], [1], [0, 0, 1, 1], [], []>} : vector<18x128xf32>, vector<128x128xf32>, vector<18x128xf32> -> vector<18x128xf32>
    %141 = arith.addf %136, %140 : vector<18x128xf32>
    %c0_111 = arith.constant 0 : index
    %c0_112 = arith.constant 0 : index
    %142 = vector.load %arg7[%c0_111, %c0_112] : memref<1x128xf32, #tpu.memory_space<vmem>>, vector<1x128xf32>
    %143 = vector.broadcast %142 : vector<1x128xf32> to vector<18x128xf32>
    %144 = arith.addf %141, %143 : vector<18x128xf32>
    %c0_113 = arith.constant 0 : index
    %c0_114 = arith.constant 0 : index
    %145 = vector.load %arg11[%c0_113, %c0_114] : memref<18x128xf32, #tpu.memory_space<vmem>>, vector<18x128xf32>
    tpu.vector_store %arg11[%c0_113, %c0_114], %144 {strides = array<i32>} : memref<18x128xf32, #tpu.memory_space<vmem>>, vector<18x128xf32>,
    %c0_115 = arith.constant 0 : index
    %c0_116 = arith.constant 0 : index
    %146 = tpu.strided_load %arg11[%c0_115, %c0_116] {strides = array<i32: 2, 1>} : memref<18x128xf32, #tpu.memory_space<vmem>>, vector<9x128xf32>
    %c1_117 = arith.constant 1 : index
    %c0_118 = arith.constant 0 : index
    %147 = tpu.strided_load %arg11[%c1_117, %c0_118] {strides = array<i32: 2, 1>} : memref<18x128xf32, #tpu.memory_space<vmem>>, vector<9x128xf32>
    %148 = arith.maximumf %146, %147 : vector<9x128xf32>
    %cst_119 = arith.constant 0.000000e+00 : f32
    %149 = vector.broadcast %cst_119 : f32 to vector<9x128xf32>
    %150 = arith.maximumf %148, %149 : vector<9x128xf32>
    %c0_120 = arith.constant 0 : index
    %c0_121 = arith.constant 0 : index
    %c0_122 = arith.constant 0 : index
    %151 = vector.load %arg8[%c0_120, %c0_121, %c0_122] : memref<1x9x128xf32, #tpu.memory_space<vmem>>, vector<1x9x128xf32>
    %152 = vector.shape_cast %151 : vector<1x9x128xf32> to vector<9x128xf32>
    %153 = vector.shape_cast %150 : vector<9x128xf32> to vector<1x9x128xf32>
    tpu.vector_store %arg8[%c0_120, %c0_121, %c0_122], %153 {strides = array<i32>} : memref<1x9x128xf32, #tpu.memory_space<vmem>>, vector<1x9x128xf32>,
    return
  }
  func.func @transform_0(%arg0: i32) -> (i32, i32, i32) {
    %c0_i32 = arith.constant 0 : i32
    %c0_i32_0 = arith.constant 0 : i32
    %c0_i32_1 = arith.constant 0 : i32
    return %arg0, %c0_i32, %c0_i32_0 : i32, i32, i32
  }
  func.func @transform_1(%arg0: i32) -> (i32, i32, i32) {
    %c0_i32 = arith.constant 0 : i32
    %c0_i32_0 = arith.constant 0 : i32
    %c0_i32_1 = arith.constant 0 : i32
    %c0_i32_2 = arith.constant 0 : i32
    return %c0_i32, %c0_i32_0, %c0_i32_1 : i32, i32, i32
  }
  func.func @transform_2(%arg0: i32) -> (i32, i32) {
    %c0_i32 = arith.constant 0 : i32
    %c0_i32_0 = arith.constant 0 : i32
    %c0_i32_1 = arith.constant 0 : i32
    return %c0_i32, %c0_i32_0 : i32, i32
  }
  func.func @transform_3(%arg0: i32) -> (i32, i32, i32) {
    %c0_i32 = arith.constant 0 : i32
    %c0_i32_0 = arith.constant 0 : i32
    %c0_i32_1 = arith.constant 0 : i32
    %c0_i32_2 = arith.constant 0 : i32
    return %c0_i32, %c0_i32_0, %c0_i32_1 : i32, i32, i32
  }
  func.func @transform_4(%arg0: i32) -> (i32, i32) {
    %c0_i32 = arith.constant 0 : i32
    %c0_i32_0 = arith.constant 0 : i32
    %c0_i32_1 = arith.constant 0 : i32
    return %c0_i32, %c0_i32_0 : i32, i32
  }
  func.func @transform_5(%arg0: i32) -> (i32, i32, i32) {
    %c0_i32 = arith.constant 0 : i32
    %c0_i32_0 = arith.constant 0 : i32
    %c0_i32_1 = arith.constant 0 : i32
    %c0_i32_2 = arith.constant 0 : i32
    return %c0_i32, %c0_i32_0, %c0_i32_1 : i32, i32, i32
  }
  func.func @transform_6(%arg0: i32) -> (i32, i32) {
    %c0_i32 = arith.constant 0 : i32
    %c0_i32_0 = arith.constant 0 : i32
    %c0_i32_1 = arith.constant 0 : i32
    return %c0_i32, %c0_i32_0 : i32, i32
  }
  func.func @transform_7(%arg0: i32) -> (i32, i32, i32) {
    %c0_i32 = arith.constant 0 : i32
    %c0_i32_0 = arith.constant 0 : i32
    %c0_i32_1 = arith.constant 0 : i32
    return %arg0, %c0_i32, %c0_i32_0 : i32, i32, i32
  }
}

</mosaic_0001>

<llo_original>
// kernel: conv_bottleneck_forward.1
$region0: #{conv_bottleneck_forward.1}
  #allocation0 [shape = 'u32[]', space=smem, size = 0x4, offset = 0x4, fixed_abs, tag = 'smem constant byte address 0x4 - core index']
  #allocation1 [shape = 'u32[144,128]{1,0:T(1,128)}', space=vmem, size = 0x12000, scoped, tag = 'internal scratch']
  #allocation2 [shape = 'f32[118,128]{1,0:T(8,128)}', space=vmem, size = 0xf000, scoped, tag = 'scratch operand']
  #allocation3 [shape = 'f32[52,128]{1,0:T(8,128)}', space=vmem, size = 0x7000, scoped, tag = 'scratch operand']
  #allocation4 [shape = 'f32[18,128]{1,0:T(8,128)}', space=vmem, size = 0x3000, scoped, tag = 'scratch operand']
  %s0 = inlined_call_operand.vmem [shape: f32[2,126,128], index: 0, kind: input, shape index: {}]
  %s1 = inlined_call_operand.vmem [shape: f32[9,128,128], index: 1, kind: input, shape index: {}]
  %s2 = inlined_call_operand.vmem [shape: f32[1,128], index: 2, kind: input, shape index: {}]
  %s3 = inlined_call_operand.vmem [shape: f32[8,128,128], index: 3, kind: input, shape index: {}]
  %s4 = inlined_call_operand.vmem [shape: f32[1,128], index: 4, kind: input, shape index: {}]
  %s5 = inlined_call_operand.vmem [shape: f32[8,128,128], index: 5, kind: input, shape index: {}]
  %s6 = inlined_call_operand.vmem [shape: f32[1,128], index: 6, kind: input, shape index: {}]
  %s7 = inlined_call_operand.vmem [shape: f32[2,9,128], index: 7, kind: output, shape index: {}]
  %s8 = sld [smem:[#allocation0]]
  $region61: #{conv_bottleneck_forward.1} parent=0
    _
  %s10 = ssub.s32 1, %s8
  %s11 = scalar_select 0, %s10, %s8
  loop: start=0, step=1, limit=4
  $region2: #{conv_bottleneck_forward.1} parent=0 // loop_pre_header
    _
  $region3: #{conv_bottleneck_forward.1} parent=0 // loop_header
    %s13 = sphi 0, %s17
    %p14 = scmp.ge.s32.totalorder %s13, 4
    %s23 = sphi 0, %s25
    %s26 = sphi 0, %s23
    %s27 = sphi 0, %s26
    %s43 = sphi 0, %s27
    %s47 = sphi 0, %s47
    %s49 = sphi 0, %s47
    %s50 = sphi 0, %s49
    %s64 = sphi 0, %s50
    %s68 = sphi 0, %s68
    %s70 = sphi 0, %s68
    %s71 = sphi 0, %s70
    %s85 = sphi 0, %s71
    %s89 = sphi 0, %s89
    %s91 = sphi 0, %s89
    %s92 = sphi 0, %s91
    %s106 = sphi 0, %s92
    %s110 = sphi 0, %s110
    %s112 = sphi 0, %s110
    %s113 = sphi 0, %s112
    %s127 = sphi 0, %s113
    %s131 = sphi 0, %s131
    %s133 = sphi 0, %s131
    %s134 = sphi 0, %s133
    %s148 = sphi 0, %s134
    %s152 = sphi 0, %s152
    %s154 = sphi 0, %s152
    %s155 = sphi 0, %s154
    %s169 = sphi 0, %s155
    %s175 = sphi 0, %s177
    %s178 = sphi 0, %s175
    %s179 = sphi 0, %s178
    %s195 = sphi 0, %s179
  $region4: #{conv_bottleneck_forward.1} parent=0 // loop_header_branch
    %16 = sbr.rel (%p14) target = $region8
  $region5: #{conv_bottleneck_forward.1} parent=0 // loop_body
    %s18 = ssub.s32 %s13, 1
    %s19 = ssub.s32 %s13, 2
    %s20 = sadd.s32 %s13, 1
    %s21 = ssub.s32 %s13, %s20
    %p22 = scmp.eq.s32.totalorder %s21, 0
    %s24 = sadd.s32 %s23, 1
    %s25 = scalar_select %p22, %s23, %s24
    %p28 = pneg %p22
    %p29 = scmp.eq.s32.totalorder %s13, 1
    %p30 = por %p28, %p29
    %p31 = scmp.ne.s32.totalorder %s23, %s26
    %p32 = scmp.eq.s32.totalorder %s13, 0
    %p33 = por %p31, %p32
    %p34 = scmp.ne.s32.totalorder %s23, %s26
    %p35 = scmp.eq.s32.totalorder %s18, 1
    %p36 = por %p34, %p35
    %p37 = scmp.ne.s32.totalorder %s26, %s27
    %p38 = scmp.eq.s32.totalorder %s18, 0
    %p39 = por %p37, %p38
    %p40 = scmp.ne.s32.totalorder %s26, %s27
    %p41 = scmp.eq.s32.totalorder %s19, 1
    %p42 = por %p40, %p41
    %p44 = scmp.ne.s32.totalorder %s27, %s43
    %p45 = scmp.eq.s32.totalorder %s19, 0
    %p46 = por %p44, %p45
    %s48 = sadd.s32 %s47, 1
    %p51 = scmp.eq.s32.totalorder %s13, 1
    %p52 = scmp.ne.s32.totalorder %s47, %s49
    %p53 = scmp.eq.s32.totalorder %s13, 0
    %p54 = por %p52, %p53
    %p55 = scmp.ne.s32.totalorder %s47, %s49
    %p56 = scmp.eq.s32.totalorder %s18, 1
    %p57 = por %p55, %p56
    %p58 = scmp.ne.s32.totalorder %s49, %s50
    %p59 = scmp.eq.s32.totalorder %s18, 0
    %p60 = por %p58, %p59
    %p61 = scmp.ne.s32.totalorder %s49, %s50
    %p62 = scmp.eq.s32.totalorder %s19, 1
    %p63 = por %p61, %p62
    %p65 = scmp.ne.s32.totalorder %s50, %s64
    %p66 = scmp.eq.s32.totalorder %s19, 0
    %p67 = por %p65, %p66
    %s69 = sadd.s32 %s68, 1
    %p72 = scmp.eq.s32.totalorder %s13, 1
    %p73 = scmp.ne.s32.totalorder %s68, %s70
    %p74 = scmp.eq.s32.totalorder %s13, 0
    %p75 = por %p73, %p74
    %p76 = scmp.ne.s32.totalorder %s68, %s70
    %p77 = scmp.eq.s32.totalorder %s18, 1
    %p78 = por %p76, %p77
    %p79 = scmp.ne.s32.totalorder %s70, %s71
    %p80 = scmp.eq.s32.totalorder %s18, 0
    %p81 = por %p79, %p80
    %p82 = scmp.ne.s32.totalorder %s70, %s71
    %p83 = scmp.eq.s32.totalorder %s19, 1
    %p84 = por %p82, %p83
    %p86 = scmp.ne.s32.totalorder %s71, %s85
    %p87 = scmp.eq.s32.totalorder %s19, 0
    %p88 = por %p86, %p87
    %s90 = sadd.s32 %s89, 1
    %p93 = scmp.eq.s32.totalorder %s13, 1
    %p94 = scmp.ne.s32.totalorder %s89, %s91
    %p95 = scmp.eq.s32.totalorder %s13, 0
    %p96 = por %p94, %p95
    %p97 = scmp.ne.s32.totalorder %s89, %s91
    %p98 = scmp.eq.s32.totalorder %s18, 1
    %p99 = por %p97, %p98
    %p100 = scmp.ne.s32.totalorder %s91, %s92
    %p101 = scmp.eq.s32.totalorder %s18, 0
    %p102 = por %p100, %p101
    %p103 = scmp.ne.s32.totalorder %s91, %s92
    %p104 = scmp.eq.s32.totalorder %s19, 1
    %p105 = por %p103, %p104
    %p107 = scmp.ne.s32.totalorder %s92, %s106
    %p108 = scmp.eq.s32.totalorder %s19, 0
    %p109 = por %p107, %p108
    %s111 = sadd.s32 %s110, 1
    %p114 = scmp.eq.s32.totalorder %s13, 1
    %p115 = scmp.ne.s32.totalorder %s110, %s112
    %p116 = scmp.eq.s32.totalorder %s13, 0
    %p117 = por %p115, %p116
    %p118 = scmp.ne.s32.totalorder %s110, %s112
    %p119 = scmp.eq.s32.totalorder %s18, 1
    %p120 = por %p118, %p119
    %p121 = scmp.ne.s32.totalorder %s112, %s113
    %p122 = scmp.eq.s32.totalorder %s18, 0
    %p123 = por %p121, %p122
    %p124 = scmp.ne.s32.totalorder %s112, %s113
    %p125 = scmp.eq.s32.totalorder %s19, 1
    %p126 = por %p124, %p125
    %p128 = scmp.ne.s32.totalorder %s113, %s127
    %p129 = scmp.eq.s32.totalorder %s19, 0
    %p130 = por %p128, %p129
    %s132 = sadd.s32 %s131, 1
    %p135 = scmp.eq.s32.totalorder %s13, 1
    %p136 = scmp.ne.s32.totalorder %s131, %s133
    %p137 = scmp.eq.s32.totalorder %s13, 0
    %p138 = por %p136, %p137
    %p139 = scmp.ne.s32.totalorder %s131, %s133
    %p140 = scmp.eq.s32.totalorder %s18, 1
    %p141 = por %p139, %p140
    %p142 = scmp.ne.s32.totalorder %s133, %s134
    %p143 = scmp.eq.s32.totalorder %s18, 0
    %p144 = por %p142, %p143
    %p145 = scmp.ne.s32.totalorder %s133, %s134
    %p146 = scmp.eq.s32.totalorder %s19, 1
    %p147 = por %p145, %p146
    %p149 = scmp.ne.s32.totalorder %s134, %s148
    %p150 = scmp.eq.s32.totalorder %s19, 0
    %p151 = por %p149, %p150
    %s153 = sadd.s32 %s152, 1
    %p156 = scmp.eq.s32.totalorder %s13, 1
    %p157 = scmp.ne.s32.totalorder %s152, %s154
    %p158 = scmp.eq.s32.totalorder %s13, 0
    %p159 = por %p157, %p158
    %p160 = scmp.ne.s32.totalorder %s152, %s154
    %p161 = scmp.eq.s32.totalorder %s18, 1
    %p162 = por %p160, %p161
    %p163 = scmp.ne.s32.totalorder %s154, %s155
    %p164 = scmp.eq.s32.totalorder %s18, 0
    %p165 = por %p163, %p164
    %p166 = scmp.ne.s32.totalorder %s154, %s155
    %p167 = scmp.eq.s32.totalorder %s19, 1
    %p168 = por %p166, %p167
    %p170 = scmp.ne.s32.totalorder %s155, %s169
    %p171 = scmp.eq.s32.totalorder %s19, 0
    %p172 = por %p170, %p171
    %s173 = ssub.s32 %s13, %s20
    %p174 = scmp.eq.s32.totalorder %s173, 0
    %s176 = sadd.s32 %s175, 1
    %s177 = scalar_select %p174, %s175, %s176
    %p180 = pneg %p174
    %p181 = scmp.eq.s32.totalorder %s13, 1
    %p182 = por %p180, %p181
    %p183 = scmp.ne.s32.totalorder %s175, %s178
    %p184 = scmp.eq.s32.totalorder %s13, 0
    %p185 = por %p183, %p184
    %p186 = scmp.ne.s32.totalorder %s175, %s178
    %p187 = scmp.eq.s32.totalorder %s18, 1
    %p188 = por %p186, %p187
    %p189 = scmp.ne.s32.totalorder %s178, %s179
    %p190 = scmp.eq.s32.totalorder %s18, 0
    %p191 = por %p189, %p190
    %p192 = scmp.ne.s32.totalorder %s178, %s179
    %p193 = scmp.eq.s32.totalorder %s19, 1
    %p194 = por %p192, %p193
    %p196 = scmp.ne.s32.totalorder %s179, %s195
    %p197 = scmp.eq.s32.totalorder %s19, 0
    %p198 = por %p196, %p197
    %p199 = scmp.le.s32.totalorder 1, %s13
    %p200 = scmp.lt.s32.totalorder %s13, 3
    %p201 = pnand %p199, %p200
    %p202 = pneg %p201
    // Predicated region
    $region9: #{conv_bottleneck_forward.1} parent=5 // pred_check
      _
    $region10: #{conv_bottleneck_forward.1} parent=5 // pred_check_branch
      %204 = sbr.rel (%p201) target = $region12
    $region11: #{conv_bottleneck_forward.1} parent=5 // pred_region
      %s205 = ssub.s32 %s13, 1
      // Predicated region
      $region13: #{conv_bottleneck_forward.1} parent=11 // pred_check
        %p206 = pneg %p60
      $region14: #{conv_bottleneck_forward.1} parent=11 // pred_check_branch
        %208 = sbr.rel (%p206) target = $region16
      $region15: #{conv_bottleneck_forward.1} parent=11 // pred_region
        _
      $region16: #{conv_bottleneck_forward.1} parent=11 // pred_fallthru
        _
      // Predicated region
      $region17: #{conv_bottleneck_forward.1} parent=11 // pred_check
        %p209 = pneg %p81
      $region18: #{conv_bottleneck_forward.1} parent=11 // pred_check_branch
        %211 = sbr.rel (%p209) target = $region20
      $region19: #{conv_bottleneck_forward.1} parent=11 // pred_region
        _
      $region20: #{conv_bottleneck_forward.1} parent=11 // pred_fallthru
        _
      // Predicated region
      $region21: #{conv_bottleneck_forward.1} parent=11 // pred_check
        %p212 = pneg %p102
      $region22: #{conv_bottleneck_forward.1} parent=11 // pred_check_branch
        %214 = sbr.rel (%p212) target = $region24
      $region23: #{conv_bottleneck_forward.1} parent=11 // pred_region
        _
      $region24: #{conv_bottleneck_forward.1} parent=11 // pred_fallthru
        _
      // Predicated region
      $region25: #{conv_bottleneck_forward.1} parent=11 // pred_check
        %p215 = pneg %p123
      $region26: #{conv_bottleneck_forward.1} parent=11 // pred_check_branch
        %217 = sbr.rel (%p215) target = $region28
      $region27: #{conv_bottleneck_forward.1} parent=11 // pred_region
        _
      $region28: #{conv_bottleneck_forward.1} parent=11 // pred_fallthru
        _
      // Predicated region
      $region29: #{conv_bottleneck_forward.1} parent=11 // pred_check
        %p218 = pneg %p144
      $region30: #{conv_bottleneck_forward.1} parent=11 // pred_check_branch
        %220 = sbr.rel (%p218) target = $region32
      $region31: #{conv_bottleneck_forward.1} parent=11 // pred_region
        _
      $region32: #{conv_bottleneck_forward.1} parent=11 // pred_fallthru
        _
      // Predicated region
      $region33: #{conv_bottleneck_forward.1} parent=11 // pred_check
        %p221 = pneg %p165
      $region34: #{conv_bottleneck_forward.1} parent=11 // pred_check_branch
        %223 = sbr.rel (%p221) target = $region36
      $region35: #{conv_bottleneck_forward.1} parent=11 // pred_region
        _
      $region36: #{conv_bottleneck_forward.1} parent=11 // pred_fallthru
        _
    $region12: #{conv_bottleneck_forward.1} parent=5 // pred_fallthru
      _
    %p224 = scmp.lt.s32.totalorder %s13, 2
    // Predicated region
    $region37: #{conv_bottleneck_forward.1} parent=5 // pred_check
      %p225 = pneg %p224
    $region38: #{conv_bottleneck_forward.1} parent=5 // pred_check_branch
      %227 = sbr.rel (%p225) target = $region40
    $region39: #{conv_bottleneck_forward.1} parent=5 // pred_region
      // Predicated region
      $region41: #{conv_bottleneck_forward.1} parent=39 // pred_check
        %p228 = pneg %p33
      $region42: #{conv_bottleneck_forward.1} parent=39 // pred_check_branch
        %230 = sbr.rel (%p228) target = $region44
      $region43: #{conv_bottleneck_forward.1} parent=39 // pred_region
        %p231 = scmp.lt.s32.totalorder %s13, 1
        %s232 = scalar_select %p231, %s13, 1
        %s233 = smul.addr %s232, 16
        %s234 = smul.addr %s233, 8
        %s235 = scalar_lea.vmem %s0, %s234
      $region44: #{conv_bottleneck_forward.1} parent=39 // pred_fallthru
        _
    $region40: #{conv_bottleneck_forward.1} parent=5 // pred_fallthru
      _
    %p236 = scmp.le.s32.totalorder 1, %s13
    %p237 = scmp.lt.s32.totalorder %s13, 3
    %p238 = pnand %p236, %p237
    %p239 = pneg %p238
    // Predicated region
    $region45: #{conv_bottleneck_forward.1} parent=5 // pred_check
      _
    $region46: #{conv_bottleneck_forward.1} parent=5 // pred_check_branch
      %241 = sbr.rel (%p238) target = $region48
    $region47: #{conv_bottleneck_forward.1} parent=5 // pred_region
      %s242 = ssub.s32 %s13, 1
      %p243 = scmp.lt.s32.totalorder %s18, 1
      %s244 = scalar_select %p243, %s18, 1
      %s245 = smul.addr %s244, 16
      %s246 = smul.addr %s245, 8
      %s247 = scalar_lea.vmem %s0, %s246
      %p248 = pneg %p39
      %p249 = pneg %p36
      %p250 = pneg %p60
      %p251 = pneg %p57
      %p252 = pneg %p81
      %p253 = pneg %p78
      %p254 = pneg %p102
      %p255 = pneg %p99
      %p256 = pneg %p123
      %p257 = pneg %p120
      %p258 = pneg %p144
      %p259 = pneg %p141
      %p260 = pneg %p165
      %p261 = pneg %p162
      %p262 = pneg %p191
      %p263 = pneg %p188
      %p264 = scmp.lt.s32.totalorder %s18, 1
      %s265 = scalar_select %p264, %s18, 1
      %s266 = smul.addr %s265, 2
      %s267 = smul.addr %s266, 8
      %s268 = scalar_lea.vmem %s7, %s267
      %p269 = scmp.lt.s32.totalorder %s18, 1
      %s270 = scalar_select %p269, %s18, 1
      %s271 = smul.addr %s270, 16
      %s272 = smul.addr %s271, 8
      %s273 = scalar_lea.vmem %s0, %s272
      %p274 = scmp.lt.s32.totalorder %s18, 1
      %s275 = scalar_select %p274, %s18, 1
      %s276 = smul.addr %s275, 2
      %s277 = smul.addr %s276, 8
      %s278 = scalar_lea.vmem %s7, %s277
      %v279 = vld [vmem:[%s273] sm:$0xff]
      %v280 = vld [vmem:[%s273 + $0x8] sm:$0xff]
      %v281 = vld [vmem:[%s273 + $0x10] sm:$0xff]
      %v282 = vld [vmem:[%s273 + $0x18] sm:$0xff]
      %v283 = vld [vmem:[%s273 + $0x20] sm:$0xff]
      %v284 = vld [vmem:[%s273 + $0x28] sm:$0xff]
      %v285 = vld [vmem:[%s273 + $0x30] sm:$0xff]
      %v286 = vld [vmem:[%s273 + $0x38] sm:$0xff]
      %v287 = vld [vmem:[%s273 + $0x40] sm:$0xff]
      %v288 = vld [vmem:[%s273 + $0x48] sm:$0xff]
      %v289 = vld [vmem:[%s273 + $0x50] sm:$0xff]
      %v290 = vld [vmem:[%s273 + $0x58] sm:$0xff]
      %v291 = vld [vmem:[%s273 + $0x60] sm:$0xff]
      %v292 = vld [vmem:[%s273 + $0x68] sm:$0xff]
      %v293 = vld [vmem:[%s273 + $0x70] sm:$0xff]
      %v294 = vld [vmem:[%s273 + $0x78] sm:$0x3f]
      %v295 = vld [vmem:[%s1] sm:$0xff]
      %v296 = vld [vmem:[%s1 + $0x8] sm:$0xff]
      %v297 = vld [vmem:[%s1 + $0x10] sm:$0xff]
      %v298 = vld [vmem:[%s1 + $0x18] sm:$0xff]
      %v299 = vld [vmem:[%s1 + $0x20] sm:$0xff]
      %v300 = vld [vmem:[%s1 + $0x28] sm:$0xff]
      %v301 = vld [vmem:[%s1 + $0x30] sm:$0xff]
      %v302 = vld [vmem:[%s1 + $0x38] sm:$0xff]
      %v303 = vld [vmem:[%s1 + $0x40] sm:$0xff]
      %v304 = vld [vmem:[%s1 + $0x48] sm:$0xff]
      %v305 = vld [vmem:[%s1 + $0x50] sm:$0xff]
      %v306 = vld [vmem:[%s1 + $0x58] sm:$0xff]
      %v307 = vld [vmem:[%s1 + $0x60] sm:$0xff]
      %v308 = vld [vmem:[%s1 + $0x68] sm:$0xff]
      %v309 = vld [vmem:[%s1 + $0x70] sm:$0xff]
      %v310 = vld [vmem:[%s1 + $0x78] sm:$0xff]
      %s311 = scalar_lea.vmem %s1, 128
      %v312 = vld [vmem:[%s311] sm:$0xff]
      %v313 = vld [vmem:[%s311 + $0x8] sm:$0xff]
      %v314 = vld [vmem:[%s311 + $0x10] sm:$0xff]
      %v315 = vld [vmem:[%s311 + $0x18] sm:$0xff]
      %v316 = vld [vmem:[%s311 + $0x20] sm:$0xff]
      %v317 = vld [vmem:[%s311 + $0x28] sm:$0xff]
      %v318 = vld [vmem:[%s311 + $0x30] sm:$0xff]
      %v319 = vld [vmem:[%s311 + $0x38] sm:$0xff]
      %v320 = vld [vmem:[%s311 + $0x40] sm:$0xff]
      %v321 = vld [vmem:[%s311 + $0x48] sm:$0xff]
      %v322 = vld [vmem:[%s311 + $0x50] sm:$0xff]
      %v323 = vld [vmem:[%s311 + $0x58] sm:$0xff]
      %v324 = vld [vmem:[%s311 + $0x60] sm:$0xff]
      %v325 = vld [vmem:[%s311 + $0x68] sm:$0xff]
      %v326 = vld [vmem:[%s311 + $0x70] sm:$0xff]
      %v327 = vld [vmem:[%s311 + $0x78] sm:$0xff]
      %vm343 = vcmask 1046528
      %v344 = vrot.slane %v279, 1
      %v345 = vrot.slane %v280, 1
      %v346 = vsel %vm343, %v344, %v345
      %v347 = vrot.slane %v281, 1
      %v348 = vsel %vm343, %v345, %v347
      %v349 = vrot.slane %v282, 1
      %v350 = vsel %vm343, %v347, %v349
      %v351 = vrot.slane %v283, 1
      %v352 = vsel %vm343, %v349, %v351
      %v353 = vrot.slane %v284, 1
      %v354 = vsel %vm343, %v351, %v353
      %v355 = vrot.slane %v285, 1
      %v356 = vsel %vm343, %v353, %v355
      %v357 = vrot.slane %v286, 1
      %v358 = vsel %vm343, %v355, %v357
      %v359 = vrot.slane %v287, 1
      %v360 = vsel %vm343, %v357, %v359
      %v361 = vrot.slane %v288, 1
      %v362 = vsel %vm343, %v359, %v361
      %v363 = vrot.slane %v289, 1
      %v364 = vsel %vm343, %v361, %v363
      %v365 = vrot.slane %v290, 1
      %v366 = vsel %vm343, %v363, %v365
      %v367 = vrot.slane %v291, 1
      %v368 = vsel %vm343, %v365, %v367
      %v369 = vrot.slane %v292, 1
      %v370 = vsel %vm343, %v367, %v369
      %v371 = vrot.slane %v293, 1
      %v372 = vsel %vm343, %v369, %v371
      %388 = vmatprep.subr.mxu0 0.0
      %389 = vmatpush1.msra.mxu0 %v312
      %390 = vmatprep.subr.mxu0 0.0
      %391 = vmatpush1.msra.mxu0 %v313
      %392 = vmatprep.subr.mxu0 0.0
      %393 = vmatpush1.msra.mxu0 %v314
      %394 = vmatprep.subr.mxu0 0.0
      %395 = vmatpush1.msra.mxu0 %v315
      %396 = vmatprep.subr.mxu0 0.0
      %397 = vmatpush1.msra.mxu0 %v316
      %398 = vmatprep.subr.mxu0 0.0
      %399 = vmatpush1.msra.mxu0 %v317
      %400 = vmatprep.subr.mxu0 0.0
      %401 = vmatpush1.msra.mxu0 %v318
      %402 = vmatprep.subr.mxu0 0.0
      %403 = vmatpush1.msra.mxu0 %v319
      %404 = vmatprep.subr.mxu0 0.0
      %405 = vmatpush1.msra.mxu0 %v320
      %406 = vmatprep.subr.mxu0 0.0
      %407 = vmatpush1.msra.mxu0 %v321
      %408 = vmatprep.subr.mxu0 0.0
      %409 = vmatpush1.msra.mxu0 %v322
      %410 = vmatprep.subr.mxu0 0.0
      %411 = vmatpush1.msra.mxu0 %v323
      %412 = vmatprep.subr.mxu0 0.0
      %413 = vmatpush1.msra.mxu0 %v324
      %414 = vmatprep.subr.mxu0 0.0
      %415 = vmatpush1.msra.mxu0 %v325
      %416 = vmatprep.subr.mxu0 0.0
      %417 = vmatpush1.msra.mxu0 %v326
      %418 = vmatprep.subr.mxu0 0.0
      %419 = vmatpush1.msra.mxu0 %v327
      %420 = vmatprep.subr.mxu0 0.0
      %421 = vmatpush1.msra.mxu0 0.0
      %422 = vmatprep.subr.mxu0 0.0
      %423 = vmatpush1.msra.mxu0 0.0
      %424 = vmatprep.subr.mxu0 0.0
      %425 = vmatpush1.msra.mxu0 0.0
      %426 = vmatprep.subr.mxu0 0.0
      %427 = vmatpush1.msra.mxu0 0.0
      %428 = vmatprep.subr.mxu0 0.0
      %429 = vmatpush1.msra.mxu0 0.0
      %430 = vmatprep.subr.mxu0 0.0
      %431 = vmatpush1.msra.mxu0 0.0
      %432 = vmatprep.subr.mxu0 0.0
      %433 = vmatpush1.msra.mxu0 0.0
      %434 = vmatprep.subr.mxu0 0.0
      %435 = vmatpush1.msra.mxu0 0.0
      %436 = vmatprep.subr.mxu0 0.0
      %437 = vmatpush1.msra.mxu0 0.0
      %438 = vmatprep.subr.mxu0 0.0
      %439 = vmatpush1.msra.mxu0 0.0
      %440 = vmatprep.subr.mxu0 0.0
      %441 = vmatpush1.msra.mxu0 0.0
      %442 = vmatprep.subr.mxu0 0.0
      %443 = vmatpush1.msra.mxu0 0.0
      %444 = vmatprep.subr.mxu0 0.0
      %445 = vmatpush1.msra.mxu0 0.0
      %446 = vmatprep.subr.mxu0 0.0
      %447 = vmatpush1.msra.mxu0 0.0
      %448 = vmatprep.subr.mxu0 0.0
      %449 = vmatpush1.msra.mxu0 0.0
      %450 = vmatprep.subr.mxu0 0.0
      %451 = vmatpush1.msra.mxu0 0.0
      %452 = vmatprep.mubr.f32.mxu0 0.0
      %453 = vmatmul.mubr.f32.gmra.mrb[0].mxu0 %v346
      %v454 = vpop.f32.mrb[0].mxu0
      %v455 = vadd.f32 0.0, %v454
      %v456 = vpop.f32.mrb[0].mxu0
      %457 = vmatprep.mubr.f32.mxu0 0.0
      %458 = vmatmul.mubr.f32.gmra.mrb[0].mxu0 %v348
      %v459 = vpop.f32.mrb[0].mxu0
      %v460 = vadd.f32 0.0, %v459
      %v461 = vpop.f32.mrb[0].mxu0
      %462 = vmatprep.mubr.f32.mxu0 0.0
      %463 = vmatmul.mubr.f32.gmra.mrb[0].mxu0 %v350
      %v464 = vpop.f32.mrb[0].mxu0
      %v465 = vadd.f32 0.0, %v464
      %v466 = vpop.f32.mrb[0].mxu0
      %467 = vmatprep.mubr.f32.mxu0 0.0
      %468 = vmatmul.mubr.f32.gmra.mrb[0].mxu0 %v352
      %v469 = vpop.f32.mrb[0].mxu0
      %v470 = vadd.f32 0.0, %v469
      %v471 = vpop.f32.mrb[0].mxu0
      %472 = vmatprep.mubr.f32.mxu0 0.0
      %473 = vmatmul.mubr.f32.gmra.mrb[0].mxu0 %v354
      %v474 = vpop.f32.mrb[0].mxu0
      %v475 = vadd.f32 0.0, %v474
      %v476 = vpop.f32.mrb[0].mxu0
      %477 = vmatprep.mubr.f32.mxu0 0.0
      %478 = vmatmul.mubr.f32.gmra.mrb[0].mxu0 %v356
      %v479 = vpop.f32.mrb[0].mxu0
      %v480 = vadd.f32 0.0, %v479
      %v481 = vpop.f32.mrb[0].mxu0
      %482 = vmatprep.mubr.f32.mxu0 0.0
      %483 = vmatmul.mubr.f32.gmra.mrb[0].mxu0 %v358
      %v484 = vpop.f32.mrb[0].mxu0
      %v485 = vadd.f32 0.0, %v484
      %v486 = vpop.f32.mrb[0].mxu0
      %487 = vmatprep.mubr.f32.mxu0 0.0
      %488 = vmatmul.mubr.f32.gmra.mrb[0].mxu0 %v360
      %v489 = vpop.f32.mrb[0].mxu0
      %v490 = vadd.f32 0.0, %v489
      %v491 = vpop.f32.mrb[0].mxu0
      %492 = vmatprep.mubr.f32.mxu0 0.0
      %493 = vmatmul.mubr.f32.gmra.mrb[0].mxu0 %v362
      %v494 = vpop.f32.mrb[0].mxu0
      %v495 = vadd.f32 0.0, %v494
      %v496 = vpop.f32.mrb[0].mxu0
      %497 = vmatprep.mubr.f32.mxu0 0.0
      %498 = vmatmul.mubr.f32.gmra.mrb[0].mxu0 %v364
      %v499 = vpop.f32.mrb[0].mxu0
      %v500 = vadd.f32 0.0, %v499
      %v501 = vpop.f32.mrb[0].mxu0
      %502 = vmatprep.mubr.f32.mxu0 0.0
      %503 = vmatmul.mubr.f32.gmra.mrb[0].mxu0 %v366
      %v504 = vpop.f32.mrb[0].mxu0
      %v505 = vadd.f32 0.0, %v504
      %v506 = vpop.f32.mrb[0].mxu0
      %507 = vmatprep.mubr.f32.mxu0 0.0
      %508 = vmatmul.mubr.f32.gmra.mrb[0].mxu0 %v368
      %v509 = vpop.f32.mrb[0].mxu0
      %v510 = vadd.f32 0.0, %v509
      %v511 = vpop.f32.mrb[0].mxu0
      %512 = vmatprep.mubr.f32.mxu0 0.0
      %513 = vmatmul.mubr.f32.gmra.mrb[0].mxu0 %v370
      %v514 = vpop.f32.mrb[0].mxu0
      %v515 = vadd.f32 0.0, %v514
      %v516 = vpop.f32.mrb[0].mxu0
      %517 = vmatprep.mubr.f32.mxu0 0.0
      %518 = vmatmul.mubr.f32.gmra.mrb[0].mxu0 %v372
      %v519 = vpop.f32.mrb[0].mxu0
      %v520 = vadd.f32 0.0, %v519
      %v521 = vpop.f32.mrb[0].mxu0
      %522 = vmatprep.mubr.f32.mxu0 0.0
      %523 = vmatmul.mubr.f32.gmra.mrb[0].mxu0 %v371
      %v524 = vpop.f32.mrb[0].mxu0
      %v525 = vadd.f32 0.0, %v524
      %v526 = vpop.f32.mrb[0].mxu0
      %527 = vdwg.mxu0
      %528 = vmatprep.subr.mxu0 0.0
      %529 = vmatpush1.msra.mxu0 %v295
      %530 = vmatprep.subr.mxu0 0.0
      %531 = vmatpush1.msra.mxu0 %v296
      %532 = vmatprep.subr.mxu0 0.0
      %533 = vmatpush1.msra.mxu0 %v297
      %534 = vmatprep.subr.mxu0 0.0
      %535 = vmatpush1.msra.mxu0 %v298
      %536 = vmatprep.subr.mxu0 0.0
      %537 = vmatpush1.msra.mxu0 %v299
      %538 = vmatprep.subr.mxu0 0.0
      %539 = vmatpush1.msra.mxu0 %v300
      %540 = vmatprep.subr.mxu0 0.0
      %541 = vmatpush1.msra.mxu0 %v301
      %542 = vmatprep.subr.mxu0 0.0
      %543 = vmatpush1.msra.mxu0 %v302
      %544 = vmatprep.subr.mxu0 0.0
      %545 = vmatpush1.msra.mxu0 %v303
      %546 = vmatprep.subr.mxu0 0.0
      %547 = vmatpush1.msra.mxu0 %v304
      %548 = vmatprep.subr.mxu0 0.0
      %549 = vmatpush1.msra.mxu0 %v305
      %550 = vmatprep.subr.mxu0 0.0
      %551 = vmatpush1.msra.mxu0 %v306
      %552 = vmatprep.subr.mxu0 0.0
      %553 = vmatpush1.msra.mxu0 %v307
      %554 = vmatprep.subr.mxu0 0.0
      %555 = vmatpush1.msra.mxu0 %v308
      %556 = vmatprep.subr.mxu0 0.0
      %557 = vmatpush1.msra.mxu0 %v309
      %558 = vmatprep.subr.mxu0 0.0
      %559 = vmatpush1.msra.mxu0 %v310
      %560 = vmatprep.subr.mxu0 0.0
      %561 = vmatpush1.msra.mxu0 0.0
      %562 = vmatprep.subr.mxu0 0.0
      %563 = vmatpush1.msra.mxu0 0.0
      %564 = vmatprep.subr.mxu0 0.0
      %565 = vmatpush1.msra.mxu0 0.0
      %566 = vmatprep.subr.mxu0 0.0
      %567 = vmatpush1.msra.mxu0 0.0
      %568 = vmatprep.subr.mxu0 0.0
      %569 = vmatpush1.msra.mxu0 0.0
      %570 = vmatprep.subr.mxu0 0.0
      %571 = vmatpush1.msra.mxu0 0.0
      %572 = vmatprep.subr.mxu0 0.0
      %573 = vmatpush1.msra.mxu0 0.0
      %574 = vmatprep.subr.mxu0 0.0
      %575 = vmatpush1.msra.mxu0 0.0
      %576 = vmatprep.subr.mxu0 0.0
      %577 = vmatpush1.msra.mxu0 0.0
      %578 = vmatprep.subr.mxu0 0.0
      %579 = vmatpush1.msra.mxu0 0.0
      %580 = vmatprep.subr.mxu0 0.0
      %581 = vmatpush1.msra.mxu0 0.0
      %582 = vmatprep.subr.mxu0 0.0
      %583 = vmatpush1.msra.mxu0 0.0
      %584 = vmatprep.subr.mxu0 0.0
      %585 = vmatpush1.msra.mxu0 0.0
      %586 = vmatprep.subr.mxu0 0.0
      %587 = vmatpush1.msra.mxu0 0.0
      %588 = vmatprep.subr.mxu0 0.0
      %589 = vmatpush1.msra.mxu0 0.0
      %590 = vmatprep.subr.mxu0 0.0
      %591 = vmatpush1.msra.mxu0 0.0
      %592 = vmatprep.mubr.f32.mxu0 0.0
      %593 = vmatmul.mubr.f32.gmra.mrb[0].mxu0 %v279
      %v594 = vpop.f32.mrb[0].mxu0
      %v595 = vadd.f32 %v455, %v594
      %v596 = vpop.f32.mrb[0].mxu0
      %597 = vmatprep.mubr.f32.mxu0 0.0
      %598 = vmatmul.mubr.f32.gmra.mrb[0].mxu0 %v280
      %v599 = vpop.f32.mrb[0].mxu0
      %v600 = vadd.f32 %v460, %v599
      %v601 = vpop.f32.mrb[0].mxu0
      %602 = vmatprep.mubr.f32.mxu0 0.0
      %603 = vmatmul.mubr.f32.gmra.mrb[0].mxu0 %v281
      %v604 = vpop.f32.mrb[0].mxu0
      %v605 = vadd.f32 %v465, %v604
      %v606 = vpop.f32.mrb[0].mxu0
      %607 = vmatprep.mubr.f32.mxu0 0.0
      %608 = vmatmul.mubr.f32.gmra.mrb[0].mxu0 %v282
      %v609 = vpop.f32.mrb[0].mxu0
      %v610 = vadd.f32 %v470, %v609
      %v611 = vpop.f32.mrb[0].mxu0
      %612 = vmatprep.mubr.f32.mxu0 0.0
      %613 = vmatmul.mubr.f32.gmra.mrb[0].mxu0 %v283
      %v614 = vpop.f32.mrb[0].mxu0
      %v615 = vadd.f32 %v475, %v614
      %v616 = vpop.f32.mrb[0].mxu0
      %617 = vmatprep.mubr.f32.mxu0 0.0
      %618 = vmatmul.mubr.f32.gmra.mrb[0].mxu0 %v284
      %v619 = vpop.f32.mrb[0].mxu0
      %v620 = vadd.f32 %v480, %v619
      %v621 = vpop.f32.mrb[0].mxu0
      %622 = vmatprep.mubr.f32.mxu0 0.0
      %623 = vmatmul.mubr.f32.gmra.mrb[0].mxu0 %v285
      %v624 = vpop.f32.mrb[0].mxu0
      %v625 = vadd.f32 %v485, %v624
      %v626 = vpop.f32.mrb[0].mxu0
      %627 = vmatprep.mubr.f32.mxu0 0.0
      %628 = vmatmul.mubr.f32.gmra.mrb[0].mxu0 %v286
      %v629 = vpop.f32.mrb[0].mxu0
      %v630 = vadd.f32 %v490, %v629
      %v631 = vpop.f32.mrb[0].mxu0
      %632 = vmatprep.mubr.f32.mxu0 0.0
      %633 = vmatmul.mubr.f32.gmra.mrb[0].mxu0 %v287
      %v634 = vpop.f32.mrb[0].mxu0
      %v635 = vadd.f32 %v495, %v634
      %v636 = vpop.f32.mrb[0].mxu0
      %637 = vmatprep.mubr.f32.mxu0 0.0
      %638 = vmatmul.mubr.f32.gmra.mrb[0].mxu0 %v288
      %v639 = vpop.f32.mrb[0].mxu0
      %v640 = vadd.f32 %v500, %v639
      %v641 = vpop.f32.mrb[0].mxu0
      %642 = vmatprep.mubr.f32.mxu0 0.0
      %643 = vmatmul.mubr.f32.gmra.mrb[0].mxu0 %v289
      %v644 = vpop.f32.mrb[0].mxu0
      %v645 = vadd.f32 %v505, %v644
      %v646 = vpop.f32.mrb[0].mxu0
      %647 = vmatprep.mubr.f32.mxu0 0.0
      %648 = vmatmul.mubr.f32.gmra.mrb[0].mxu0 %v290
      %v649 = vpop.f32.mrb[0].mxu0
      %v650 = vadd.f32 %v510, %v649
      %v651 = vpop.f32.mrb[0].mxu0
      %652 = vmatprep.mubr.f32.mxu0 0.0
      %653 = vmatmul.mubr.f32.gmra.mrb[0].mxu0 %v291
      %v654 = vpop.f32.mrb[0].mxu0
      %v655 = vadd.f32 %v515, %v654
      %v656 = vpop.f32.mrb[0].mxu0
      %657 = vmatprep.mubr.f32.mxu0 0.0
      %658 = vmatmul.mubr.f32.gmra.mrb[0].mxu0 %v292
      %v659 = vpop.f32.mrb[0].mxu0
      %v660 = vadd.f32 %v520, %v659
      %v661 = vpop.f32.mrb[0].mxu0
      %662 = vmatprep.mubr.f32.mxu0 0.0
      %663 = vmatmul.mubr.f32.gmra.mrb[0].mxu0 %v293
      %v664 = vpop.f32.mrb[0].mxu0
      %v665 = vadd.f32 %v525, %v664
      %v666 = vpop.f32.mrb[0].mxu0
      %667 = vdwg.mxu0
      %s668 = scalar_lea.vmem %s1, 256
      %v669 = vld [vmem:[%s668] sm:$0xff]
      %v670 = vld [vmem:[%s668 + $0x8] sm:$0xff]
      %v671 = vld [vmem:[%s668 + $0x10] sm:$0xff]
      %v672 = vld [vmem:[%s668 + $0x18] sm:$0xff]
      %v673 = vld [vmem:[%s668 + $0x20] sm:$0xff]
      %v674 = vld [vmem:[%s668 + $0x28] sm:$0xff]
      %v675 = vld [vmem:[%s668 + $0x30] sm:$0xff]
      %v676 = vld [vmem:[%s668 + $0x38] sm:$0xff]
      %v677 = vld [vmem:[%s668 + $0x40] sm:$0xff]
      %v678 = vld [vmem:[%s668 + $0x48] sm:$0xff]
      %v679 = vld [vmem:[%s668 + $0x50] sm:$0xff]
      %v680 = vld [vmem:[%s668 + $0x58] sm:$0xff]
      %v681 = vld [vmem:[%s668 + $0x60] sm:$0xff]
      %v682 = vld [vmem:[%s668 + $0x68] sm:$0xff]
      %v683 = vld [vmem:[%s668 + $0x70] sm:$0xff]
      %v684 = vld [vmem:[%s668 + $0x78] sm:$0xff]
      %vm685 = vcmask 1045504
      %v686 = vrot.slane %v279, 2
      %v687 = vrot.slane %v280, 2
      %v688 = vsel %vm685, %v686, %v687
      %v689 = vrot.slane %v281, 2
      %v690 = vsel %vm685, %v687, %v689
      %v691 = vrot.slane %v282, 2
      %v692 = vsel %vm685, %v689, %v691
      %v693 = vrot.slane %v283, 2
      %v694 = vsel %vm685, %v691, %v693
      %v695 = vrot.slane %v284, 2
      %v696 = vsel %vm685, %v693, %v695
      %v697 = vrot.slane %v285, 2
      %v698 = vsel %vm685, %v695, %v697
      %v699 = vrot.slane %v286, 2
      %v700 = vsel %vm685, %v697, %v699
      %v701 = vrot.slane %v287, 2
      %v702 = vsel %vm685, %v699, %v701
      %v703 = vrot.slane %v288, 2
      %v704 = vsel %vm685, %v701, %v703
      %v705 = vrot.slane %v289, 2
      %v706 = vsel %vm685, %v703, %v705
      %v707 = vrot.slane %v290, 2
      %v708 = vsel %vm685, %v705, %v707
      %v709 = vrot.slane %v291, 2
      %v710 = vsel %vm685, %v707, %v709
      %v711 = vrot.slane %v292, 2
      %v712 = vsel %vm685, %v709, %v711
      %v713 = vrot.slane %v293, 2
      %v714 = vsel %vm685, %v711, %v713
      %730 = vmatprep.subr.mxu0 0.0
      %731 = vmatpush1.msra.mxu0 %v669
      %732 = vmatprep.subr.mxu0 0.0
      %733 = vmatpush1.msra.mxu0 %v670
      %734 = vmatprep.subr.mxu0 0.0
      %735 = vmatpush1.msra.mxu0 %v671
      %736 = vmatprep.subr.mxu0 0.0
      %737 = vmatpush1.msra.mxu0 %v672
      %738 = vmatprep.subr.mxu0 0.0
      %739 = vmatpush1.msra.mxu0 %v673
      %740 = vmatprep.subr.mxu0 0.0
      %741 = vmatpush1.msra.mxu0 %v674
      %742 = vmatprep.subr.mxu0 0.0
      %743 = vmatpush1.msra.mxu0 %v675
      %744 = vmatprep.subr.mxu0 0.0
      %745 = vmatpush1.msra.mxu0 %v676
      %746 = vmatprep.subr.mxu0 0.0
      %747 = vmatpush1.msra.mxu0 %v677
      %748 = vmatprep.subr.mxu0 0.0
      %749 = vmatpush1.msra.mxu0 %v678
      %750 = vmatprep.subr.mxu0 0.0
      %751 = vmatpush1.msra.mxu0 %v679
      %752 = vmatprep.subr.mxu0 0.0
      %753 = vmatpush1.msra.mxu0 %v680
      %754 = vmatprep.subr.mxu0 0.0
      %755 = vmatpush1.msra.mxu0 %v681
      %756 = vmatprep.subr.mxu0 0.0
      %757 = vmatpush1.msra.mxu0 %v682
      %758 = vmatprep.subr.mxu0 0.0
      %759 = vmatpush1.msra.mxu0 %v683
      %760 = vmatprep.subr.mxu0 0.0
      %761 = vmatpush1.msra.mxu0 %v684
      %762 = vmatprep.subr.mxu0 0.0
      %763 = vmatpush1.msra.mxu0 0.0
      %764 = vmatprep.subr.mxu0 0.0
      %765 = vmatpush1.msra.mxu0 0.0
      %766 = vmatprep.subr.mxu0 0.0
      %767 = vmatpush1.msra.mxu0 0.0
      %768 = vmatprep.subr.mxu0 0.0
      %769 = vmatpush1.msra.mxu0 0.0
      %770 = vmatprep.subr.mxu0 0.0
      %771 = vmatpush1.msra.mxu0 0.0
      %772 = vmatprep.subr.mxu0 0.0
      %773 = vmatpush1.msra.mxu0 0.0
      %774 = vmatprep.subr.mxu0 0.0
      %775 = vmatpush1.msra.mxu0 0.0
      %776 = vmatprep.subr.mxu0 0.0
      %777 = vmatpush1.msra.mxu0 0.0
      %778 = vmatprep.subr.mxu0 0.0
      %779 = vmatpush1.msra.mxu0 0.0
      %780 = vmatprep.subr.mxu0 0.0
      %781 = vmatpush1.msra.mxu0 0.0
      %782 = vmatprep.subr.mxu0 0.0
      %783 = vmatpush1.msra.mxu0 0.0
      %784 = vmatprep.subr.mxu0 0.0
      %785 = vmatpush1.msra.mxu0 0.0
      %786 = vmatprep.subr.mxu0 0.0
      %787 = vmatpush1.msra.mxu0 0.0
      %788 = vmatprep.subr.mxu0 0.0
      %789 = vmatpush1.msra.mxu0 0.0
      %790 = vmatprep.subr.mxu0 0.0
      %791 = vmatpush1.msra.mxu0 0.0
      %792 = vmatprep.subr.mxu0 0.0
      %793 = vmatpush1.msra.mxu0 0.0
      %794 = vmatprep.mubr.f32.mxu0 0.0
      %795 = vmatmul.mubr.f32.gmra.mrb[0].mxu0 %v688
      %v796 = vpop.f32.mrb[0].mxu0
      %v797 = vadd.f32 0.0, %v796
      %v798 = vpop.f32.mrb[0].mxu0
      %799 = vmatprep.mubr.f32.mxu0 0.0
      %800 = vmatmul.mubr.f32.gmra.mrb[0].mxu0 %v690
      %v801 = vpop.f32.mrb[0].mxu0
      %v802 = vadd.f32 0.0, %v801
      %v803 = vpop.f32.mrb[0].mxu0
      %804 = vmatprep.mubr.f32.mxu0 0.0
      %805 = vmatmul.mubr.f32.gmra.mrb[0].mxu0 %v692
      %v806 = vpop.f32.mrb[0].mxu0
      %v807 = vadd.f32 0.0, %v806
      %v808 = vpop.f32.mrb[0].mxu0
      %809 = vmatprep.mubr.f32.mxu0 0.0
      %810 = vmatmul.mubr.f32.gmra.mrb[0].mxu0 %v694
      %v811 = vpop.f32.mrb[0].mxu0
      %v812 = vadd.f32 0.0, %v811
      %v813 = vpop.f32.mrb[0].mxu0
      %814 = vmatprep.mubr.f32.mxu0 0.0
      %815 = vmatmul.mubr.f32.gmra.mrb[0].mxu0 %v696
      %v816 = vpop.f32.mrb[0].mxu0
      %v817 = vadd.f32 0.0, %v816
      %v818 = vpop.f32.mrb[0].mxu0
      %819 = vmatprep.mubr.f32.mxu0 0.0
      %820 = vmatmul.mubr.f32.gmra.mrb[0].mxu0 %v698
      %v821 = vpop.f32.mrb[0].mxu0
      %v822 = vadd.f32 0.0, %v821
      %v823 = vpop.f32.mrb[0].mxu0
      %824 = vmatprep.mubr.f32.mxu0 0.0
      %825 = vmatmul.mubr.f32.gmra.mrb[0].mxu0 %v700
      %v826 = vpop.f32.mrb[0].mxu0
      %v827 = vadd.f32 0.0, %v826
      %v828 = vpop.f32.mrb[0].mxu0
      %829 = vmatprep.mubr.f32.mxu0 0.0
      %830 = vmatmul.mubr.f32.gmra.mrb[0].mxu0 %v702
      %v831 = vpop.f32.mrb[0].mxu0
      %v832 = vadd.f32 0.0, %v831
      %v833 = vpop.f32.mrb[0].mxu0
      %834 = vmatprep.mubr.f32.mxu0 0.0
      %835 = vmatmul.mubr.f32.gmra.mrb[0].mxu0 %v704
      %v836 = vpop.f32.mrb[0].mxu0
      %v837 = vadd.f32 0.0, %v836
      %v838 = vpop.f32.mrb[0].mxu0
      %839 = vmatprep.mubr.f32.mxu0 0.0
      %840 = vmatmul.mubr.f32.gmra.mrb[0].mxu0 %v706
      %v841 = vpop.f32.mrb[0].mxu0
      %v842 = vadd.f32 0.0, %v841
      %v843 = vpop.f32.mrb[0].mxu0
      %844 = vmatprep.mubr.f32.mxu0 0.0
      %845 = vmatmul.mubr.f32.gmra.mrb[0].mxu0 %v708
      %v846 = vpop.f32.mrb[0].mxu0
      %v847 = vadd.f32 0.0, %v846
      %v848 = vpop.f32.mrb[0].mxu0
      %849 = vmatprep.mubr.f32.mxu0 0.0
      %850 = vmatmul.mubr.f32.gmra.mrb[0].mxu0 %v710
      %v851 = vpop.f32.mrb[0].mxu0
      %v852 = vadd.f32 0.0, %v851
      %v853 = vpop.f32.mrb[0].mxu0
      %854 = vmatprep.mubr.f32.mxu0 0.0
      %855 = vmatmul.mubr.f32.gmra.mrb[0].mxu0 %v712
      %v856 = vpop.f32.mrb[0].mxu0
      %v857 = vadd.f32 0.0, %v856
      %v858 = vpop.f32.mrb[0].mxu0
      %859 = vmatprep.mubr.f32.mxu0 0.0
      %860 = vmatmul.mubr.f32.gmra.mrb[0].mxu0 %v714
      %v861 = vpop.f32.mrb[0].mxu0
      %v862 = vadd.f32 0.0, %v861
      %v863 = vpop.f32.mrb[0].mxu0
      %864 = vmatprep.mubr.f32.mxu0 0.0
      %865 = vmatmul.mubr.f32.gmra.mrb[0].mxu0 %v713
      %v866 = vpop.f32.mrb[0].mxu0
      %v867 = vadd.f32 0.0, %v866
      %v868 = vpop.f32.mrb[0].mxu0
      %869 = vdwg.mxu0
      %v870 = vadd.f32 %v595, %v797
      %v871 = vadd.f32 %v600, %v802
      %v872 = vadd.f32 %v605, %v807
      %v873 = vadd.f32 %v610, %v812
      %v874 = vadd.f32 %v615, %v817
      %v875 = vadd.f32 %v620, %v822
      %v876 = vadd.f32 %v625, %v827
      %v877 = vadd.f32 %v630, %v832
      %v878 = vadd.f32 %v635, %v837
      %v879 = vadd.f32 %v640, %v842
      %v880 = vadd.f32 %v645, %v847
      %v881 = vadd.f32 %v650, %v852
      %v882 = vadd.f32 %v655, %v857
      %v883 = vadd.f32 %v660, %v862
      %v884 = vadd.f32 %v665, %v867
      %s885 = scalar_lea.vmem %s1, 384
      %v886 = vld [vmem:[%s885] sm:$0xff]
      %v887 = vld [vmem:[%s885 + $0x8] sm:$0xff]
      %v888 = vld [vmem:[%s885 + $0x10] sm:$0xff]
      %v889 = vld [vmem:[%s885 + $0x18] sm:$0xff]
      %v890 = vld [vmem:[%s885 + $0x20] sm:$0xff]
      %v891 = vld [vmem:[%s885 + $0x28] sm:$0xff]
      %v892 = vld [vmem:[%s885 + $0x30] sm:$0xff]
      %v893 = vld [vmem:[%s885 + $0x38] sm:$0xff]
      %v894 = vld [vmem:[%s885 + $0x40] sm:$0xff]
      %v895 = vld [vmem:[%s885 + $0x48] sm:$0xff]
      %v896 = vld [vmem:[%s885 + $0x50] sm:$0xff]
      %v897 = vld [vmem:[%s885 + $0x58] sm:$0xff]
      %v898 = vld [vmem:[%s885 + $0x60] sm:$0xff]
      %v899 = vld [vmem:[%s885 + $0x68] sm:$0xff]
      %v900 = vld [vmem:[%s885 + $0x70] sm:$0xff]
      %v901 = vld [vmem:[%s885 + $0x78] sm:$0xff]
      %vm903 = vcmask 1044480
      %v904 = vrot.slane %v279, 3
      %v905 = vrot.slane %v280, 3
      %v906 = vsel %vm903, %v904, %v905
      %v907 = vrot.slane %v281, 3
      %v908 = vsel %vm903, %v905, %v907
      %v909 = vrot.slane %v282, 3
      %v910 = vsel %vm903, %v907, %v909
      %v911 = vrot.slane %v283, 3
      %v912 = vsel %vm903, %v909, %v911
      %v913 = vrot.slane %v284, 3
      %v914 = vsel %vm903, %v911, %v913
      %v915 = vrot.slane %v285, 3
      %v916 = vsel %vm903, %v913, %v915
      %v917 = vrot.slane %v286, 3
      %v918 = vsel %vm903, %v915, %v917
      %v919 = vrot.slane %v287, 3
      %v920 = vsel %vm903, %v917, %v919
      %v921 = vrot.slane %v288, 3
      %v922 = vsel %vm903, %v919, %v921
      %v923 = vrot.slane %v289, 3
      %v924 = vsel %vm903, %v921, %v923
      %v925 = vrot.slane %v290, 3
      %v926 = vsel %vm903, %v923, %v925
      %v927 = vrot.slane %v291, 3
      %v928 = vsel %vm903, %v925, %v927
      %v929 = vrot.slane %v292, 3
      %v930 = vsel %vm903, %v927, %v929
      %v931 = vrot.slane %v293, 3
      %v932 = vsel %vm903, %v929, %v931
      %v933 = vrot.slane %v294, 3
      %v934 = vsel %vm903, %v931, %v933
      %950 = vmatprep.subr.mxu0 0.0
      %951 = vmatpush1.msra.mxu0 %v886
      %952 = vmatprep.subr.mxu0 0.0
      %953 = vmatpush1.msra.mxu0 %v887
      %954 = vmatprep.subr.mxu0 0.0
      %955 = vmatpush1.msra.mxu0 %v888
      %956 = vmatprep.subr.mxu0 0.0
      %957 = vmatpush1.msra.mxu0 %v889
      %958 = vmatprep.subr.mxu0 0.0
      %959 = vmatpush1.msra.mxu0 %v890
      %960 = vmatprep.subr.mxu0 0.0
      %961 = vmatpush1.msra.mxu0 %v891
      %962 = vmatprep.subr.mxu0 0.0
      %963 = vmatpush1.msra.mxu0 %v892
      %964 = vmatprep.subr.mxu0 0.0
      %965 = vmatpush1.msra.mxu0 %v893
      %966 = vmatprep.subr.mxu0 0.0
      %967 = vmatpush1.msra.mxu0 %v894
      %968 = vmatprep.subr.mxu0 0.0
      %969 = vmatpush1.msra.mxu0 %v895
      %970 = vmatprep.subr.mxu0 0.0
      %971 = vmatpush1.msra.mxu0 %v896
      %972 = vmatprep.subr.mxu0 0.0
      %973 = vmatpush1.msra.mxu0 %v897
      %974 = vmatprep.subr.mxu0 0.0
      %975 = vmatpush1.msra.mxu0 %v898
      %976 = vmatprep.subr.mxu0 0.0
      %977 = vmatpush1.msra.mxu0 %v899
      %978 = vmatprep.subr.mxu0 0.0
      %979 = vmatpush1.msra.mxu0 %v900
      %980 = vmatprep.subr.mxu0 0.0
      %981 = vmatpush1.msra.mxu0 %v901
      %982 = vmatprep.subr.mxu0 0.0
      %983 = vmatpush1.msra.mxu0 0.0
      %984 = vmatprep.subr.mxu0 0.0
      %985 = vmatpush1.msra.mxu0 0.0
      %986 = vmatprep.subr.mxu0 0.0
      %987 = vmatpush1.msra.mxu0 0.0
      %988 = vmatprep.subr.mxu0 0.0
      %989 = vmatpush1.msra.mxu0 0.0
      %990 = vmatprep.subr.mxu0 0.0
      %991 = vmatpush1.msra.mxu0 0.0
      %992 = vmatprep.subr.mxu0 0.0
      %993 = vmatpush1.msra.mxu0 0.0
      %994 = vmatprep.subr.mxu0 0.0
      %995 = vmatpush1.msra.mxu0 0.0
      %996 = vmatprep.subr.mxu0 0.0
      %997 = vmatpush1.msra.mxu0 0.0
      %998 = vmatprep.subr.mxu0 0.0
      %999 = vmatpush1.msra.mxu0 0.0
      %1000 = vmatprep.subr.mxu0 0.0
      %1001 = vmatpush1.msra.mxu0 0.0
      %1002 = vmatprep.subr.mxu0 0.0
      %1003 = vmatpush1.msra.mxu0 0.0
      %1004 = vmatprep.subr.mxu0 0.0
      %1005 = vmatpush1.msra.mxu0 0.0
      %1006 = vmatprep.subr.mxu0 0.0
      %1007 = vmatpush1.msra.mxu0 0.0
      %1008 = vmatprep.subr.mxu0 0.0
      %1009 = vmatpush1.msra.mxu0 0.0
      %1010 = vmatprep.subr.mxu0 0.0
      %1011 = vmatpush1.msra.mxu0 0.0
      %1012 = vmatprep.subr.mxu0 0.0
      %1013 = vmatpush1.msra.mxu0 0.0
      %1014 = vmatprep.mubr.f32.mxu0 0.0
      %1015 = vmatmul.mubr.f32.gmra.mrb[0].mxu0 %v906
      %v1016 = vpop.f32.mrb[0].mxu0
      %v1017 = vadd.f32 0.0, %v1016
      %v1018 = vpop.f32.mrb[0].mxu0
      %1019 = vmatprep.mubr.f32.mxu0 0.0
      %1020 = vmatmul.mubr.f32.gmra.mrb[0].mxu0 %v908
      %v1021 = vpop.f32.mrb[0].mxu0
      %v1022 = vadd.f32 0.0, %v1021
      %v1023 = vpop.f32.mrb[0].mxu0
      %1024 = vmatprep.mubr.f32.mxu0 0.0
      %1025 = vmatmul.mubr.f32.gmra.mrb[0].mxu0 %v910
      %v1026 = vpop.f32.mrb[0].mxu0
      %v1027 = vadd.f32 0.0, %v1026
      %v1028 = vpop.f32.mrb[0].mxu0
      %1029 = vmatprep.mubr.f32.mxu0 0.0
      %1030 = vmatmul.mubr.f32.gmra.mrb[0].mxu0 %v912
      %v1031 = vpop.f32.mrb[0].mxu0
      %v1032 = vadd.f32 0.0, %v1031
      %v1033 = vpop.f32.mrb[0].mxu0
      %1034 = vmatprep.mubr.f32.mxu0 0.0
      %1035 = vmatmul.mubr.f32.gmra.mrb[0].mxu0 %v914
      %v1036 = vpop.f32.mrb[0].mxu0
      %v1037 = vadd.f32 0.0, %v1036
      %v1038 = vpop.f32.mrb[0].mxu0
      %1039 = vmatprep.mubr.f32.mxu0 0.0
      %1040 = vmatmul.mubr.f32.gmra.mrb[0].mxu0 %v916
      %v1041 = vpop.f32.mrb[0].mxu0
      %v1042 = vadd.f32 0.0, %v1041
      %v1043 = vpop.f32.mrb[0].mxu0
      %1044 = vmatprep.mubr.f32.mxu0 0.0
      %1045 = vmatmul.mubr.f32.gmra.mrb[0].mxu0 %v918
      %v1046 = vpop.f32.mrb[0].mxu0
      %v1047 = vadd.f32 0.0, %v1046
      %v1048 = vpop.f32.mrb[0].mxu0
      %1049 = vmatprep.mubr.f32.mxu0 0.0
      %1050 = vmatmul.mubr.f32.gmra.mrb[0].mxu0 %v920
      %v1051 = vpop.f32.mrb[0].mxu0
      %v1052 = vadd.f32 0.0, %v1051
      %v1053 = vpop.f32.mrb[0].mxu0
      %1054 = vmatprep.mubr.f32.mxu0 0.0
      %1055 = vmatmul.mubr.f32.gmra.mrb[0].mxu0 %v922
      %v1056 = vpop.f32.mrb[0].mxu0
      %v1057 = vadd.f32 0.0, %v1056
      %v1058 = vpop.f32.mrb[0].mxu0
      %1059 = vmatprep.mubr.f32.mxu0 0.0
      %1060 = vmatmul.mubr.f32.gmra.mrb[0].mxu0 %v924
      %v1061 = vpop.f32.mrb[0].mxu0
      %v1062 = vadd.f32 0.0, %v1061
      %v1063 = vpop.f32.mrb[0].mxu0
      %1064 = vmatprep.mubr.f32.mxu0 0.0
      %1065 = vmatmul.mubr.f32.gmra.mrb[0].mxu0 %v926
      %v1066 = vpop.f32.mrb[0].mxu0
      %v1067 = vadd.f32 0.0, %v1066
      %v1068 = vpop.f32.mrb[0].mxu0
      %1069 = vmatprep.mubr.f32.mxu0 0.0
      %1070 = vmatmul.mubr.f32.gmra.mrb[0].mxu0 %v928
      %v1071 = vpop.f32.mrb[0].mxu0
      %v1072 = vadd.f32 0.0, %v1071
      %v1073 = vpop.f32.mrb[0].mxu0
      %1074 = vmatprep.mubr.f32.mxu0 0.0
      %1075 = vmatmul.mubr.f32.gmra.mrb[0].mxu0 %v930
      %v1076 = vpop.f32.mrb[0].mxu0
      %v1077 = vadd.f32 0.0, %v1076
      %v1078 = vpop.f32.mrb[0].mxu0
      %1079 = vmatprep.mubr.f32.mxu0 0.0
      %1080 = vmatmul.mubr.f32.gmra.mrb[0].mxu0 %v932
      %v1081 = vpop.f32.mrb[0].mxu0
      %v1082 = vadd.f32 0.0, %v1081
      %v1083 = vpop.f32.mrb[0].mxu0
      %1084 = vmatprep.mubr.f32.mxu0 0.0
      %1085 = vmatmul.mubr.f32.gmra.mrb[0].mxu0 %v934
      %v1086 = vpop.f32.mrb[0].mxu0
      %v1087 = vadd.f32 0.0, %v1086
      %v1088 = vpop.f32.mrb[0].mxu0
      %1089 = vdwg.mxu0
      %v1090 = vadd.f32 %v870, %v1017
      %v1091 = vadd.f32 %v871, %v1022
      %v1092 = vadd.f32 %v872, %v1027
      %v1093 = vadd.f32 %v873, %v1032
      %v1094 = vadd.f32 %v874, %v1037
      %v1095 = vadd.f32 %v875, %v1042
      %v1096 = vadd.f32 %v876, %v1047
      %v1097 = vadd.f32 %v877, %v1052
      %v1098 = vadd.f32 %v878, %v1057
      %v1099 = vadd.f32 %v879, %v1062
      %v1100 = vadd.f32 %v880, %v1067
      %v1101 = vadd.f32 %v881, %v1072
      %v1102 = vadd.f32 %v882, %v1077
      %v1103 = vadd.f32 %v883, %v1082
      %v1104 = vadd.f32 %v884, %v1087
      %s1105 = scalar_lea.vmem %s1, 512
      %v1106 = vld [vmem:[%s1105] sm:$0xff]
      %v1107 = vld [vmem:[%s1105 + $0x8] sm:$0xff]
      %v1108 = vld [vmem:[%s1105 + $0x10] sm:$0xff]
      %v1109 = vld [vmem:[%s1105 + $0x18] sm:$0xff]
      %v1110 = vld [vmem:[%s1105 + $0x20] sm:$0xff]
      %v1111 = vld [vmem:[%s1105 + $0x28] sm:$0xff]
      %v1112 = vld [vmem:[%s1105 + $0x30] sm:$0xff]
      %v1113 = vld [vmem:[%s1105 + $0x38] sm:$0xff]
      %v1114 = vld [vmem:[%s1105 + $0x40] sm:$0xff]
      %v1115 = vld [vmem:[%s1105 + $0x48] sm:$0xff]
      %v1116 = vld [vmem:[%s1105 + $0x50] sm:$0xff]
      %v1117 = vld [vmem:[%s1105 + $0x58] sm:$0xff]
      %v1118 = vld [vmem:[%s1105 + $0x60] sm:$0xff]
      %v1119 = vld [vmem:[%s1105 + $0x68] sm:$0xff]
      %v1120 = vld [vmem:[%s1105 + $0x70] sm:$0xff]
      %v1121 = vld [vmem:[%s1105 + $0x78] sm:$0xff]
      %vm1122 = vcmask 1043456
      %v1123 = vrot.slane %v279, 4
      %v1124 = vrot.slane %v280, 4
      %v1125 = vsel %vm1122, %v1123, %v1124
      %v1126 = vrot.slane %v281, 4
      %v1127 = vsel %vm1122, %v1124, %v1126
      %v1128 = vrot.slane %v282, 4
      %v1129 = vsel %vm1122, %v1126, %v1128
      %v1130 = vrot.slane %v283, 4
      %v1131 = vsel %vm1122, %v1128, %v1130
      %v1132 = vrot.slane %v284, 4
      %v1133 = vsel %vm1122, %v1130, %v1132
      %v1134 = vrot.slane %v285, 4
      %v1135 = vsel %vm1122, %v1132, %v1134
      %v1136 = vrot.slane %v286, 4
      %v1137 = vsel %vm1122, %v1134, %v1136
      %v1138 = vrot.slane %v287, 4
      %v1139 = vsel %vm1122, %v1136, %v1138
      %v1140 = vrot.slane %v288, 4
      %v1141 = vsel %vm1122, %v1138, %v1140
      %v1142 = vrot.slane %v289, 4
      %v1143 = vsel %vm1122, %v1140, %v1142
      %v1144 = vrot.slane %v290, 4
      %v1145 = vsel %vm1122, %v1142, %v1144
      %v1146 = vrot.slane %v291, 4
      %v1147 = vsel %vm1122, %v1144, %v1146
      %v1148 = vrot.slane %v292, 4
      %v1149 = vsel %vm1122, %v1146, %v1148
      %v1150 = vrot.slane %v293, 4
      %v1151 = vsel %vm1122, %v1148, %v1150
      %v1152 = vrot.slane %v294, 4
      %v1153 = vsel %vm1122, %v1150, %v1152
      %1169 = vmatprep.subr.mxu0 0.0
      %1170 = vmatpush1.msra.mxu0 %v1106
      %1171 = vmatprep.subr.mxu0 0.0
      %1172 = vmatpush1.msra.mxu0 %v1107
      %1173 = vmatprep.subr.mxu0 0.0
      %1174 = vmatpush1.msra.mxu0 %v1108
      %1175 = vmatprep.subr.mxu0 0.0
      %1176 = vmatpush1.msra.mxu0 %v1109
      %1177 = vmatprep.subr.mxu0 0.0
      %1178 = vmatpush1.msra.mxu0 %v1110
      %1179 = vmatprep.subr.mxu0 0.0
      %1180 = vmatpush1.msra.mxu0 %v1111
      %1181 = vmatprep.subr.mxu0 0.0
      %1182 = vmatpush1.msra.mxu0 %v1112
      %1183 = vmatprep.subr.mxu0 0.0
      %1184 = vmatpush1.msra.mxu0 %v1113
      %1185 = vmatprep.subr.mxu0 0.0
      %1186 = vmatpush1.msra.mxu0 %v1114
      %1187 = vmatprep.subr.mxu0 0.0
      %1188 = vmatpush1.msra.mxu0 %v1115
      %1189 = vmatprep.subr.mxu0 0.0
      %1190 = vmatpush1.msra.mxu0 %v1116
      %1191 = vmatprep.subr.mxu0 0.0
      %1192 = vmatpush1.msra.mxu0 %v1117
      %1193 = vmatprep.subr.mxu0 0.0
      %1194 = vmatpush1.msra.mxu0 %v1118
      %1195 = vmatprep.subr.mxu0 0.0
      %1196 = vmatpush1.msra.mxu0 %v1119
      %1197 = vmatprep.subr.mxu0 0.0
      %1198 = vmatpush1.msra.mxu0 %v1120
      %1199 = vmatprep.subr.mxu0 0.0
      %1200 = vmatpush1.msra.mxu0 %v1121
      %1201 = vmatprep.subr.mxu0 0.0
      %1202 = vmatpush1.msra.mxu0 0.0
      %1203 = vmatprep.subr.mxu0 0.0
      %1204 = vmatpush1.msra.mxu0 0.0
      %1205 = vmatprep.subr.mxu0 0.0
      %1206 = vmatpush1.msra.mxu0 0.0
      %1207 = vmatprep.subr.mxu0 0.0
      %1208 = vmatpush1.msra.mxu0 0.0
      %1209 = vmatprep.subr.mxu0 0.0
      %1210 = vmatpush1.msra.mxu0 0.0
      %1211 = vmatprep.subr.mxu0 0.0
      %1212 = vmatpush1.msra.mxu0 0.0
      %1213 = vmatprep.subr.mxu0 0.0
      %1214 = vmatpush1.msra.mxu0 0.0
      %1215 = vmatprep.subr.mxu0 0.0
      %1216 = vmatpush1.msra.mxu0 0.0
      %1217 = vmatprep.subr.mxu0 0.0
      %1218 = vmatpush1.msra.mxu0 0.0
      %1219 = vmatprep.subr.mxu0 0.0
      %1220 = vmatpush1.msra.mxu0 0.0
      %1221 = vmatprep.subr.mxu0 0.0
      %1222 = vmatpush1.msra.mxu0 0.0
      %1223 = vmatprep.subr.mxu0 0.0
      %1224 = vmatpush1.msra.mxu0 0.0
      %1225 = vmatprep.subr.mxu0 0.0
      %1226 = vmatpush1.msra.mxu0 0.0
      %1227 = vmatprep.subr.mxu0 0.0
      %1228 = vmatpush1.msra.mxu0 0.0
      %1229 = vmatprep.subr.mxu0 0.0
      %1230 = vmatpush1.msra.mxu0 0.0
      %1231 = vmatprep.subr.mxu0 0.0
      %1232 = vmatpush1.msra.mxu0 0.0
      %1233 = vmatprep.mubr.f32.mxu0 0.0
      %1234 = vmatmul.mubr.f32.gmra.mrb[0].mxu0 %v1125
      %v1235 = vpop.f32.mrb[0].mxu0
      %v1236 = vadd.f32 0.0, %v1235
      %v1237 = vpop.f32.mrb[0].mxu0
      %1238 = vmatprep.mubr.f32.mxu0 0.0
      %1239 = vmatmul.mubr.f32.gmra.mrb[0].mxu0 %v1127
      %v1240 = vpop.f32.mrb[0].mxu0
      %v1241 = vadd.f32 0.0, %v1240
      %v1242 = vpop.f32.mrb[0].mxu0
      %1243 = vmatprep.mubr.f32.mxu0 0.0
      %1244 = vmatmul.mubr.f32.gmra.mrb[0].mxu0 %v1129
      %v1245 = vpop.f32.mrb[0].mxu0
      %v1246 = vadd.f32 0.0, %v1245
      %v1247 = vpop.f32.mrb[0].mxu0
      %1248 = vmatprep.mubr.f32.mxu0 0.0
      %1249 = vmatmul.mubr.f32.gmra.mrb[0].mxu0 %v1131
      %v1250 = vpop.f32.mrb[0].mxu0
      %v1251 = vadd.f32 0.0, %v1250
      %v1252 = vpop.f32.mrb[0].mxu0
      %1253 = vmatprep.mubr.f32.mxu0 0.0
      %1254 = vmatmul.mubr.f32.gmra.mrb[0].mxu0 %v1133
      %v1255 = vpop.f32.mrb[0].mxu0
      %v1256 = vadd.f32 0.0, %v1255
      %v1257 = vpop.f32.mrb[0].mxu0
      %1258 = vmatprep.mubr.f32.mxu0 0.0
      %1259 = vmatmul.mubr.f32.gmra.mrb[0].mxu0 %v1135
      %v1260 = vpop.f32.mrb[0].mxu0
      %v1261 = vadd.f32 0.0, %v1260
      %v1262 = vpop.f32.mrb[0].mxu0
      %1263 = vmatprep.mubr.f32.mxu0 0.0
      %1264 = vmatmul.mubr.f32.gmra.mrb[0].mxu0 %v1137
      %v1265 = vpop.f32.mrb[0].mxu0
      %v1266 = vadd.f32 0.0, %v1265
      %v1267 = vpop.f32.mrb[0].mxu0
      %1268 = vmatprep.mubr.f32.mxu0 0.0
      %1269 = vmatmul.mubr.f32.gmra.mrb[0].mxu0 %v1139
      %v1270 = vpop.f32.mrb[0].mxu0
      %v1271 = vadd.f32 0.0, %v1270
      %v1272 = vpop.f32.mrb[0].mxu0
      %1273 = vmatprep.mubr.f32.mxu0 0.0
      %1274 = vmatmul.mubr.f32.gmra.mrb[0].mxu0 %v1141
      %v1275 = vpop.f32.mrb[0].mxu0
      %v1276 = vadd.f32 0.0, %v1275
      %v1277 = vpop.f32.mrb[0].mxu0
      %1278 = vmatprep.mubr.f32.mxu0 0.0
      %1279 = vmatmul.mubr.f32.gmra.mrb[0].mxu0 %v1143
      %v1280 = vpop.f32.mrb[0].mxu0
      %v1281 = vadd.f32 0.0, %v1280
      %v1282 = vpop.f32.mrb[0].mxu0
      %1283 = vmatprep.mubr.f32.mxu0 0.0
      %1284 = vmatmul.mubr.f32.gmra.mrb[0].mxu0 %v1145
      %v1285 = vpop.f32.mrb[0].mxu0
      %v1286 = vadd.f32 0.0, %v1285
      %v1287 = vpop.f32.mrb[0].mxu0
      %1288 = vmatprep.mubr.f32.mxu0 0.0
      %1289 = vmatmul.mubr.f32.gmra.mrb[0].mxu0 %v1147
      %v1290 = vpop.f32.mrb[0].mxu0
      %v1291 = vadd.f32 0.0, %v1290
      %v1292 = vpop.f32.mrb[0].mxu0
      %1293 = vmatprep.mubr.f32.mxu0 0.0
      %1294 = vmatmul.mubr.f32.gmra.mrb[0].mxu0 %v1149
      %v1295 = vpop.f32.mrb[0].mxu0
      %v1296 = vadd.f32 0.0, %v1295
      %v1297 = vpop.f32.mrb[0].mxu0
      %1298 = vmatprep.mubr.f32.mxu0 0.0
      %1299 = vmatmul.mubr.f32.gmra.mrb[0].mxu0 %v1151
      %v1300 = vpop.f32.mrb[0].mxu0
      %v1301 = vadd.f32 0.0, %v1300
      %v1302 = vpop.f32.mrb[0].mxu0
      %1303 = vmatprep.mubr.f32.mxu0 0.0
      %1304 = vmatmul.mubr.f32.gmra.mrb[0].mxu0 %v1153
      %v1305 = vpop.f32.mrb[0].mxu0
      %v1306 = vadd.f32 0.0, %v1305
      %v1307 = vpop.f32.mrb[0].mxu0
      %1308 = vdwg.mxu0
      %v1309 = vadd.f32 %v1090, %v1236
      %v1310 = vadd.f32 %v1091, %v1241
      %v1311 = vadd.f32 %v1092, %v1246
      %v1312 = vadd.f32 %v1093, %v1251
      %v1313 = vadd.f32 %v1094, %v1256
      %v1314 = vadd.f32 %v1095, %v1261
      %v1315 = vadd.f32 %v1096, %v1266
      %v1316 = vadd.f32 %v1097, %v1271
      %v1317 = vadd.f32 %v1098, %v1276
      %v1318 = vadd.f32 %v1099, %v1281
      %v1319 = vadd.f32 %v1100, %v1286
      %v1320 = vadd.f32 %v1101, %v1291
      %v1321 = vadd.f32 %v1102, %v1296
      %v1322 = vadd.f32 %v1103, %v1301
      %v1323 = vadd.f32 %v1104, %v1306
      %s1324 = scalar_lea.vmem %s1, 640
      %v1325 = vld [vmem:[%s1324] sm:$0xff]
      %v1326 = vld [vmem:[%s1324 + $0x8] sm:$0xff]
      %v1327 = vld [vmem:[%s1324 + $0x10] sm:$0xff]
      %v1328 = vld [vmem:[%s1324 + $0x18] sm:$0xff]
      %v1329 = vld [vmem:[%s1324 + $0x20] sm:$0xff]
      %v1330 = vld [vmem:[%s1324 + $0x28] sm:$0xff]
      %v1331 = vld [vmem:[%s1324 + $0x30] sm:$0xff]
      %v1332 = vld [vmem:[%s1324 + $0x38] sm:$0xff]
      %v1333 = vld [vmem:[%s1324 + $0x40] sm:$0xff]
      %v1334 = vld [vmem:[%s1324 + $0x48] sm:$0xff]
      %v1335 = vld [vmem:[%s1324 + $0x50] sm:$0xff]
      %v1336 = vld [vmem:[%s1324 + $0x58] sm:$0xff]
      %v1337 = vld [vmem:[%s1324 + $0x60] sm:$0xff]
      %v1338 = vld [vmem:[%s1324 + $0x68] sm:$0xff]
      %v1339 = vld [vmem:[%s1324 + $0x70] sm:$0xff]
      %v1340 = vld [vmem:[%s1324 + $0x78] sm:$0xff]
      %vm1341 = vcmask 1042432
      %v1342 = vrot.slane %v279, 5
      %v1343 = vrot.slane %v280, 5
      %v1344 = vsel %vm1341, %v1342, %v1343
      %v1345 = vrot.slane %v281, 5
      %v1346 = vsel %vm1341, %v1343, %v1345
      %v1347 = vrot.slane %v282, 5
      %v1348 = vsel %vm1341, %v1345, %v1347
      %v1349 = vrot.slane %v283, 5
      %v1350 = vsel %vm1341, %v1347, %v1349
      %v1351 = vrot.slane %v284, 5
      %v1352 = vsel %vm1341, %v1349, %v1351
      %v1353 = vrot.slane %v285, 5
      %v1354 = vsel %vm1341, %v1351, %v1353
      %v1355 = vrot.slane %v286, 5
      %v1356 = vsel %vm1341, %v1353, %v1355
      %v1357 = vrot.slane %v287, 5
      %v1358 = vsel %vm1341, %v1355, %v1357
      %v1359 = vrot.slane %v288, 5
      %v1360 = vsel %vm1341, %v1357, %v1359
      %v1361 = vrot.slane %v289, 5
      %v1362 = vsel %vm1341, %v1359, %v1361
      %v1363 = vrot.slane %v290, 5
      %v1364 = vsel %vm1341, %v1361, %v1363
      %v1365 = vrot.slane %v291, 5
      %v1366 = vsel %vm1341, %v1363, %v1365
      %v1367 = vrot.slane %v292, 5
      %v1368 = vsel %vm1341, %v1365, %v1367
      %v1369 = vrot.slane %v293, 5
      %v1370 = vsel %vm1341, %v1367, %v1369
      %v1371 = vrot.slane %v294, 5
      %v1372 = vsel %vm1341, %v1369, %v1371
      %1388 = vmatprep.subr.mxu0 0.0
      %1389 = vmatpush1.msra.mxu0 %v1325
      %1390 = vmatprep.subr.mxu0 0.0
      %1391 = vmatpush1.msra.mxu0 %v1326
      %1392 = vmatprep.subr.mxu0 0.0
      %1393 = vmatpush1.msra.mxu0 %v1327
      %1394 = vmatprep.subr.mxu0 0.0
      %1395 = vmatpush1.msra.mxu0 %v1328
      %1396 = vmatprep.subr.mxu0 0.0
      %1397 = vmatpush1.msra.mxu0 %v1329
      %1398 = vmatprep.subr.mxu0 0.0
      %1399 = vmatpush1.msra.mxu0 %v1330
      %1400 = vmatprep.subr.mxu0 0.0
      %1401 = vmatpush1.msra.mxu0 %v1331
      %1402 = vmatprep.subr.mxu0 0.0
      %1403 = vmatpush1.msra.mxu0 %v1332
      %1404 = vmatprep.subr.mxu0 0.0
      %1405 = vmatpush1.msra.mxu0 %v1333
      %1406 = vmatprep.subr.mxu0 0.0
      %1407 = vmatpush1.msra.mxu0 %v1334
      %1408 = vmatprep.subr.mxu0 0.0
      %1409 = vmatpush1.msra.mxu0 %v1335
      %1410 = vmatprep.subr.mxu0 0.0
      %1411 = vmatpush1.msra.mxu0 %v1336
      %1412 = vmatprep.subr.mxu0 0.0
      %1413 = vmatpush1.msra.mxu0 %v1337
      %1414 = vmatprep.subr.mxu0 0.0
      %1415 = vmatpush1.msra.mxu0 %v1338
      %1416 = vmatprep.subr.mxu0 0.0
      %1417 = vmatpush1.msra.mxu0 %v1339
      %1418 = vmatprep.subr.mxu0 0.0
      %1419 = vmatpush1.msra.mxu0 %v1340
      %1420 = vmatprep.subr.mxu0 0.0
      %1421 = vmatpush1.msra.mxu0 0.0
      %1422 = vmatprep.subr.mxu0 0.0
      %1423 = vmatpush1.msra.mxu0 0.0
      %1424 = vmatprep.subr.mxu0 0.0
      %1425 = vmatpush1.msra.mxu0 0.0
      %1426 = vmatprep.subr.mxu0 0.0
      %1427 = vmatpush1.msra.mxu0 0.0
      %1428 = vmatprep.subr.mxu0 0.0
      %1429 = vmatpush1.msra.mxu0 0.0
      %1430 = vmatprep.subr.mxu0 0.0
      %1431 = vmatpush1.msra.mxu0 0.0
      %1432 = vmatprep.subr.mxu0 0.0
      %1433 = vmatpush1.msra.mxu0 0.0
      %1434 = vmatprep.subr.mxu0 0.0
      %1435 = vmatpush1.msra.mxu0 0.0
      %1436 = vmatprep.subr.mxu0 0.0
      %1437 = vmatpush1.msra.mxu0 0.0
      %1438 = vmatprep.subr.mxu0 0.0
      %1439 = vmatpush1.msra.mxu0 0.0
      %1440 = vmatprep.subr.mxu0 0.0
      %1441 = vmatpush1.msra.mxu0 0.0
      %1442 = vmatprep.subr.mxu0 0.0
      %1443 = vmatpush1.msra.mxu0 0.0
      %1444 = vmatprep.subr.mxu0 0.0
      %1445 = vmatpush1.msra.mxu0 0.0
      %1446 = vmatprep.subr.mxu0 0.0
      %1447 = vmatpush1.msra.mxu0 0.0
      %1448 = vmatprep.subr.mxu0 0.0
      %1449 = vmatpush1.msra.mxu0 0.0
      %1450 = vmatprep.subr.mxu0 0.0
      %1451 = vmatpush1.msra.mxu0 0.0
      %1452 = vmatprep.mubr.f32.mxu0 0.0
      %1453 = vmatmul.mubr.f32.gmra.mrb[0].mxu0 %v1344
      %v1454 = vpop.f32.mrb[0].mxu0
      %v1455 = vadd.f32 0.0, %v1454
      %v1456 = vpop.f32.mrb[0].mxu0
      %1457 = vmatprep.mubr.f32.mxu0 0.0
      %1458 = vmatmul.mubr.f32.gmra.mrb[0].mxu0 %v1346
      %v1459 = vpop.f32.mrb[0].mxu0
      %v1460 = vadd.f32 0.0, %v1459
      %v1461 = vpop.f32.mrb[0].mxu0
      %1462 = vmatprep.mubr.f32.mxu0 0.0
      %1463 = vmatmul.mubr.f32.gmra.mrb[0].mxu0 %v1348
      %v1464 = vpop.f32.mrb[0].mxu0
      %v1465 = vadd.f32 0.0, %v1464
      %v1466 = vpop.f32.mrb[0].mxu0
      %1467 = vmatprep.mubr.f32.mxu0 0.0
      %1468 = vmatmul.mubr.f32.gmra.mrb[0].mxu0 %v1350
      %v1469 = vpop.f32.mrb[0].mxu0
      %v1470 = vadd.f32 0.0, %v1469
      %v1471 = vpop.f32.mrb[0].mxu0
      %1472 = vmatprep.mubr.f32.mxu0 0.0
      %1473 = vmatmul.mubr.f32.gmra.mrb[0].mxu0 %v1352
      %v1474 = vpop.f32.mrb[0].mxu0
      %v1475 = vadd.f32 0.0, %v1474
      %v1476 = vpop.f32.mrb[0].mxu0
      %1477 = vmatprep.mubr.f32.mxu0 0.0
      %1478 = vmatmul.mubr.f32.gmra.mrb[0].mxu0 %v1354
      %v1479 = vpop.f32.mrb[0].mxu0
      %v1480 = vadd.f32 0.0, %v1479
      %v1481 = vpop.f32.mrb[0].mxu0
      %1482 = vmatprep.mubr.f32.mxu0 0.0
      %1483 = vmatmul.mubr.f32.gmra.mrb[0].mxu0 %v1356
      %v1484 = vpop.f32.mrb[0].mxu0
      %v1485 = vadd.f32 0.0, %v1484
      %v1486 = vpop.f32.mrb[0].mxu0
      %1487 = vmatprep.mubr.f32.mxu0 0.0
      %1488 = vmatmul.mubr.f32.gmra.mrb[0].mxu0 %v1358
      %v1489 = vpop.f32.mrb[0].mxu0
      %v1490 = vadd.f32 0.0, %v1489
      %v1491 = vpop.f32.mrb[0].mxu0
      %1492 = vmatprep.mubr.f32.mxu0 0.0
      %1493 = vmatmul.mubr.f32.gmra.mrb[0].mxu0 %v1360
      %v1494 = vpop.f32.mrb[0].mxu0
      %v1495 = vadd.f32 0.0, %v1494
      %v1496 = vpop.f32.mrb[0].mxu0
      %1497 = vmatprep.mubr.f32.mxu0 0.0
      %1498 = vmatmul.mubr.f32.gmra.mrb[0].mxu0 %v1362
      %v1499 = vpop.f32.mrb[0].mxu0
      %v1500 = vadd.f32 0.0, %v1499
      %v1501 = vpop.f32.mrb[0].mxu0
      %1502 = vmatprep.mubr.f32.mxu0 0.0
      %1503 = vmatmul.mubr.f32.gmra.mrb[0].mxu0 %v1364
      %v1504 = vpop.f32.mrb[0].mxu0
      %v1505 = vadd.f32 0.0, %v1504
      %v1506 = vpop.f32.mrb[0].mxu0
      %1507 = vmatprep.mubr.f32.mxu0 0.0
      %1508 = vmatmul.mubr.f32.gmra.mrb[0].mxu0 %v1366
      %v1509 = vpop.f32.mrb[0].mxu0
      %v1510 = vadd.f32 0.0, %v1509
      %v1511 = vpop.f32.mrb[0].mxu0
      %1512 = vmatprep.mubr.f32.mxu0 0.0
      %1513 = vmatmul.mubr.f32.gmra.mrb[0].mxu0 %v1368
      %v1514 = vpop.f32.mrb[0].mxu0
      %v1515 = vadd.f32 0.0, %v1514
      %v1516 = vpop.f32.mrb[0].mxu0
      %1517 = vmatprep.mubr.f32.mxu0 0.0
      %1518 = vmatmul.mubr.f32.gmra.mrb[0].mxu0 %v1370
      %v1519 = vpop.f32.mrb[0].mxu0
      %v1520 = vadd.f32 0.0, %v1519
      %v1521 = vpop.f32.mrb[0].mxu0
      %1522 = vmatprep.mubr.f32.mxu0 0.0
      %1523 = vmatmul.mubr.f32.gmra.mrb[0].mxu0 %v1372
      %v1524 = vpop.f32.mrb[0].mxu0
      %v1525 = vadd.f32 0.0, %v1524
      %v1526 = vpop.f32.mrb[0].mxu0
      %1527 = vdwg.mxu0
      %v1528 = vadd.f32 %v1309, %v1455
      %v1529 = vadd.f32 %v1310, %v1460
      %v1530 = vadd.f32 %v1311, %v1465
      %v1531 = vadd.f32 %v1312, %v1470
      %v1532 = vadd.f32 %v1313, %v1475
      %v1533 = vadd.f32 %v1314, %v1480
      %v1534 = vadd.f32 %v1315, %v1485
      %v1535 = vadd.f32 %v1316, %v1490
      %v1536 = vadd.f32 %v1317, %v1495
      %v1537 = vadd.f32 %v1318, %v1500
      %v1538 = vadd.f32 %v1319, %v1505
      %v1539 = vadd.f32 %v1320, %v1510
      %v1540 = vadd.f32 %v1321, %v1515
      %v1541 = vadd.f32 %v1322, %v1520
      %v1542 = vadd.f32 %v1323, %v1525
      %s1543 = scalar_lea.vmem %s1, 768
      %v1544 = vld [vmem:[%s1543] sm:$0xff]
      %v1545 = vld [vmem:[%s1543 + $0x8] sm:$0xff]
      %v1546 = vld [vmem:[%s1543 + $0x10] sm:$0xff]
      %v1547 = vld [vmem:[%s1543 + $0x18] sm:$0xff]
      %v1548 = vld [vmem:[%s1543 + $0x20] sm:$0xff]
      %v1549 = vld [vmem:[%s1543 + $0x28] sm:$0xff]
      %v1550 = vld [vmem:[%s1543 + $0x30] sm:$0xff]
      %v1551 = vld [vmem:[%s1543 + $0x38] sm:$0xff]
      %v1552 = vld [vmem:[%s1543 + $0x40] sm:$0xff]
      %v1553 = vld [vmem:[%s1543 + $0x48] sm:$0xff]
      %v1554 = vld [vmem:[%s1543 + $0x50] sm:$0xff]
      %v1555 = vld [vmem:[%s1543 + $0x58] sm:$0xff]
      %v1556 = vld [vmem:[%s1543 + $0x60] sm:$0xff]
      %v1557 = vld [vmem:[%s1543 + $0x68] sm:$0xff]
      %v1558 = vld [vmem:[%s1543 + $0x70] sm:$0xff]
      %v1559 = vld [vmem:[%s1543 + $0x78] sm:$0xff]
      %vm1560 = vcmask 1041408
      %v1561 = vrot.slane %v279, 6
      %v1562 = vrot.slane %v280, 6
      %v1563 = vsel %vm1560, %v1561, %v1562
      %v1564 = vrot.slane %v281, 6
      %v1565 = vsel %vm1560, %v1562, %v1564
      %v1566 = vrot.slane %v282, 6
      %v1567 = vsel %vm1560, %v1564, %v1566
      %v1568 = vrot.slane %v283, 6
      %v1569 = vsel %vm1560, %v1566, %v1568
      %v1570 = vrot.slane %v284, 6
      %v1571 = vsel %vm1560, %v1568, %v1570
      %v1572 = vrot.slane %v285, 6
      %v1573 = vsel %vm1560, %v1570, %v1572
      %v1574 = vrot.slane %v286, 6
      %v1575 = vsel %vm1560, %v1572, %v1574
      %v1576 = vrot.slane %v287, 6
      %v1577 = vsel %vm1560, %v1574, %v1576
      %v1578 = vrot.slane %v288, 6
      %v1579 = vsel %vm1560, %v1576, %v1578
      %v1580 = vrot.slane %v289, 6
      %v1581 = vsel %vm1560, %v1578, %v1580
      %v1582 = vrot.slane %v290, 6
      %v1583 = vsel %vm1560, %v1580, %v1582
      %v1584 = vrot.slane %v291, 6
      %v1585 = vsel %vm1560, %v1582, %v1584
      %v1586 = vrot.slane %v292, 6
      %v1587 = vsel %vm1560, %v1584, %v1586
      %v1588 = vrot.slane %v293, 6
      %v1589 = vsel %vm1560, %v1586, %v1588
      %v1590 = vrot.slane %v294, 6
      %v1591 = vsel %vm1560, %v1588, %v1590
      %1607 = vmatprep.subr.mxu0 0.0
      %1608 = vmatpush1.msra.mxu0 %v1544
      %1609 = vmatprep.subr.mxu0 0.0
      %1610 = vmatpush1.msra.mxu0 %v1545
      %1611 = vmatprep.subr.mxu0 0.0
      %1612 = vmatpush1.msra.mxu0 %v1546
      %1613 = vmatprep.subr.mxu0 0.0
      %1614 = vmatpush1.msra.mxu0 %v1547
      %1615 = vmatprep.subr.mxu0 0.0
      %1616 = vmatpush1.msra.mxu0 %v1548
      %1617 = vmatprep.subr.mxu0 0.0
      %1618 = vmatpush1.msra.mxu0 %v1549
      %1619 = vmatprep.subr.mxu0 0.0
      %1620 = vmatpush1.msra.mxu0 %v1550
      %1621 = vmatprep.subr.mxu0 0.0
      %1622 = vmatpush1.msra.mxu0 %v1551
      %1623 = vmatprep.subr.mxu0 0.0
      %1624 = vmatpush1.msra.mxu0 %v1552
      %1625 = vmatprep.subr.mxu0 0.0
      %1626 = vmatpush1.msra.mxu0 %v1553
      %1627 = vmatprep.subr.mxu0 0.0
      %1628 = vmatpush1.msra.mxu0 %v1554
      %1629 = vmatprep.subr.mxu0 0.0
      %1630 = vmatpush1.msra.mxu0 %v1555
      %1631 = vmatprep.subr.mxu0 0.0
      %1632 = vmatpush1.msra.mxu0 %v1556
      %1633 = vmatprep.subr.mxu0 0.0
      %1634 = vmatpush1.msra.mxu0 %v1557
      %1635 = vmatprep.subr.mxu0 0.0
      %1636 = vmatpush1.msra.mxu0 %v1558
      %1637 = vmatprep.subr.mxu0 0.0
      %1638 = vmatpush1.msra.mxu0 %v1559
      %1639 = vmatprep.subr.mxu0 0.0
      %1640 = vmatpush1.msra.mxu0 0.0
      %1641 = vmatprep.subr.mxu0 0.0
      %1642 = vmatpush1.msra.mxu0 0.0
      %1643 = vmatprep.subr.mxu0 0.0
      %1644 = vmatpush1.msra.mxu0 0.0
      %1645 = vmatprep.subr.mxu0 0.0
      %1646 = vmatpush1.msra.mxu0 0.0
      %1647 = vmatprep.subr.mxu0 0.0
      %1648 = vmatpush1.msra.mxu0 0.0
      %1649 = vmatprep.subr.mxu0 0.0
      %1650 = vmatpush1.msra.mxu0 0.0
      %1651 = vmatprep.subr.mxu0 0.0
      %1652 = vmatpush1.msra.mxu0 0.0
      %1653 = vmatprep.subr.mxu0 0.0
      %1654 = vmatpush1.msra.mxu0 0.0
      %1655 = vmatprep.subr.mxu0 0.0
      %1656 = vmatpush1.msra.mxu0 0.0
      %1657 = vmatprep.subr.mxu0 0.0
      %1658 = vmatpush1.msra.mxu0 0.0
      %1659 = vmatprep.subr.mxu0 0.0
      %1660 = vmatpush1.msra.mxu0 0.0
      %1661 = vmatprep.subr.mxu0 0.0
      %1662 = vmatpush1.msra.mxu0 0.0
      %1663 = vmatprep.subr.mxu0 0.0
      %1664 = vmatpush1.msra.mxu0 0.0
      %1665 = vmatprep.subr.mxu0 0.0
      %1666 = vmatpush1.msra.mxu0 0.0
      %1667 = vmatprep.subr.mxu0 0.0
      %1668 = vmatpush1.msra.mxu0 0.0
      %1669 = vmatprep.subr.mxu0 0.0
      %1670 = vmatpush1.msra.mxu0 0.0
      %1671 = vmatprep.mubr.f32.mxu0 0.0
      %1672 = vmatmul.mubr.f32.gmra.mrb[0].mxu0 %v1563
      %v1673 = vpop.f32.mrb[0].mxu0
      %v1674 = vadd.f32 0.0, %v1673
      %v1675 = vpop.f32.mrb[0].mxu0
      %1676 = vmatprep.mubr.f32.mxu0 0.0
      %1677 = vmatmul.mubr.f32.gmra.mrb[0].mxu0 %v1565
      %v1678 = vpop.f32.mrb[0].mxu0
      %v1679 = vadd.f32 0.0, %v1678
      %v1680 = vpop.f32.mrb[0].mxu0
      %1681 = vmatprep.mubr.f32.mxu0 0.0
      %1682 = vmatmul.mubr.f32.gmra.mrb[0].mxu0 %v1567
      %v1683 = vpop.f32.mrb[0].mxu0
      %v1684 = vadd.f32 0.0, %v1683
      %v1685 = vpop.f32.mrb[0].mxu0
      %1686 = vmatprep.mubr.f32.mxu0 0.0
      %1687 = vmatmul.mubr.f32.gmra.mrb[0].mxu0 %v1569
      %v1688 = vpop.f32.mrb[0].mxu0
      %v1689 = vadd.f32 0.0, %v1688
      %v1690 = vpop.f32.mrb[0].mxu0
      %1691 = vmatprep.mubr.f32.mxu0 0.0
      %1692 = vmatmul.mubr.f32.gmra.mrb[0].mxu0 %v1571
      %v1693 = vpop.f32.mrb[0].mxu0
      %v1694 = vadd.f32 0.0, %v1693
      %v1695 = vpop.f32.mrb[0].mxu0
      %1696 = vmatprep.mubr.f32.mxu0 0.0
      %1697 = vmatmul.mubr.f32.gmra.mrb[0].mxu0 %v1573
      %v1698 = vpop.f32.mrb[0].mxu0
      %v1699 = vadd.f32 0.0, %v1698
      %v1700 = vpop.f32.mrb[0].mxu0
      %1701 = vmatprep.mubr.f32.mxu0 0.0
      %1702 = vmatmul.mubr.f32.gmra.mrb[0].mxu0 %v1575
      %v1703 = vpop.f32.mrb[0].mxu0
      %v1704 = vadd.f32 0.0, %v1703
      %v1705 = vpop.f32.mrb[0].mxu0
      %1706 = vmatprep.mubr.f32.mxu0 0.0
      %1707 = vmatmul.mubr.f32.gmra.mrb[0].mxu0 %v1577
      %v1708 = vpop.f32.mrb[0].mxu0
      %v1709 = vadd.f32 0.0, %v1708
      %v1710 = vpop.f32.mrb[0].mxu0
      %1711 = vmatprep.mubr.f32.mxu0 0.0
      %1712 = vmatmul.mubr.f32.gmra.mrb[0].mxu0 %v1579
      %v1713 = vpop.f32.mrb[0].mxu0
      %v1714 = vadd.f32 0.0, %v1713
      %v1715 = vpop.f32.mrb[0].mxu0
      %1716 = vmatprep.mubr.f32.mxu0 0.0
      %1717 = vmatmul.mubr.f32.gmra.mrb[0].mxu0 %v1581
      %v1718 = vpop.f32.mrb[0].mxu0
      %v1719 = vadd.f32 0.0, %v1718
      %v1720 = vpop.f32.mrb[0].mxu0
      %1721 = vmatprep.mubr.f32.mxu0 0.0
      %1722 = vmatmul.mubr.f32.gmra.mrb[0].mxu0 %v1583
      %v1723 = vpop.f32.mrb[0].mxu0
      %v1724 = vadd.f32 0.0, %v1723
      %v1725 = vpop.f32.mrb[0].mxu0
      %1726 = vmatprep.mubr.f32.mxu0 0.0
      %1727 = vmatmul.mubr.f32.gmra.mrb[0].mxu0 %v1585
      %v1728 = vpop.f32.mrb[0].mxu0
      %v1729 = vadd.f32 0.0, %v1728
      %v1730 = vpop.f32.mrb[0].mxu0
      %1731 = vmatprep.mubr.f32.mxu0 0.0
      %1732 = vmatmul.mubr.f32.gmra.mrb[0].mxu0 %v1587
      %v1733 = vpop.f32.mrb[0].mxu0
      %v1734 = vadd.f32 0.0, %v1733
      %v1735 = vpop.f32.mrb[0].mxu0
      %1736 = vmatprep.mubr.f32.mxu0 0.0
      %1737 = vmatmul.mubr.f32.gmra.mrb[0].mxu0 %v1589
      %v1738 = vpop.f32.mrb[0].mxu0
      %v1739 = vadd.f32 0.0, %v1738
      %v1740 = vpop.f32.mrb[0].mxu0
      %1741 = vmatprep.mubr.f32.mxu0 0.0
      %1742 = vmatmul.mubr.f32.gmra.mrb[0].mxu0 %v1591
      %v1743 = vpop.f32.mrb[0].mxu0
      %v1744 = vadd.f32 0.0, %v1743
      %v1745 = vpop.f32.mrb[0].mxu0
      %1746 = vdwg.mxu0
      %v1747 = vadd.f32 %v1528, %v1674
      %v1748 = vadd.f32 %v1529, %v1679
      %v1749 = vadd.f32 %v1530, %v1684
      %v1750 = vadd.f32 %v1531, %v1689
      %v1751 = vadd.f32 %v1532, %v1694
      %v1752 = vadd.f32 %v1533, %v1699
      %v1753 = vadd.f32 %v1534, %v1704
      %v1754 = vadd.f32 %v1535, %v1709
      %v1755 = vadd.f32 %v1536, %v1714
      %v1756 = vadd.f32 %v1537, %v1719
      %v1757 = vadd.f32 %v1538, %v1724
      %v1758 = vadd.f32 %v1539, %v1729
      %v1759 = vadd.f32 %v1540, %v1734
      %v1760 = vadd.f32 %v1541, %v1739
      %v1761 = vadd.f32 %v1542, %v1744
      %s1762 = scalar_lea.vmem %s1, 896
      %v1763 = vld [vmem:[%s1762] sm:$0xff]
      %v1764 = vld [vmem:[%s1762 + $0x8] sm:$0xff]
      %v1765 = vld [vmem:[%s1762 + $0x10] sm:$0xff]
      %v1766 = vld [vmem:[%s1762 + $0x18] sm:$0xff]
      %v1767 = vld [vmem:[%s1762 + $0x20] sm:$0xff]
      %v1768 = vld [vmem:[%s1762 + $0x28] sm:$0xff]
      %v1769 = vld [vmem:[%s1762 + $0x30] sm:$0xff]
      %v1770 = vld [vmem:[%s1762 + $0x38] sm:$0xff]
      %v1771 = vld [vmem:[%s1762 + $0x40] sm:$0xff]
      %v1772 = vld [vmem:[%s1762 + $0x48] sm:$0xff]
      %v1773 = vld [vmem:[%s1762 + $0x50] sm:$0xff]
      %v1774 = vld [vmem:[%s1762 + $0x58] sm:$0xff]
      %v1775 = vld [vmem:[%s1762 + $0x60] sm:$0xff]
      %v1776 = vld [vmem:[%s1762 + $0x68] sm:$0xff]
      %v1777 = vld [vmem:[%s1762 + $0x70] sm:$0xff]
      %v1778 = vld [vmem:[%s1762 + $0x78] sm:$0xff]
      %vm1779 = vcmask 1040384
      %v1780 = vrot.slane %v279, 7
      %v1781 = vrot.slane %v280, 7
      %v1782 = vsel %vm1779, %v1780, %v1781
      %v1783 = vrot.slane %v281, 7
      %v1784 = vsel %vm1779, %v1781, %v1783
      %v1785 = vrot.slane %v282, 7
      %v1786 = vsel %vm1779, %v1783, %v1785
      %v1787 = vrot.slane %v283, 7
      %v1788 = vsel %vm1779, %v1785, %v1787
      %v1789 = vrot.slane %v284, 7
      %v1790 = vsel %vm1779, %v1787, %v1789
      %v1791 = vrot.slane %v285, 7
      %v1792 = vsel %vm1779, %v1789, %v1791
      %v1793 = vrot.slane %v286, 7
      %v1794 = vsel %vm1779, %v1791, %v1793
      %v1795 = vrot.slane %v287, 7
      %v1796 = vsel %vm1779, %v1793, %v1795
      %v1797 = vrot.slane %v288, 7
      %v1798 = vsel %vm1779, %v1795, %v1797
      %v1799 = vrot.slane %v289, 7
      %v1800 = vsel %vm1779, %v1797, %v1799
      %v1801 = vrot.slane %v290, 7
      %v1802 = vsel %vm1779, %v1799, %v1801
      %v1803 = vrot.slane %v291, 7
      %v1804 = vsel %vm1779, %v1801, %v1803
      %v1805 = vrot.slane %v292, 7
      %v1806 = vsel %vm1779, %v1803, %v1805
      %v1807 = vrot.slane %v293, 7
      %v1808 = vsel %vm1779, %v1805, %v1807
      %v1809 = vrot.slane %v294, 7
      %v1810 = vsel %vm1779, %v1807, %v1809
      %1826 = vmatprep.subr.mxu0 0.0
      %1827 = vmatpush1.msra.mxu0 %v1763
      %1828 = vmatprep.subr.mxu0 0.0
      %1829 = vmatpush1.msra.mxu0 %v1764
      %1830 = vmatprep.subr.mxu0 0.0
      %1831 = vmatpush1.msra.mxu0 %v1765
      %1832 = vmatprep.subr.mxu0 0.0
      %1833 = vmatpush1.msra.mxu0 %v1766
      %1834 = vmatprep.subr.mxu0 0.0
      %1835 = vmatpush1.msra.mxu0 %v1767
      %1836 = vmatprep.subr.mxu0 0.0
      %1837 = vmatpush1.msra.mxu0 %v1768
      %1838 = vmatprep.subr.mxu0 0.0
      %1839 = vmatpush1.msra.mxu0 %v1769
      %1840 = vmatprep.subr.mxu0 0.0
      %1841 = vmatpush1.msra.mxu0 %v1770
      %1842 = vmatprep.subr.mxu0 0.0
      %1843 = vmatpush1.msra.mxu0 %v1771
      %1844 = vmatprep.subr.mxu0 0.0
      %1845 = vmatpush1.msra.mxu0 %v1772
      %1846 = vmatprep.subr.mxu0 0.0
      %1847 = vmatpush1.msra.mxu0 %v1773
      %1848 = vmatprep.subr.mxu0 0.0
      %1849 = vmatpush1.msra.mxu0 %v1774
      %1850 = vmatprep.subr.mxu0 0.0
      %1851 = vmatpush1.msra.mxu0 %v1775
      %1852 = vmatprep.subr.mxu0 0.0
      %1853 = vmatpush1.msra.mxu0 %v1776
      %1854 = vmatprep.subr.mxu0 0.0
      %1855 = vmatpush1.msra.mxu0 %v1777
      %1856 = vmatprep.subr.mxu0 0.0
      %1857 = vmatpush1.msra.mxu0 %v1778
      %1858 = vmatprep.subr.mxu0 0.0
      %1859 = vmatpush1.msra.mxu0 0.0
      %1860 = vmatprep.subr.mxu0 0.0
      %1861 = vmatpush1.msra.mxu0 0.0
      %1862 = vmatprep.subr.mxu0 0.0
      %1863 = vmatpush1.msra.mxu0 0.0
      %1864 = vmatprep.subr.mxu0 0.0
      %1865 = vmatpush1.msra.mxu0 0.0
      %1866 = vmatprep.subr.mxu0 0.0
      %1867 = vmatpush1.msra.mxu0 0.0
      %1868 = vmatprep.subr.mxu0 0.0
      %1869 = vmatpush1.msra.mxu0 0.0
      %1870 = vmatprep.subr.mxu0 0.0
      %1871 = vmatpush1.msra.mxu0 0.0
      %1872 = vmatprep.subr.mxu0 0.0
      %1873 = vmatpush1.msra.mxu0 0.0
      %1874 = vmatprep.subr.mxu0 0.0
      %1875 = vmatpush1.msra.mxu0 0.0
      %1876 = vmatprep.subr.mxu0 0.0
      %1877 = vmatpush1.msra.mxu0 0.0
      %1878 = vmatprep.subr.mxu0 0.0
      %1879 = vmatpush1.msra.mxu0 0.0
      %1880 = vmatprep.subr.mxu0 0.0
      %1881 = vmatpush1.msra.mxu0 0.0
      %1882 = vmatprep.subr.mxu0 0.0
      %1883 = vmatpush1.msra.mxu0 0.0
      %1884 = vmatprep.subr.mxu0 0.0
      %1885 = vmatpush1.msra.mxu0 0.0
      %1886 = vmatprep.subr.mxu0 0.0
      %1887 = vmatpush1.msra.mxu0 0.0
      %1888 = vmatprep.subr.mxu0 0.0
      %1889 = vmatpush1.msra.mxu0 0.0
      %1890 = vmatprep.mubr.f32.mxu0 0.0
      %1891 = vmatmul.mubr.f32.gmra.mrb[0].mxu0 %v1782
      %v1892 = vpop.f32.mrb[0].mxu0
      %v1893 = vadd.f32 0.0, %v1892
      %v1894 = vpop.f32.mrb[0].mxu0
      %1895 = vmatprep.mubr.f32.mxu0 0.0
      %1896 = vmatmul.mubr.f32.gmra.mrb[0].mxu0 %v1784
      %v1897 = vpop.f32.mrb[0].mxu0
      %v1898 = vadd.f32 0.0, %v1897
      %v1899 = vpop.f32.mrb[0].mxu0
      %1900 = vmatprep.mubr.f32.mxu0 0.0
      %1901 = vmatmul.mubr.f32.gmra.mrb[0].mxu0 %v1786
      %v1902 = vpop.f32.mrb[0].mxu0
      %v1903 = vadd.f32 0.0, %v1902
      %v1904 = vpop.f32.mrb[0].mxu0
      %1905 = vmatprep.mubr.f32.mxu0 0.0
      %1906 = vmatmul.mubr.f32.gmra.mrb[0].mxu0 %v1788
      %v1907 = vpop.f32.mrb[0].mxu0
      %v1908 = vadd.f32 0.0, %v1907
      %v1909 = vpop.f32.mrb[0].mxu0
      %1910 = vmatprep.mubr.f32.mxu0 0.0
      %1911 = vmatmul.mubr.f32.gmra.mrb[0].mxu0 %v1790
      %v1912 = vpop.f32.mrb[0].mxu0
      %v1913 = vadd.f32 0.0, %v1912
      %v1914 = vpop.f32.mrb[0].mxu0
      %1915 = vmatprep.mubr.f32.mxu0 0.0
      %1916 = vmatmul.mubr.f32.gmra.mrb[0].mxu0 %v1792
      %v1917 = vpop.f32.mrb[0].mxu0
      %v1918 = vadd.f32 0.0, %v1917
      %v1919 = vpop.f32.mrb[0].mxu0
      %1920 = vmatprep.mubr.f32.mxu0 0.0
      %1921 = vmatmul.mubr.f32.gmra.mrb[0].mxu0 %v1794
      %v1922 = vpop.f32.mrb[0].mxu0
      %v1923 = vadd.f32 0.0, %v1922
      %v1924 = vpop.f32.mrb[0].mxu0
      %1925 = vmatprep.mubr.f32.mxu0 0.0
      %1926 = vmatmul.mubr.f32.gmra.mrb[0].mxu0 %v1796
      %v1927 = vpop.f32.mrb[0].mxu0
      %v1928 = vadd.f32 0.0, %v1927
      %v1929 = vpop.f32.mrb[0].mxu0
      %1930 = vmatprep.mubr.f32.mxu0 0.0
      %1931 = vmatmul.mubr.f32.gmra.mrb[0].mxu0 %v1798
      %v1932 = vpop.f32.mrb[0].mxu0
      %v1933 = vadd.f32 0.0, %v1932
      %v1934 = vpop.f32.mrb[0].mxu0
      %1935 = vmatprep.mubr.f32.mxu0 0.0
      %1936 = vmatmul.mubr.f32.gmra.mrb[0].mxu0 %v1800
      %v1937 = vpop.f32.mrb[0].mxu0
      %v1938 = vadd.f32 0.0, %v1937
      %v1939 = vpop.f32.mrb[0].mxu0
      %1940 = vmatprep.mubr.f32.mxu0 0.0
      %1941 = vmatmul.mubr.f32.gmra.mrb[0].mxu0 %v1802
      %v1942 = vpop.f32.mrb[0].mxu0
      %v1943 = vadd.f32 0.0, %v1942
      %v1944 = vpop.f32.mrb[0].mxu0
      %1945 = vmatprep.mubr.f32.mxu0 0.0
      %1946 = vmatmul.mubr.f32.gmra.mrb[0].mxu0 %v1804
      %v1947 = vpop.f32.mrb[0].mxu0
      %v1948 = vadd.f32 0.0, %v1947
      %v1949 = vpop.f32.mrb[0].mxu0
      %1950 = vmatprep.mubr.f32.mxu0 0.0
      %1951 = vmatmul.mubr.f32.gmra.mrb[0].mxu0 %v1806
      %v1952 = vpop.f32.mrb[0].mxu0
      %v1953 = vadd.f32 0.0, %v1952
      %v1954 = vpop.f32.mrb[0].mxu0
      %1955 = vmatprep.mubr.f32.mxu0 0.0
      %1956 = vmatmul.mubr.f32.gmra.mrb[0].mxu0 %v1808
      %v1957 = vpop.f32.mrb[0].mxu0
      %v1958 = vadd.f32 0.0, %v1957
      %v1959 = vpop.f32.mrb[0].mxu0
      %1960 = vmatprep.mubr.f32.mxu0 0.0
      %1961 = vmatmul.mubr.f32.gmra.mrb[0].mxu0 %v1810
      %v1962 = vpop.f32.mrb[0].mxu0
      %v1963 = vadd.f32 0.0, %v1962
      %v1964 = vpop.f32.mrb[0].mxu0
      %1965 = vdwg.mxu0
      %v1966 = vadd.f32 %v1747, %v1893
      %v1967 = vadd.f32 %v1748, %v1898
      %v1968 = vadd.f32 %v1749, %v1903
      %v1969 = vadd.f32 %v1750, %v1908
      %v1970 = vadd.f32 %v1751, %v1913
      %v1971 = vadd.f32 %v1752, %v1918
      %v1972 = vadd.f32 %v1753, %v1923
      %v1973 = vadd.f32 %v1754, %v1928
      %v1974 = vadd.f32 %v1755, %v1933
      %v1975 = vadd.f32 %v1756, %v1938
      %v1976 = vadd.f32 %v1757, %v1943
      %v1977 = vadd.f32 %v1758, %v1948
      %v1978 = vadd.f32 %v1759, %v1953
      %v1979 = vadd.f32 %v1760, %v1958
      %v1980 = vadd.f32 %v1761, %v1963
      %s1981 = scalar_lea.vmem %s1, 1024
      %v1982 = vld [vmem:[%s1981] sm:$0xff]
      %v1983 = vld [vmem:[%s1981 + $0x8] sm:$0xff]
      %v1984 = vld [vmem:[%s1981 + $0x10] sm:$0xff]
      %v1985 = vld [vmem:[%s1981 + $0x18] sm:$0xff]
      %v1986 = vld [vmem:[%s1981 + $0x20] sm:$0xff]
      %v1987 = vld [vmem:[%s1981 + $0x28] sm:$0xff]
      %v1988 = vld [vmem:[%s1981 + $0x30] sm:$0xff]
      %v1989 = vld [vmem:[%s1981 + $0x38] sm:$0xff]
      %v1990 = vld [vmem:[%s1981 + $0x40] sm:$0xff]
      %v1991 = vld [vmem:[%s1981 + $0x48] sm:$0xff]
      %v1992 = vld [vmem:[%s1981 + $0x50] sm:$0xff]
      %v1993 = vld [vmem:[%s1981 + $0x58] sm:$0xff]
      %v1994 = vld [vmem:[%s1981 + $0x60] sm:$0xff]
      %v1995 = vld [vmem:[%s1981 + $0x68] sm:$0xff]
      %v1996 = vld [vmem:[%s1981 + $0x70] sm:$0xff]
      %v1997 = vld [vmem:[%s1981 + $0x78] sm:$0xff]
      %1998 = vmatprep.subr.mxu0 0.0
      %1999 = vmatpush1.msra.mxu0 %v1982
      %2000 = vmatprep.subr.mxu0 0.0
      %2001 = vmatpush1.msra.mxu0 %v1983
      %2002 = vmatprep.subr.mxu0 0.0
      %2003 = vmatpush1.msra.mxu0 %v1984
      %2004 = vmatprep.subr.mxu0 0.0
      %2005 = vmatpush1.msra.mxu0 %v1985
      %2006 = vmatprep.subr.mxu0 0.0
      %2007 = vmatpush1.msra.mxu0 %v1986
      %2008 = vmatprep.subr.mxu0 0.0
      %2009 = vmatpush1.msra.mxu0 %v1987
      %2010 = vmatprep.subr.mxu0 0.0
      %2011 = vmatpush1.msra.mxu0 %v1988
      %2012 = vmatprep.subr.mxu0 0.0
      %2013 = vmatpush1.msra.mxu0 %v1989
      %2014 = vmatprep.subr.mxu0 0.0
      %2015 = vmatpush1.msra.mxu0 %v1990
      %2016 = vmatprep.subr.mxu0 0.0
      %2017 = vmatpush1.msra.mxu0 %v1991
      %2018 = vmatprep.subr.mxu0 0.0
      %2019 = vmatpush1.msra.mxu0 %v1992
      %2020 = vmatprep.subr.mxu0 0.0
      %2021 = vmatpush1.msra.mxu0 %v1993
      %2022 = vmatprep.subr.mxu0 0.0
      %2023 = vmatpush1.msra.mxu0 %v1994
      %2024 = vmatprep.subr.mxu0 0.0
      %2025 = vmatpush1.msra.mxu0 %v1995
      %2026 = vmatprep.subr.mxu0 0.0
      %2027 = vmatpush1.msra.mxu0 %v1996
      %2028 = vmatprep.subr.mxu0 0.0
      %2029 = vmatpush1.msra.mxu0 %v1997
      %2030 = vmatprep.subr.mxu0 0.0
      %2031 = vmatpush1.msra.mxu0 0.0
      %2032 = vmatprep.subr.mxu0 0.0
      %2033 = vmatpush1.msra.mxu0 0.0
      %2034 = vmatprep.subr.mxu0 0.0
      %2035 = vmatpush1.msra.mxu0 0.0
      %2036 = vmatprep.subr.mxu0 0.0
      %2037 = vmatpush1.msra.mxu0 0.0
      %2038 = vmatprep.subr.mxu0 0.0
      %2039 = vmatpush1.msra.mxu0 0.0
      %2040 = vmatprep.subr.mxu0 0.0
      %2041 = vmatpush1.msra.mxu0 0.0
      %2042 = vmatprep.subr.mxu0 0.0
      %2043 = vmatpush1.msra.mxu0 0.0
      %2044 = vmatprep.subr.mxu0 0.0
      %2045 = vmatpush1.msra.mxu0 0.0
      %2046 = vmatprep.subr.mxu0 0.0
      %2047 = vmatpush1.msra.mxu0 0.0
      %2048 = vmatprep.subr.mxu0 0.0
      %2049 = vmatpush1.msra.mxu0 0.0
      %2050 = vmatprep.subr.mxu0 0.0
      %2051 = vmatpush1.msra.mxu0 0.0
      %2052 = vmatprep.subr.mxu0 0.0
      %2053 = vmatpush1.msra.mxu0 0.0
      %2054 = vmatprep.subr.mxu0 0.0
      %2055 = vmatpush1.msra.mxu0 0.0
      %2056 = vmatprep.subr.mxu0 0.0
      %2057 = vmatpush1.msra.mxu0 0.0
      %2058 = vmatprep.subr.mxu0 0.0
      %2059 = vmatpush1.msra.mxu0 0.0
      %2060 = vmatprep.subr.mxu0 0.0
      %2061 = vmatpush1.msra.mxu0 0.0
      %2062 = vmatprep.mubr.f32.mxu0 0.0
      %2063 = vmatmul.mubr.f32.gmra.mrb[0].mxu0 %v280
      %v2064 = vpop.f32.mrb[0].mxu0
      %v2065 = vadd.f32 0.0, %v2064
      %v2066 = vpop.f32.mrb[0].mxu0
      %2067 = vmatprep.mubr.f32.mxu0 0.0
      %2068 = vmatmul.mubr.f32.gmra.mrb[0].mxu0 %v281
      %v2069 = vpop.f32.mrb[0].mxu0
      %v2070 = vadd.f32 0.0, %v2069
      %v2071 = vpop.f32.mrb[0].mxu0
      %2072 = vmatprep.mubr.f32.mxu0 0.0
      %2073 = vmatmul.mubr.f32.gmra.mrb[0].mxu0 %v282
      %v2074 = vpop.f32.mrb[0].mxu0
      %v2075 = vadd.f32 0.0, %v2074
      %v2076 = vpop.f32.mrb[0].mxu0
      %2077 = vmatprep.mubr.f32.mxu0 0.0
      %2078 = vmatmul.mubr.f32.gmra.mrb[0].mxu0 %v283
      %v2079 = vpop.f32.mrb[0].mxu0
      %v2080 = vadd.f32 0.0, %v2079
      %v2081 = vpop.f32.mrb[0].mxu0
      %2082 = vmatprep.mubr.f32.mxu0 0.0
      %2083 = vmatmul.mubr.f32.gmra.mrb[0].mxu0 %v284
      %v2084 = vpop.f32.mrb[0].mxu0
      %v2085 = vadd.f32 0.0, %v2084
      %v2086 = vpop.f32.mrb[0].mxu0
      %2087 = vmatprep.mubr.f32.mxu0 0.0
      %2088 = vmatmul.mubr.f32.gmra.mrb[0].mxu0 %v285
      %v2089 = vpop.f32.mrb[0].mxu0
      %v2090 = vadd.f32 0.0, %v2089
      %v2091 = vpop.f32.mrb[0].mxu0
      %2092 = vmatprep.mubr.f32.mxu0 0.0
      %2093 = vmatmul.mubr.f32.gmra.mrb[0].mxu0 %v286
      %v2094 = vpop.f32.mrb[0].mxu0
      %v2095 = vadd.f32 0.0, %v2094
      %v2096 = vpop.f32.mrb[0].mxu0
      %2097 = vmatprep.mubr.f32.mxu0 0.0
      %2098 = vmatmul.mubr.f32.gmra.mrb[0].mxu0 %v287
      %v2099 = vpop.f32.mrb[0].mxu0
      %v2100 = vadd.f32 0.0, %v2099
      %v2101 = vpop.f32.mrb[0].mxu0
      %2102 = vmatprep.mubr.f32.mxu0 0.0
      %2103 = vmatmul.mubr.f32.gmra.mrb[0].mxu0 %v288
      %v2104 = vpop.f32.mrb[0].mxu0
      %v2105 = vadd.f32 0.0, %v2104
      %v2106 = vpop.f32.mrb[0].mxu0
      %2107 = vmatprep.mubr.f32.mxu0 0.0
      %2108 = vmatmul.mubr.f32.gmra.mrb[0].mxu0 %v289
      %v2109 = vpop.f32.mrb[0].mxu0
      %v2110 = vadd.f32 0.0, %v2109
      %v2111 = vpop.f32.mrb[0].mxu0
      %2112 = vmatprep.mubr.f32.mxu0 0.0
      %2113 = vmatmul.mubr.f32.gmra.mrb[0].mxu0 %v290
      %v2114 = vpop.f32.mrb[0].mxu0
      %v2115 = vadd.f32 0.0, %v2114
      %v2116 = vpop.f32.mrb[0].mxu0
      %2117 = vmatprep.mubr.f32.mxu0 0.0
      %2118 = vmatmul.mubr.f32.gmra.mrb[0].mxu0 %v291
      %v2119 = vpop.f32.mrb[0].mxu0
      %v2120 = vadd.f32 0.0, %v2119
      %v2121 = vpop.f32.mrb[0].mxu0
      %2122 = vmatprep.mubr.f32.mxu0 0.0
      %2123 = vmatmul.mubr.f32.gmra.mrb[0].mxu0 %v292
      %v2124 = vpop.f32.mrb[0].mxu0
      %v2125 = vadd.f32 0.0, %v2124
      %v2126 = vpop.f32.mrb[0].mxu0
      %2127 = vmatprep.mubr.f32.mxu0 0.0
      %2128 = vmatmul.mubr.f32.gmra.mrb[0].mxu0 %v293
      %v2129 = vpop.f32.mrb[0].mxu0
      %v2130 = vadd.f32 0.0, %v2129
      %v2131 = vpop.f32.mrb[0].mxu0
      %2132 = vmatprep.mubr.f32.mxu0 0.0
      %2133 = vmatmul.mubr.f32.gmra.mrb[0].mxu0 %v294
      %v2134 = vpop.f32.mrb[0].mxu0
      %v2135 = vadd.f32 0.0, %v2134
      %v2136 = vpop.f32.mrb[0].mxu0
      %2137 = vdwg.mxu0
      %v2138 = vadd.f32 %v1966, %v2065
      %v2139 = vadd.f32 %v1967, %v2070
      %v2140 = vadd.f32 %v1968, %v2075
      %v2141 = vadd.f32 %v1969, %v2080
      %v2142 = vadd.f32 %v1970, %v2085
      %v2143 = vadd.f32 %v1971, %v2090
      %v2144 = vadd.f32 %v1972, %v2095
      %v2145 = vadd.f32 %v1973, %v2100
      %v2146 = vadd.f32 %v1974, %v2105
      %v2147 = vadd.f32 %v1975, %v2110
      %v2148 = vadd.f32 %v1976, %v2115
      %v2149 = vadd.f32 %v1977, %v2120
      %v2150 = vadd.f32 %v1978, %v2125
      %v2151 = vadd.f32 %v1979, %v2130
      %v2152 = vadd.f32 %v1980, %v2135
      %v2153 = vld [vmem:[%s2] sm:$0x1]
      %v2155 = vlaneseq
      %v2156 = vshrl.u32 %v2155, 7
      %v2157 = vsub.s32 0, %v2156
      %v2158 = vrot.slane %v2153, %v2157
      %v2160 = vadd.f32 %v2138, %v2158
      %v2161 = vadd.f32 %v2139, %v2158
      %v2162 = vadd.f32 %v2140, %v2158
      %v2163 = vadd.f32 %v2141, %v2158
      %v2164 = vadd.f32 %v2142, %v2158
      %v2165 = vadd.f32 %v2143, %v2158
      %v2166 = vadd.f32 %v2144, %v2158
      %v2167 = vadd.f32 %v2145, %v2158
      %v2168 = vadd.f32 %v2146, %v2158
      %v2169 = vadd.f32 %v2147, %v2158
      %v2170 = vadd.f32 %v2148, %v2158
      %v2171 = vadd.f32 %v2149, %v2158
      %v2172 = vadd.f32 %v2150, %v2158
      %v2173 = vadd.f32 %v2151, %v2158
      %v2174 = vadd.f32 %v2152, %v2158
      %2175 = vst [vmem:[#allocation2] sm:$0xff] %v2160
      %2176 = vst [vmem:[#allocation2 + $0x8] sm:$0xff] %v2161
      %2177 = vst [vmem:[#allocation2 + $0x10] sm:$0xff] %v2162
      %2178 = vst [vmem:[#allocation2 + $0x18] sm:$0xff] %v2163
      %2179 = vst [vmem:[#allocation2 + $0x20] sm:$0xff] %v2164
      %2180 = vst [vmem:[#allocation2 + $0x28] sm:$0xff] %v2165
      %2181 = vst [vmem:[#allocation2 + $0x30] sm:$0xff] %v2166
      %2182 = vst [vmem:[#allocation2 + $0x38] sm:$0xff] %v2167
      %2183 = vst [vmem:[#allocation2 + $0x40] sm:$0xff] %v2168
      %2184 = vst [vmem:[#allocation2 + $0x48] sm:$0xff] %v2169
      %2185 = vst [vmem:[#allocation2 + $0x50] sm:$0xff] %v2170
      %2186 = vst [vmem:[#allocation2 + $0x58] sm:$0xff] %v2171
      %2187 = vst [vmem:[#allocation2 + $0x60] sm:$0xff] %v2172
      %2188 = vst [vmem:[#allocation2 + $0x68] sm:$0xff] %v2173
      %2189 = vst [vmem:[#allocation2 + $0x70] sm:$0x3f] %v2174
      %v2190 = vld [vmem:[#allocation2] ss:$2 sm:$0xff]
      %s2191 = scalar_lea.vmem [#allocation2], 16
      %v2192 = vld [vmem:[%s2191] ss:$2 sm:$0xff]
      %s2193 = scalar_lea.vmem [#allocation2], 32
      %v2194 = vld [vmem:[%s2193] ss:$2 sm:$0xff]
      %s2195 = scalar_lea.vmem [#allocation2], 48
      %v2196 = vld [vmem:[%s2195] ss:$2 sm:$0xff]
      %s2197 = scalar_lea.vmem [#allocation2], 64
      %v2198 = vld [vmem:[%s2197] ss:$2 sm:$0xff]
      %s2199 = scalar_lea.vmem [#allocation2], 80
      %v2200 = vld [vmem:[%s2199] ss:$2 sm:$0xff]
      %s2201 = scalar_lea.vmem [#allocation2], 96
      %v2202 = vld [vmem:[%s2201] ss:$2 sm:$0xff]
      %s2203 = scalar_lea.vmem [#allocation2], 112
      %v2204 = vld [vmem:[%s2203] ss:$2 sm:$0x7]
      %s2205 = scalar_lea.vmem [#allocation2], 1
      %v2206 = vld [vmem:[%s2205] ss:$2 sm:$0xff]
      %s2207 = scalar_lea.vmem [#allocation2], 17
      %v2208 = vld [vmem:[%s2207] ss:$2 sm:$0xff]
      %s2209 = scalar_lea.vmem [#allocation2], 33
      %v2210 = vld [vmem:[%s2209] ss:$2 sm:$0xff]
      %s2211 = scalar_lea.vmem [#allocation2], 49
      %v2212 = vld [vmem:[%s2211] ss:$2 sm:$0xff]
      %s2213 = scalar_lea.vmem [#allocation2], 65
      %v2214 = vld [vmem:[%s2213] ss:$2 sm:$0xff]
      %s2215 = scalar_lea.vmem [#allocation2], 81
      %v2216 = vld [vmem:[%s2215] ss:$2 sm:$0xff]
      %s2217 = scalar_lea.vmem [#allocation2], 97
      %v2218 = vld [vmem:[%s2217] ss:$2 sm:$0xff]
      %s2219 = scalar_lea.vmem [#allocation2], 113
      %v2220 = vld [vmem:[%s2219] ss:$2 sm:$0x7]
      %v2221 = vmax.f32 %v2190, %v2206
      %v2222 = vmax.f32 %v2192, %v2208
      %v2223 = vmax.f32 %v2194, %v2210
      %v2224 = vmax.f32 %v2196, %v2212
      %v2225 = vmax.f32 %v2198, %v2214
      %v2226 = vmax.f32 %v2200, %v2216
      %v2227 = vmax.f32 %v2202, %v2218
      %v2228 = vmax.f32 %v2204, %v2220
      %v2229 = vmax.f32 %v2221, 0.0
      %v2230 = vmax.f32 %v2222, 0.0
      %v2231 = vmax.f32 %v2223, 0.0
      %v2232 = vmax.f32 %v2224, 0.0
      %v2233 = vmax.f32 %v2225, 0.0
      %v2234 = vmax.f32 %v2226, 0.0
      %v2235 = vmax.f32 %v2227, 0.0
      %v2236 = vmax.f32 %v2228, 0.0
      %v2237 = vld [vmem:[%s3] sm:$0xff]
      %v2238 = vld [vmem:[%s3 + $0x8] sm:$0xff]
      %v2239 = vld [vmem:[%s3 + $0x10] sm:$0xff]
      %v2240 = vld [vmem:[%s3 + $0x18] sm:$0xff]
      %v2241 = vld [vmem:[%s3 + $0x20] sm:$0xff]
      %v2242 = vld [vmem:[%s3 + $0x28] sm:$0xff]
      %v2243 = vld [vmem:[%s3 + $0x30] sm:$0xff]
      %v2244 = vld [vmem:[%s3 + $0x38] sm:$0xff]
      %v2245 = vld [vmem:[%s3 + $0x40] sm:$0xff]
      %v2246 = vld [vmem:[%s3 + $0x48] sm:$0xff]
      %v2247 = vld [vmem:[%s3 + $0x50] sm:$0xff]
      %v2248 = vld [vmem:[%s3 + $0x58] sm:$0xff]
      %v2249 = vld [vmem:[%s3 + $0x60] sm:$0xff]
      %v2250 = vld [vmem:[%s3 + $0x68] sm:$0xff]
      %v2251 = vld [vmem:[%s3 + $0x70] sm:$0xff]
      %v2252 = vld [vmem:[%s3 + $0x78] sm:$0xff]
      %s2253 = scalar_lea.vmem %s3, 128
      %v2254 = vld [vmem:[%s2253] sm:$0xff]
      %v2255 = vld [vmem:[%s2253 + $0x8] sm:$0xff]
      %v2256 = vld [vmem:[%s2253 + $0x10] sm:$0xff]
      %v2257 = vld [vmem:[%s2253 + $0x18] sm:$0xff]
      %v2258 = vld [vmem:[%s2253 + $0x20] sm:$0xff]
      %v2259 = vld [vmem:[%s2253 + $0x28] sm:$0xff]
      %v2260 = vld [vmem:[%s2253 + $0x30] sm:$0xff]
      %v2261 = vld [vmem:[%s2253 + $0x38] sm:$0xff]
      %v2262 = vld [vmem:[%s2253 + $0x40] sm:$0xff]
      %v2263 = vld [vmem:[%s2253 + $0x48] sm:$0xff]
      %v2264 = vld [vmem:[%s2253 + $0x50] sm:$0xff]
      %v2265 = vld [vmem:[%s2253 + $0x58] sm:$0xff]
      %v2266 = vld [vmem:[%s2253 + $0x60] sm:$0xff]
      %v2267 = vld [vmem:[%s2253 + $0x68] sm:$0xff]
      %v2268 = vld [vmem:[%s2253 + $0x70] sm:$0xff]
      %v2269 = vld [vmem:[%s2253 + $0x78] sm:$0xff]
      %v2277 = vrot.slane %v2229, 1
      %v2278 = vrot.slane %v2230, 1
      %v2279 = vsel %vm343, %v2277, %v2278
      %v2280 = vrot.slane %v2231, 1
      %v2281 = vsel %vm343, %v2278, %v2280
      %v2282 = vrot.slane %v2232, 1
      %v2283 = vsel %vm343, %v2280, %v2282
      %v2284 = vrot.slane %v2233, 1
      %v2285 = vsel %vm343, %v2282, %v2284
      %v2286 = vrot.slane %v2234, 1
      %v2287 = vsel %vm343, %v2284, %v2286
      %v2288 = vrot.slane %v2235, 1
      %v2289 = vsel %vm343, %v2286, %v2288
      %2297 = vmatprep.subr.mxu0 0.0
      %2298 = vmatpush1.msra.mxu0 %v2254
      %2299 = vmatprep.subr.mxu0 0.0
      %2300 = vmatpush1.msra.mxu0 %v2255
      %2301 = vmatprep.subr.mxu0 0.0
      %2302 = vmatpush1.msra.mxu0 %v2256
      %2303 = vmatprep.subr.mxu0 0.0
      %2304 = vmatpush1.msra.mxu0 %v2257
      %2305 = vmatprep.subr.mxu0 0.0
      %2306 = vmatpush1.msra.mxu0 %v2258
      %2307 = vmatprep.subr.mxu0 0.0
      %2308 = vmatpush1.msra.mxu0 %v2259
      %2309 = vmatprep.subr.mxu0 0.0
      %2310 = vmatpush1.msra.mxu0 %v2260
      %2311 = vmatprep.subr.mxu0 0.0
      %2312 = vmatpush1.msra.mxu0 %v2261
      %2313 = vmatprep.subr.mxu0 0.0
      %2314 = vmatpush1.msra.mxu0 %v2262
      %2315 = vmatprep.subr.mxu0 0.0
      %2316 = vmatpush1.msra.mxu0 %v2263
      %2317 = vmatprep.subr.mxu0 0.0
      %2318 = vmatpush1.msra.mxu0 %v2264
      %2319 = vmatprep.subr.mxu0 0.0
      %2320 = vmatpush1.msra.mxu0 %v2265
      %2321 = vmatprep.subr.mxu0 0.0
      %2322 = vmatpush1.msra.mxu0 %v2266
      %2323 = vmatprep.subr.mxu0 0.0
      %2324 = vmatpush1.msra.mxu0 %v2267
      %2325 = vmatprep.subr.mxu0 0.0
      %2326 = vmatpush1.msra.mxu0 %v2268
      %2327 = vmatprep.subr.mxu0 0.0
      %2328 = vmatpush1.msra.mxu0 %v2269
      %2329 = vmatprep.subr.mxu0 0.0
      %2330 = vmatpush1.msra.mxu0 0.0
      %2331 = vmatprep.subr.mxu0 0.0
      %2332 = vmatpush1.msra.mxu0 0.0
      %2333 = vmatprep.subr.mxu0 0.0
      %2334 = vmatpush1.msra.mxu0 0.0
      %2335 = vmatprep.subr.mxu0 0.0
      %2336 = vmatpush1.msra.mxu0 0.0
      %2337 = vmatprep.subr.mxu0 0.0
      %2338 = vmatpush1.msra.mxu0 0.0
      %2339 = vmatprep.subr.mxu0 0.0
      %2340 = vmatpush1.msra.mxu0 0.0
      %2341 = vmatprep.subr.mxu0 0.0
      %2342 = vmatpush1.msra.mxu0 0.0
      %2343 = vmatprep.subr.mxu0 0.0
      %2344 = vmatpush1.msra.mxu0 0.0
      %2345 = vmatprep.subr.mxu0 0.0
      %2346 = vmatpush1.msra.mxu0 0.0
      %2347 = vmatprep.subr.mxu0 0.0
      %2348 = vmatpush1.msra.mxu0 0.0
      %2349 = vmatprep.subr.mxu0 0.0
      %2350 = vmatpush1.msra.mxu0 0.0
      %2351 = vmatprep.subr.mxu0 0.0
      %2352 = vmatpush1.msra.mxu0 0.0
      %2353 = vmatprep.subr.mxu0 0.0
      %2354 = vmatpush1.msra.mxu0 0.0
      %2355 = vmatprep.subr.mxu0 0.0
      %2356 = vmatpush1.msra.mxu0 0.0
      %2357 = vmatprep.subr.mxu0 0.0
      %2358 = vmatpush1.msra.mxu0 0.0
      %2359 = vmatprep.subr.mxu0 0.0
      %2360 = vmatpush1.msra.mxu0 0.0
      %2361 = vmatprep.mubr.f32.mxu0 0.0
      %2362 = vmatmul.mubr.f32.gmra.mrb[0].mxu0 %v2279
      %v2363 = vpop.f32.mrb[0].mxu0
      %v2364 = vadd.f32 0.0, %v2363
      %v2365 = vpop.f32.mrb[0].mxu0
      %2366 = vmatprep.mubr.f32.mxu0 0.0
      %2367 = vmatmul.mubr.f32.gmra.mrb[0].mxu0 %v2281
      %v2368 = vpop.f32.mrb[0].mxu0
      %v2369 = vadd.f32 0.0, %v2368
      %v2370 = vpop.f32.mrb[0].mxu0
      %2371 = vmatprep.mubr.f32.mxu0 0.0
      %2372 = vmatmul.mubr.f32.gmra.mrb[0].mxu0 %v2283
      %v2373 = vpop.f32.mrb[0].mxu0
      %v2374 = vadd.f32 0.0, %v2373
      %v2375 = vpop.f32.mrb[0].mxu0
      %2376 = vmatprep.mubr.f32.mxu0 0.0
      %2377 = vmatmul.mubr.f32.gmra.mrb[0].mxu0 %v2285
      %v2378 = vpop.f32.mrb[0].mxu0
      %v2379 = vadd.f32 0.0, %v2378
      %v2380 = vpop.f32.mrb[0].mxu0
      %2381 = vmatprep.mubr.f32.mxu0 0.0
      %2382 = vmatmul.mubr.f32.gmra.mrb[0].mxu0 %v2287
      %v2383 = vpop.f32.mrb[0].mxu0
      %v2384 = vadd.f32 0.0, %v2383
      %v2385 = vpop.f32.mrb[0].mxu0
      %2386 = vmatprep.mubr.f32.mxu0 0.0
      %2387 = vmatmul.mubr.f32.gmra.mrb[0].mxu0 %v2289
      %v2388 = vpop.f32.mrb[0].mxu0
      %v2389 = vadd.f32 0.0, %v2388
      %v2390 = vpop.f32.mrb[0].mxu0
      %2391 = vmatprep.mubr.f32.mxu0 0.0
      %2392 = vmatmul.mubr.f32.gmra.mrb[0].mxu0 %v2288
      %v2393 = vpop.f32.mrb[0].mxu0
      %v2394 = vadd.f32 0.0, %v2393
      %v2395 = vpop.f32.mrb[0].mxu0
      %2396 = vdwg.mxu0
      %2397 = vmatprep.subr.mxu0 0.0
      %2398 = vmatpush1.msra.mxu0 %v2237
      %2399 = vmatprep.subr.mxu0 0.0
      %2400 = vmatpush1.msra.mxu0 %v2238
      %2401 = vmatprep.subr.mxu0 0.0
      %2402 = vmatpush1.msra.mxu0 %v2239
      %2403 = vmatprep.subr.mxu0 0.0
      %2404 = vmatpush1.msra.mxu0 %v2240
      %2405 = vmatprep.subr.mxu0 0.0
      %2406 = vmatpush1.msra.mxu0 %v2241
      %2407 = vmatprep.subr.mxu0 0.0
      %2408 = vmatpush1.msra.mxu0 %v2242
      %2409 = vmatprep.subr.mxu0 0.0
      %2410 = vmatpush1.msra.mxu0 %v2243
      %2411 = vmatprep.subr.mxu0 0.0
      %2412 = vmatpush1.msra.mxu0 %v2244
      %2413 = vmatprep.subr.mxu0 0.0
      %2414 = vmatpush1.msra.mxu0 %v2245
      %2415 = vmatprep.subr.mxu0 0.0
      %2416 = vmatpush1.msra.mxu0 %v2246
      %2417 = vmatprep.subr.mxu0 0.0
      %2418 = vmatpush1.msra.mxu0 %v2247
      %2419 = vmatprep.subr.mxu0 0.0
      %2420 = vmatpush1.msra.mxu0 %v2248
      %2421 = vmatprep.subr.mxu0 0.0
      %2422 = vmatpush1.msra.mxu0 %v2249
      %2423 = vmatprep.subr.mxu0 0.0
      %2424 = vmatpush1.msra.mxu0 %v2250
      %2425 = vmatprep.subr.mxu0 0.0
      %2426 = vmatpush1.msra.mxu0 %v2251
      %2427 = vmatprep.subr.mxu0 0.0
      %2428 = vmatpush1.msra.mxu0 %v2252
      %2429 = vmatprep.subr.mxu0 0.0
      %2430 = vmatpush1.msra.mxu0 0.0
      %2431 = vmatprep.subr.mxu0 0.0
      %2432 = vmatpush1.msra.mxu0 0.0
      %2433 = vmatprep.subr.mxu0 0.0
      %2434 = vmatpush1.msra.mxu0 0.0
      %2435 = vmatprep.subr.mxu0 0.0
      %2436 = vmatpush1.msra.mxu0 0.0
      %2437 = vmatprep.subr.mxu0 0.0
      %2438 = vmatpush1.msra.mxu0 0.0
      %2439 = vmatprep.subr.mxu0 0.0
      %2440 = vmatpush1.msra.mxu0 0.0
      %2441 = vmatprep.subr.mxu0 0.0
      %2442 = vmatpush1.msra.mxu0 0.0
      %2443 = vmatprep.subr.mxu0 0.0
      %2444 = vmatpush1.msra.mxu0 0.0
      %2445 = vmatprep.subr.mxu0 0.0
      %2446 = vmatpush1.msra.mxu0 0.0
      %2447 = vmatprep.subr.mxu0 0.0
      %2448 = vmatpush1.msra.mxu0 0.0
      %2449 = vmatprep.subr.mxu0 0.0
      %2450 = vmatpush1.msra.mxu0 0.0
      %2451 = vmatprep.subr.mxu0 0.0
      %2452 = vmatpush1.msra.mxu0 0.0
      %2453 = vmatprep.subr.mxu0 0.0
      %2454 = vmatpush1.msra.mxu0 0.0
      %2455 = vmatprep.subr.mxu0 0.0
      %2456 = vmatpush1.msra.mxu0 0.0
      %2457 = vmatprep.subr.mxu0 0.0
      %2458 = vmatpush1.msra.mxu0 0.0
      %2459 = vmatprep.subr.mxu0 0.0
      %2460 = vmatpush1.msra.mxu0 0.0
      %2461 = vmatprep.mubr.f32.mxu0 0.0
      %2462 = vmatmul.mubr.f32.gmra.mrb[0].mxu0 %v2229
      %v2463 = vpop.f32.mrb[0].mxu0
      %v2464 = vadd.f32 %v2364, %v2463
      %v2465 = vpop.f32.mrb[0].mxu0
      %2466 = vmatprep.mubr.f32.mxu0 0.0
      %2467 = vmatmul.mubr.f32.gmra.mrb[0].mxu0 %v2230
      %v2468 = vpop.f32.mrb[0].mxu0
      %v2469 = vadd.f32 %v2369, %v2468
      %v2470 = vpop.f32.mrb[0].mxu0
      %2471 = vmatprep.mubr.f32.mxu0 0.0
      %2472 = vmatmul.mubr.f32.gmra.mrb[0].mxu0 %v2231
      %v2473 = vpop.f32.mrb[0].mxu0
      %v2474 = vadd.f32 %v2374, %v2473
      %v2475 = vpop.f32.mrb[0].mxu0
      %2476 = vmatprep.mubr.f32.mxu0 0.0
      %2477 = vmatmul.mubr.f32.gmra.mrb[0].mxu0 %v2232
      %v2478 = vpop.f32.mrb[0].mxu0
      %v2479 = vadd.f32 %v2379, %v2478
      %v2480 = vpop.f32.mrb[0].mxu0
      %2481 = vmatprep.mubr.f32.mxu0 0.0
      %2482 = vmatmul.mubr.f32.gmra.mrb[0].mxu0 %v2233
      %v2483 = vpop.f32.mrb[0].mxu0
      %v2484 = vadd.f32 %v2384, %v2483
      %v2485 = vpop.f32.mrb[0].mxu0
      %2486 = vmatprep.mubr.f32.mxu0 0.0
      %2487 = vmatmul.mubr.f32.gmra.mrb[0].mxu0 %v2234
      %v2488 = vpop.f32.mrb[0].mxu0
      %v2489 = vadd.f32 %v2389, %v2488
      %v2490 = vpop.f32.mrb[0].mxu0
      %2491 = vmatprep.mubr.f32.mxu0 0.0
      %2492 = vmatmul.mubr.f32.gmra.mrb[0].mxu0 %v2235
      %v2493 = vpop.f32.mrb[0].mxu0
      %v2494 = vadd.f32 %v2394, %v2493
      %v2495 = vpop.f32.mrb[0].mxu0
      %2496 = vdwg.mxu0
      %s2497 = scalar_lea.vmem %s3, 256
      %v2498 = vld [vmem:[%s2497] sm:$0xff]
      %v2499 = vld [vmem:[%s2497 + $0x8] sm:$0xff]
      %v2500 = vld [vmem:[%s2497 + $0x10] sm:$0xff]
      %v2501 = vld [vmem:[%s2497 + $0x18] sm:$0xff]
      %v2502 = vld [vmem:[%s2497 + $0x20] sm:$0xff]
      %v2503 = vld [vmem:[%s2497 + $0x28] sm:$0xff]
      %v2504 = vld [vmem:[%s2497 + $0x30] sm:$0xff]
      %v2505 = vld [vmem:[%s2497 + $0x38] sm:$0xff]
      %v2506 = vld [vmem:[%s2497 + $0x40] sm:$0xff]
      %v2507 = vld [vmem:[%s2497 + $0x48] sm:$0xff]
      %v2508 = vld [vmem:[%s2497 + $0x50] sm:$0xff]
      %v2509 = vld [vmem:[%s2497 + $0x58] sm:$0xff]
      %v2510 = vld [vmem:[%s2497 + $0x60] sm:$0xff]
      %v2511 = vld [vmem:[%s2497 + $0x68] sm:$0xff]
      %v2512 = vld [vmem:[%s2497 + $0x70] sm:$0xff]
      %v2513 = vld [vmem:[%s2497 + $0x78] sm:$0xff]
      %v2514 = vrot.slane %v2229, 2
      %v2515 = vrot.slane %v2230, 2
      %v2516 = vsel %vm685, %v2514, %v2515
      %v2517 = vrot.slane %v2231, 2
      %v2518 = vsel %vm685, %v2515, %v2517
      %v2519 = vrot.slane %v2232, 2
      %v2520 = vsel %vm685, %v2517, %v2519
      %v2521 = vrot.slane %v2233, 2
      %v2522 = vsel %vm685, %v2519, %v2521
      %v2523 = vrot.slane %v2234, 2
      %v2524 = vsel %vm685, %v2521, %v2523
      %v2525 = vrot.slane %v2235, 2
      %v2526 = vsel %vm685, %v2523, %v2525
      %2534 = vmatprep.subr.mxu0 0.0
      %2535 = vmatpush1.msra.mxu0 %v2498
      %2536 = vmatprep.subr.mxu0 0.0
      %2537 = vmatpush1.msra.mxu0 %v2499
      %2538 = vmatprep.subr.mxu0 0.0
      %2539 = vmatpush1.msra.mxu0 %v2500
      %2540 = vmatprep.subr.mxu0 0.0
      %2541 = vmatpush1.msra.mxu0 %v2501
      %2542 = vmatprep.subr.mxu0 0.0
      %2543 = vmatpush1.msra.mxu0 %v2502
      %2544 = vmatprep.subr.mxu0 0.0
      %2545 = vmatpush1.msra.mxu0 %v2503
      %2546 = vmatprep.subr.mxu0 0.0
      %2547 = vmatpush1.msra.mxu0 %v2504
      %2548 = vmatprep.subr.mxu0 0.0
      %2549 = vmatpush1.msra.mxu0 %v2505
      %2550 = vmatprep.subr.mxu0 0.0
      %2551 = vmatpush1.msra.mxu0 %v2506
      %2552 = vmatprep.subr.mxu0 0.0
      %2553 = vmatpush1.msra.mxu0 %v2507
      %2554 = vmatprep.subr.mxu0 0.0
      %2555 = vmatpush1.msra.mxu0 %v2508
      %2556 = vmatprep.subr.mxu0 0.0
      %2557 = vmatpush1.msra.mxu0 %v2509
      %2558 = vmatprep.subr.mxu0 0.0
      %2559 = vmatpush1.msra.mxu0 %v2510
      %2560 = vmatprep.subr.mxu0 0.0
      %2561 = vmatpush1.msra.mxu0 %v2511
      %2562 = vmatprep.subr.mxu0 0.0
      %2563 = vmatpush1.msra.mxu0 %v2512
      %2564 = vmatprep.subr.mxu0 0.0
      %2565 = vmatpush1.msra.mxu0 %v2513
      %2566 = vmatprep.subr.mxu0 0.0
      %2567 = vmatpush1.msra.mxu0 0.0
      %2568 = vmatprep.subr.mxu0 0.0
      %2569 = vmatpush1.msra.mxu0 0.0
      %2570 = vmatprep.subr.mxu0 0.0
      %2571 = vmatpush1.msra.mxu0 0.0
      %2572 = vmatprep.subr.mxu0 0.0
      %2573 = vmatpush1.msra.mxu0 0.0
      %2574 = vmatprep.subr.mxu0 0.0
      %2575 = vmatpush1.msra.mxu0 0.0
      %2576 = vmatprep.subr.mxu0 0.0
      %2577 = vmatpush1.msra.mxu0 0.0
      %2578 = vmatprep.subr.mxu0 0.0
      %2579 = vmatpush1.msra.mxu0 0.0
      %2580 = vmatprep.subr.mxu0 0.0
      %2581 = vmatpush1.msra.mxu0 0.0
      %2582 = vmatprep.subr.mxu0 0.0
      %2583 = vmatpush1.msra.mxu0 0.0
      %2584 = vmatprep.subr.mxu0 0.0
      %2585 = vmatpush1.msra.mxu0 0.0
      %2586 = vmatprep.subr.mxu0 0.0
      %2587 = vmatpush1.msra.mxu0 0.0
      %2588 = vmatprep.subr.mxu0 0.0
      %2589 = vmatpush1.msra.mxu0 0.0
      %2590 = vmatprep.subr.mxu0 0.0
      %2591 = vmatpush1.msra.mxu0 0.0
      %2592 = vmatprep.subr.mxu0 0.0
      %2593 = vmatpush1.msra.mxu0 0.0
      %2594 = vmatprep.subr.mxu0 0.0
      %2595 = vmatpush1.msra.mxu0 0.0
      %2596 = vmatprep.subr.mxu0 0.0
      %2597 = vmatpush1.msra.mxu0 0.0
      %2598 = vmatprep.mubr.f32.mxu0 0.0
      %2599 = vmatmul.mubr.f32.gmra.mrb[0].mxu0 %v2516
      %v2600 = vpop.f32.mrb[0].mxu0
      %v2601 = vadd.f32 0.0, %v2600
      %v2602 = vpop.f32.mrb[0].mxu0
      %2603 = vmatprep.mubr.f32.mxu0 0.0
      %2604 = vmatmul.mubr.f32.gmra.mrb[0].mxu0 %v2518
      %v2605 = vpop.f32.mrb[0].mxu0
      %v2606 = vadd.f32 0.0, %v2605
      %v2607 = vpop.f32.mrb[0].mxu0
      %2608 = vmatprep.mubr.f32.mxu0 0.0
      %2609 = vmatmul.mubr.f32.gmra.mrb[0].mxu0 %v2520
      %v2610 = vpop.f32.mrb[0].mxu0
      %v2611 = vadd.f32 0.0, %v2610
      %v2612 = vpop.f32.mrb[0].mxu0
      %2613 = vmatprep.mubr.f32.mxu0 0.0
      %2614 = vmatmul.mubr.f32.gmra.mrb[0].mxu0 %v2522
      %v2615 = vpop.f32.mrb[0].mxu0
      %v2616 = vadd.f32 0.0, %v2615
      %v2617 = vpop.f32.mrb[0].mxu0
      %2618 = vmatprep.mubr.f32.mxu0 0.0
      %2619 = vmatmul.mubr.f32.gmra.mrb[0].mxu0 %v2524
      %v2620 = vpop.f32.mrb[0].mxu0
      %v2621 = vadd.f32 0.0, %v2620
      %v2622 = vpop.f32.mrb[0].mxu0
      %2623 = vmatprep.mubr.f32.mxu0 0.0
      %2624 = vmatmul.mubr.f32.gmra.mrb[0].mxu0 %v2526
      %v2625 = vpop.f32.mrb[0].mxu0
      %v2626 = vadd.f32 0.0, %v2625
      %v2627 = vpop.f32.mrb[0].mxu0
      %2628 = vmatprep.mubr.f32.mxu0 0.0
      %2629 = vmatmul.mubr.f32.gmra.mrb[0].mxu0 %v2525
      %v2630 = vpop.f32.mrb[0].mxu0
      %v2631 = vadd.f32 0.0, %v2630
      %v2632 = vpop.f32.mrb[0].mxu0
      %2633 = vdwg.mxu0
      %v2634 = vadd.f32 %v2464, %v2601
      %v2635 = vadd.f32 %v2469, %v2606
      %v2636 = vadd.f32 %v2474, %v2611
      %v2637 = vadd.f32 %v2479, %v2616
      %v2638 = vadd.f32 %v2484, %v2621
      %v2639 = vadd.f32 %v2489, %v2626
      %v2640 = vadd.f32 %v2494, %v2631
      %s2641 = scalar_lea.vmem %s3, 384
      %v2642 = vld [vmem:[%s2641] sm:$0xff]
      %v2643 = vld [vmem:[%s2641 + $0x8] sm:$0xff]
      %v2644 = vld [vmem:[%s2641 + $0x10] sm:$0xff]
      %v2645 = vld [vmem:[%s2641 + $0x18] sm:$0xff]
      %v2646 = vld [vmem:[%s2641 + $0x20] sm:$0xff]
      %v2647 = vld [vmem:[%s2641 + $0x28] sm:$0xff]
      %v2648 = vld [vmem:[%s2641 + $0x30] sm:$0xff]
      %v2649 = vld [vmem:[%s2641 + $0x38] sm:$0xff]
      %v2650 = vld [vmem:[%s2641 + $0x40] sm:$0xff]
      %v2651 = vld [vmem:[%s2641 + $0x48] sm:$0xff]
      %v2652 = vld [vmem:[%s2641 + $0x50] sm:$0xff]
      %v2653 = vld [vmem:[%s2641 + $0x58] sm:$0xff]
      %v2654 = vld [vmem:[%s2641 + $0x60] sm:$0xff]
      %v2655 = vld [vmem:[%s2641 + $0x68] sm:$0xff]
      %v2656 = vld [vmem:[%s2641 + $0x70] sm:$0xff]
      %v2657 = vld [vmem:[%s2641 + $0x78] sm:$0xff]
      %v2658 = vrot.slane %v2229, 3
      %v2659 = vrot.slane %v2230, 3
      %v2660 = vsel %vm903, %v2658, %v2659
      %v2661 = vrot.slane %v2231, 3
      %v2662 = vsel %vm903, %v2659, %v2661
      %v2663 = vrot.slane %v2232, 3
      %v2664 = vsel %vm903, %v2661, %v2663
      %v2665 = vrot.slane %v2233, 3
      %v2666 = vsel %vm903, %v2663, %v2665
      %v2667 = vrot.slane %v2234, 3
      %v2668 = vsel %vm903, %v2665, %v2667
      %v2669 = vrot.slane %v2235, 3
      %v2670 = vsel %vm903, %v2667, %v2669
      %2678 = vmatprep.subr.mxu0 0.0
      %2679 = vmatpush1.msra.mxu0 %v2642
      %2680 = vmatprep.subr.mxu0 0.0
      %2681 = vmatpush1.msra.mxu0 %v2643
      %2682 = vmatprep.subr.mxu0 0.0
      %2683 = vmatpush1.msra.mxu0 %v2644
      %2684 = vmatprep.subr.mxu0 0.0
      %2685 = vmatpush1.msra.mxu0 %v2645
      %2686 = vmatprep.subr.mxu0 0.0
      %2687 = vmatpush1.msra.mxu0 %v2646
      %2688 = vmatprep.subr.mxu0 0.0
      %2689 = vmatpush1.msra.mxu0 %v2647
      %2690 = vmatprep.subr.mxu0 0.0
      %2691 = vmatpush1.msra.mxu0 %v2648
      %2692 = vmatprep.subr.mxu0 0.0
      %2693 = vmatpush1.msra.mxu0 %v2649
      %2694 = vmatprep.subr.mxu0 0.0
      %2695 = vmatpush1.msra.mxu0 %v2650
      %2696 = vmatprep.subr.mxu0 0.0
      %2697 = vmatpush1.msra.mxu0 %v2651
      %2698 = vmatprep.subr.mxu0 0.0
      %2699 = vmatpush1.msra.mxu0 %v2652
      %2700 = vmatprep.subr.mxu0 0.0
      %2701 = vmatpush1.msra.mxu0 %v2653
      %2702 = vmatprep.subr.mxu0 0.0
      %2703 = vmatpush1.msra.mxu0 %v2654
      %2704 = vmatprep.subr.mxu0 0.0
      %2705 = vmatpush1.msra.mxu0 %v2655
      %2706 = vmatprep.subr.mxu0 0.0
      %2707 = vmatpush1.msra.mxu0 %v2656
      %2708 = vmatprep.subr.mxu0 0.0
      %2709 = vmatpush1.msra.mxu0 %v2657
      %2710 = vmatprep.subr.mxu0 0.0
      %2711 = vmatpush1.msra.mxu0 0.0
      %2712 = vmatprep.subr.mxu0 0.0
      %2713 = vmatpush1.msra.mxu0 0.0
      %2714 = vmatprep.subr.mxu0 0.0
      %2715 = vmatpush1.msra.mxu0 0.0
      %2716 = vmatprep.subr.mxu0 0.0
      %2717 = vmatpush1.msra.mxu0 0.0
      %2718 = vmatprep.subr.mxu0 0.0
      %2719 = vmatpush1.msra.mxu0 0.0
      %2720 = vmatprep.subr.mxu0 0.0
      %2721 = vmatpush1.msra.mxu0 0.0
      %2722 = vmatprep.subr.mxu0 0.0
      %2723 = vmatpush1.msra.mxu0 0.0
      %2724 = vmatprep.subr.mxu0 0.0
      %2725 = vmatpush1.msra.mxu0 0.0
      %2726 = vmatprep.subr.mxu0 0.0
      %2727 = vmatpush1.msra.mxu0 0.0
      %2728 = vmatprep.subr.mxu0 0.0
      %2729 = vmatpush1.msra.mxu0 0.0
      %2730 = vmatprep.subr.mxu0 0.0
      %2731 = vmatpush1.msra.mxu0 0.0
      %2732 = vmatprep.subr.mxu0 0.0
      %2733 = vmatpush1.msra.mxu0 0.0
      %2734 = vmatprep.subr.mxu0 0.0
      %2735 = vmatpush1.msra.mxu0 0.0
      %2736 = vmatprep.subr.mxu0 0.0
      %2737 = vmatpush1.msra.mxu0 0.0
      %2738 = vmatprep.subr.mxu0 0.0
      %2739 = vmatpush1.msra.mxu0 0.0
      %2740 = vmatprep.subr.mxu0 0.0
      %2741 = vmatpush1.msra.mxu0 0.0
      %2742 = vmatprep.mubr.f32.mxu0 0.0
      %2743 = vmatmul.mubr.f32.gmra.mrb[0].mxu0 %v2660
      %v2744 = vpop.f32.mrb[0].mxu0
      %v2745 = vadd.f32 0.0, %v2744
      %v2746 = vpop.f32.mrb[0].mxu0
      %2747 = vmatprep.mubr.f32.mxu0 0.0
      %2748 = vmatmul.mubr.f32.gmra.mrb[0].mxu0 %v2662
      %v2749 = vpop.f32.mrb[0].mxu0
      %v2750 = vadd.f32 0.0, %v2749
      %v2751 = vpop.f32.mrb[0].mxu0
      %2752 = vmatprep.mubr.f32.mxu0 0.0
      %2753 = vmatmul.mubr.f32.gmra.mrb[0].mxu0 %v2664
      %v2754 = vpop.f32.mrb[0].mxu0
      %v2755 = vadd.f32 0.0, %v2754
      %v2756 = vpop.f32.mrb[0].mxu0
      %2757 = vmatprep.mubr.f32.mxu0 0.0
      %2758 = vmatmul.mubr.f32.gmra.mrb[0].mxu0 %v2666
      %v2759 = vpop.f32.mrb[0].mxu0
      %v2760 = vadd.f32 0.0, %v2759
      %v2761 = vpop.f32.mrb[0].mxu0
      %2762 = vmatprep.mubr.f32.mxu0 0.0
      %2763 = vmatmul.mubr.f32.gmra.mrb[0].mxu0 %v2668
      %v2764 = vpop.f32.mrb[0].mxu0
      %v2765 = vadd.f32 0.0, %v2764
      %v2766 = vpop.f32.mrb[0].mxu0
      %2767 = vmatprep.mubr.f32.mxu0 0.0
      %2768 = vmatmul.mubr.f32.gmra.mrb[0].mxu0 %v2670
      %v2769 = vpop.f32.mrb[0].mxu0
      %v2770 = vadd.f32 0.0, %v2769
      %v2771 = vpop.f32.mrb[0].mxu0
      %2772 = vmatprep.mubr.f32.mxu0 0.0
      %2773 = vmatmul.mubr.f32.gmra.mrb[0].mxu0 %v2669
      %v2774 = vpop.f32.mrb[0].mxu0
      %v2775 = vadd.f32 0.0, %v2774
      %v2776 = vpop.f32.mrb[0].mxu0
      %2777 = vdwg.mxu0
      %v2778 = vadd.f32 %v2634, %v2745
      %v2779 = vadd.f32 %v2635, %v2750
      %v2780 = vadd.f32 %v2636, %v2755
      %v2781 = vadd.f32 %v2637, %v2760
      %v2782 = vadd.f32 %v2638, %v2765
      %v2783 = vadd.f32 %v2639, %v2770
      %v2784 = vadd.f32 %v2640, %v2775
      %s2785 = scalar_lea.vmem %s3, 512
      %v2786 = vld [vmem:[%s2785] sm:$0xff]
      %v2787 = vld [vmem:[%s2785 + $0x8] sm:$0xff]
      %v2788 = vld [vmem:[%s2785 + $0x10] sm:$0xff]
      %v2789 = vld [vmem:[%s2785 + $0x18] sm:$0xff]
      %v2790 = vld [vmem:[%s2785 + $0x20] sm:$0xff]
      %v2791 = vld [vmem:[%s2785 + $0x28] sm:$0xff]
      %v2792 = vld [vmem:[%s2785 + $0x30] sm:$0xff]
      %v2793 = vld [vmem:[%s2785 + $0x38] sm:$0xff]
      %v2794 = vld [vmem:[%s2785 + $0x40] sm:$0xff]
      %v2795 = vld [vmem:[%s2785 + $0x48] sm:$0xff]
      %v2796 = vld [vmem:[%s2785 + $0x50] sm:$0xff]
      %v2797 = vld [vmem:[%s2785 + $0x58] sm:$0xff]
      %v2798 = vld [vmem:[%s2785 + $0x60] sm:$0xff]
      %v2799 = vld [vmem:[%s2785 + $0x68] sm:$0xff]
      %v2800 = vld [vmem:[%s2785 + $0x70] sm:$0xff]
      %v2801 = vld [vmem:[%s2785 + $0x78] sm:$0xff]
      %v2802 = vrot.slane %v2229, 4
      %v2803 = vrot.slane %v2230, 4
      %v2804 = vsel %vm1122, %v2802, %v2803
      %v2805 = vrot.slane %v2231, 4
      %v2806 = vsel %vm1122, %v2803, %v2805
      %v2807 = vrot.slane %v2232, 4
      %v2808 = vsel %vm1122, %v2805, %v2807
      %v2809 = vrot.slane %v2233, 4
      %v2810 = vsel %vm1122, %v2807, %v2809
      %v2811 = vrot.slane %v2234, 4
      %v2812 = vsel %vm1122, %v2809, %v2811
      %v2813 = vrot.slane %v2235, 4
      %v2814 = vsel %vm1122, %v2811, %v2813
      %2822 = vmatprep.subr.mxu0 0.0
      %2823 = vmatpush1.msra.mxu0 %v2786
      %2824 = vmatprep.subr.mxu0 0.0
      %2825 = vmatpush1.msra.mxu0 %v2787
      %2826 = vmatprep.subr.mxu0 0.0
      %2827 = vmatpush1.msra.mxu0 %v2788
      %2828 = vmatprep.subr.mxu0 0.0
      %2829 = vmatpush1.msra.mxu0 %v2789
      %2830 = vmatprep.subr.mxu0 0.0
      %2831 = vmatpush1.msra.mxu0 %v2790
      %2832 = vmatprep.subr.mxu0 0.0
      %2833 = vmatpush1.msra.mxu0 %v2791
      %2834 = vmatprep.subr.mxu0 0.0
      %2835 = vmatpush1.msra.mxu0 %v2792
      %2836 = vmatprep.subr.mxu0 0.0
      %2837 = vmatpush1.msra.mxu0 %v2793
      %2838 = vmatprep.subr.mxu0 0.0
      %2839 = vmatpush1.msra.mxu0 %v2794
      %2840 = vmatprep.subr.mxu0 0.0
      %2841 = vmatpush1.msra.mxu0 %v2795
      %2842 = vmatprep.subr.mxu0 0.0
      %2843 = vmatpush1.msra.mxu0 %v2796
      %2844 = vmatprep.subr.mxu0 0.0
      %2845 = vmatpush1.msra.mxu0 %v2797
      %2846 = vmatprep.subr.mxu0 0.0
      %2847 = vmatpush1.msra.mxu0 %v2798
      %2848 = vmatprep.subr.mxu0 0.0
      %2849 = vmatpush1.msra.mxu0 %v2799
      %2850 = vmatprep.subr.mxu0 0.0
      %2851 = vmatpush1.msra.mxu0 %v2800
      %2852 = vmatprep.subr.mxu0 0.0
      %2853 = vmatpush1.msra.mxu0 %v2801
      %2854 = vmatprep.subr.mxu0 0.0
      %2855 = vmatpush1.msra.mxu0 0.0
      %2856 = vmatprep.subr.mxu0 0.0
      %2857 = vmatpush1.msra.mxu0 0.0
      %2858 = vmatprep.subr.mxu0 0.0
      %2859 = vmatpush1.msra.mxu0 0.0
      %2860 = vmatprep.subr.mxu0 0.0
      %2861 = vmatpush1.msra.mxu0 0.0
      %2862 = vmatprep.subr.mxu0 0.0
      %2863 = vmatpush1.msra.mxu0 0.0
      %2864 = vmatprep.subr.mxu0 0.0
      %2865 = vmatpush1.msra.mxu0 0.0
      %2866 = vmatprep.subr.mxu0 0.0
      %2867 = vmatpush1.msra.mxu0 0.0
      %2868 = vmatprep.subr.mxu0 0.0
      %2869 = vmatpush1.msra.mxu0 0.0
      %2870 = vmatprep.subr.mxu0 0.0
      %2871 = vmatpush1.msra.mxu0 0.0
      %2872 = vmatprep.subr.mxu0 0.0
      %2873 = vmatpush1.msra.mxu0 0.0
      %2874 = vmatprep.subr.mxu0 0.0
      %2875 = vmatpush1.msra.mxu0 0.0
      %2876 = vmatprep.subr.mxu0 0.0
      %2877 = vmatpush1.msra.mxu0 0.0
      %2878 = vmatprep.subr.mxu0 0.0
      %2879 = vmatpush1.msra.mxu0 0.0
      %2880 = vmatprep.subr.mxu0 0.0
      %2881 = vmatpush1.msra.mxu0 0.0
      %2882 = vmatprep.subr.mxu0 0.0
      %2883 = vmatpush1.msra.mxu0 0.0
      %2884 = vmatprep.subr.mxu0 0.0
      %2885 = vmatpush1.msra.mxu0 0.0
      %2886 = vmatprep.mubr.f32.mxu0 0.0
      %2887 = vmatmul.mubr.f32.gmra.mrb[0].mxu0 %v2804
      %v2888 = vpop.f32.mrb[0].mxu0
      %v2889 = vadd.f32 0.0, %v2888
      %v2890 = vpop.f32.mrb[0].mxu0
      %2891 = vmatprep.mubr.f32.mxu0 0.0
      %2892 = vmatmul.mubr.f32.gmra.mrb[0].mxu0 %v2806
      %v2893 = vpop.f32.mrb[0].mxu0
      %v2894 = vadd.f32 0.0, %v2893
      %v2895 = vpop.f32.mrb[0].mxu0
      %2896 = vmatprep.mubr.f32.mxu0 0.0
      %2897 = vmatmul.mubr.f32.gmra.mrb[0].mxu0 %v2808
      %v2898 = vpop.f32.mrb[0].mxu0
      %v2899 = vadd.f32 0.0, %v2898
      %v2900 = vpop.f32.mrb[0].mxu0
      %2901 = vmatprep.mubr.f32.mxu0 0.0
      %2902 = vmatmul.mubr.f32.gmra.mrb[0].mxu0 %v2810
      %v2903 = vpop.f32.mrb[0].mxu0
      %v2904 = vadd.f32 0.0, %v2903
      %v2905 = vpop.f32.mrb[0].mxu0
      %2906 = vmatprep.mubr.f32.mxu0 0.0
      %2907 = vmatmul.mubr.f32.gmra.mrb[0].mxu0 %v2812
      %v2908 = vpop.f32.mrb[0].mxu0
      %v2909 = vadd.f32 0.0, %v2908
      %v2910 = vpop.f32.mrb[0].mxu0
      %2911 = vmatprep.mubr.f32.mxu0 0.0
      %2912 = vmatmul.mubr.f32.gmra.mrb[0].mxu0 %v2814
      %v2913 = vpop.f32.mrb[0].mxu0
      %v2914 = vadd.f32 0.0, %v2913
      %v2915 = vpop.f32.mrb[0].mxu0
      %2916 = vmatprep.mubr.f32.mxu0 0.0
      %2917 = vmatmul.mubr.f32.gmra.mrb[0].mxu0 %v2813
      %v2918 = vpop.f32.mrb[0].mxu0
      %v2919 = vadd.f32 0.0, %v2918
      %v2920 = vpop.f32.mrb[0].mxu0
      %2921 = vdwg.mxu0
      %v2922 = vadd.f32 %v2778, %v2889
      %v2923 = vadd.f32 %v2779, %v2894
      %v2924 = vadd.f32 %v2780, %v2899
      %v2925 = vadd.f32 %v2781, %v2904
      %v2926 = vadd.f32 %v2782, %v2909
      %v2927 = vadd.f32 %v2783, %v2914
      %v2928 = vadd.f32 %v2784, %v2919
      %s2929 = scalar_lea.vmem %s3, 640
      %v2930 = vld [vmem:[%s2929] sm:$0xff]
      %v2931 = vld [vmem:[%s2929 + $0x8] sm:$0xff]
      %v2932 = vld [vmem:[%s2929 + $0x10] sm:$0xff]
      %v2933 = vld [vmem:[%s2929 + $0x18] sm:$0xff]
      %v2934 = vld [vmem:[%s2929 + $0x20] sm:$0xff]
      %v2935 = vld [vmem:[%s2929 + $0x28] sm:$0xff]
      %v2936 = vld [vmem:[%s2929 + $0x30] sm:$0xff]
      %v2937 = vld [vmem:[%s2929 + $0x38] sm:$0xff]
      %v2938 = vld [vmem:[%s2929 + $0x40] sm:$0xff]
      %v2939 = vld [vmem:[%s2929 + $0x48] sm:$0xff]
      %v2940 = vld [vmem:[%s2929 + $0x50] sm:$0xff]
      %v2941 = vld [vmem:[%s2929 + $0x58] sm:$0xff]
      %v2942 = vld [vmem:[%s2929 + $0x60] sm:$0xff]
      %v2943 = vld [vmem:[%s2929 + $0x68] sm:$0xff]
      %v2944 = vld [vmem:[%s2929 + $0x70] sm:$0xff]
      %v2945 = vld [vmem:[%s2929 + $0x78] sm:$0xff]
      %v2947 = vrot.slane %v2229, 5
      %v2948 = vrot.slane %v2230, 5
      %v2949 = vsel %vm1341, %v2947, %v2948
      %v2950 = vrot.slane %v2231, 5
      %v2951 = vsel %vm1341, %v2948, %v2950
      %v2952 = vrot.slane %v2232, 5
      %v2953 = vsel %vm1341, %v2950, %v2952
      %v2954 = vrot.slane %v2233, 5
      %v2955 = vsel %vm1341, %v2952, %v2954
      %v2956 = vrot.slane %v2234, 5
      %v2957 = vsel %vm1341, %v2954, %v2956
      %v2958 = vrot.slane %v2235, 5
      %v2959 = vsel %vm1341, %v2956, %v2958
      %v2960 = vrot.slane %v2236, 5
      %v2961 = vsel %vm1341, %v2958, %v2960
      %2969 = vmatprep.subr.mxu0 0.0
      %2970 = vmatpush1.msra.mxu0 %v2930
      %2971 = vmatprep.subr.mxu0 0.0
      %2972 = vmatpush1.msra.mxu0 %v2931
      %2973 = vmatprep.subr.mxu0 0.0
      %2974 = vmatpush1.msra.mxu0 %v2932
      %2975 = vmatprep.subr.mxu0 0.0
      %2976 = vmatpush1.msra.mxu0 %v2933
      %2977 = vmatprep.subr.mxu0 0.0
      %2978 = vmatpush1.msra.mxu0 %v2934
      %2979 = vmatprep.subr.mxu0 0.0
      %2980 = vmatpush1.msra.mxu0 %v2935
      %2981 = vmatprep.subr.mxu0 0.0
      %2982 = vmatpush1.msra.mxu0 %v2936
      %2983 = vmatprep.subr.mxu0 0.0
      %2984 = vmatpush1.msra.mxu0 %v2937
      %2985 = vmatprep.subr.mxu0 0.0
      %2986 = vmatpush1.msra.mxu0 %v2938
      %2987 = vmatprep.subr.mxu0 0.0
      %2988 = vmatpush1.msra.mxu0 %v2939
      %2989 = vmatprep.subr.mxu0 0.0
      %2990 = vmatpush1.msra.mxu0 %v2940
      %2991 = vmatprep.subr.mxu0 0.0
      %2992 = vmatpush1.msra.mxu0 %v2941
      %2993 = vmatprep.subr.mxu0 0.0
      %2994 = vmatpush1.msra.mxu0 %v2942
      %2995 = vmatprep.subr.mxu0 0.0
      %2996 = vmatpush1.msra.mxu0 %v2943
      %2997 = vmatprep.subr.mxu0 0.0
      %2998 = vmatpush1.msra.mxu0 %v2944
      %2999 = vmatprep.subr.mxu0 0.0
      %3000 = vmatpush1.msra.mxu0 %v2945
      %3001 = vmatprep.subr.mxu0 0.0
      %3002 = vmatpush1.msra.mxu0 0.0
      %3003 = vmatprep.subr.mxu0 0.0
      %3004 = vmatpush1.msra.mxu0 0.0
      %3005 = vmatprep.subr.mxu0 0.0
      %3006 = vmatpush1.msra.mxu0 0.0
      %3007 = vmatprep.subr.mxu0 0.0
      %3008 = vmatpush1.msra.mxu0 0.0
      %3009 = vmatprep.subr.mxu0 0.0
      %3010 = vmatpush1.msra.mxu0 0.0
      %3011 = vmatprep.subr.mxu0 0.0
      %3012 = vmatpush1.msra.mxu0 0.0
      %3013 = vmatprep.subr.mxu0 0.0
      %3014 = vmatpush1.msra.mxu0 0.0
      %3015 = vmatprep.subr.mxu0 0.0
      %3016 = vmatpush1.msra.mxu0 0.0
      %3017 = vmatprep.subr.mxu0 0.0
      %3018 = vmatpush1.msra.mxu0 0.0
      %3019 = vmatprep.subr.mxu0 0.0
      %3020 = vmatpush1.msra.mxu0 0.0
      %3021 = vmatprep.subr.mxu0 0.0
      %3022 = vmatpush1.msra.mxu0 0.0
      %3023 = vmatprep.subr.mxu0 0.0
      %3024 = vmatpush1.msra.mxu0 0.0
      %3025 = vmatprep.subr.mxu0 0.0
      %3026 = vmatpush1.msra.mxu0 0.0
      %3027 = vmatprep.subr.mxu0 0.0
      %3028 = vmatpush1.msra.mxu0 0.0
      %3029 = vmatprep.subr.mxu0 0.0
      %3030 = vmatpush1.msra.mxu0 0.0
      %3031 = vmatprep.subr.mxu0 0.0
      %3032 = vmatpush1.msra.mxu0 0.0
      %3033 = vmatprep.mubr.f32.mxu0 0.0
      %3034 = vmatmul.mubr.f32.gmra.mrb[0].mxu0 %v2949
      %v3035 = vpop.f32.mrb[0].mxu0
      %v3036 = vadd.f32 0.0, %v3035
      %v3037 = vpop.f32.mrb[0].mxu0
      %3038 = vmatprep.mubr.f32.mxu0 0.0
      %3039 = vmatmul.mubr.f32.gmra.mrb[0].mxu0 %v2951
      %v3040 = vpop.f32.mrb[0].mxu0
      %v3041 = vadd.f32 0.0, %v3040
      %v3042 = vpop.f32.mrb[0].mxu0
      %3043 = vmatprep.mubr.f32.mxu0 0.0
      %3044 = vmatmul.mubr.f32.gmra.mrb[0].mxu0 %v2953
      %v3045 = vpop.f32.mrb[0].mxu0
      %v3046 = vadd.f32 0.0, %v3045
      %v3047 = vpop.f32.mrb[0].mxu0
      %3048 = vmatprep.mubr.f32.mxu0 0.0
      %3049 = vmatmul.mubr.f32.gmra.mrb[0].mxu0 %v2955
      %v3050 = vpop.f32.mrb[0].mxu0
      %v3051 = vadd.f32 0.0, %v3050
      %v3052 = vpop.f32.mrb[0].mxu0
      %3053 = vmatprep.mubr.f32.mxu0 0.0
      %3054 = vmatmul.mubr.f32.gmra.mrb[0].mxu0 %v2957
      %v3055 = vpop.f32.mrb[0].mxu0
      %v3056 = vadd.f32 0.0, %v3055
      %v3057 = vpop.f32.mrb[0].mxu0
      %3058 = vmatprep.mubr.f32.mxu0 0.0
      %3059 = vmatmul.mubr.f32.gmra.mrb[0].mxu0 %v2959
      %v3060 = vpop.f32.mrb[0].mxu0
      %v3061 = vadd.f32 0.0, %v3060
      %v3062 = vpop.f32.mrb[0].mxu0
      %3063 = vmatprep.mubr.f32.mxu0 0.0
      %3064 = vmatmul.mubr.f32.gmra.mrb[0].mxu0 %v2961
      %v3065 = vpop.f32.mrb[0].mxu0
      %v3066 = vadd.f32 0.0, %v3065
      %v3067 = vpop.f32.mrb[0].mxu0
      %3068 = vdwg.mxu0
      %v3069 = vadd.f32 %v2922, %v3036
      %v3070 = vadd.f32 %v2923, %v3041
      %v3071 = vadd.f32 %v2924, %v3046
      %v3072 = vadd.f32 %v2925, %v3051
      %v3073 = vadd.f32 %v2926, %v3056
      %v3074 = vadd.f32 %v2927, %v3061
      %v3075 = vadd.f32 %v2928, %v3066
      %s3076 = scalar_lea.vmem %s3, 768
      %v3077 = vld [vmem:[%s3076] sm:$0xff]
      %v3078 = vld [vmem:[%s3076 + $0x8] sm:$0xff]
      %v3079 = vld [vmem:[%s3076 + $0x10] sm:$0xff]
      %v3080 = vld [vmem:[%s3076 + $0x18] sm:$0xff]
      %v3081 = vld [vmem:[%s3076 + $0x20] sm:$0xff]
      %v3082 = vld [vmem:[%s3076 + $0x28] sm:$0xff]
      %v3083 = vld [vmem:[%s3076 + $0x30] sm:$0xff]
      %v3084 = vld [vmem:[%s3076 + $0x38] sm:$0xff]
      %v3085 = vld [vmem:[%s3076 + $0x40] sm:$0xff]
      %v3086 = vld [vmem:[%s3076 + $0x48] sm:$0xff]
      %v3087 = vld [vmem:[%s3076 + $0x50] sm:$0xff]
      %v3088 = vld [vmem:[%s3076 + $0x58] sm:$0xff]
      %v3089 = vld [vmem:[%s3076 + $0x60] sm:$0xff]
      %v3090 = vld [vmem:[%s3076 + $0x68] sm:$0xff]
      %v3091 = vld [vmem:[%s3076 + $0x70] sm:$0xff]
      %v3092 = vld [vmem:[%s3076 + $0x78] sm:$0xff]
      %v3093 = vrot.slane %v2229, 6
      %v3094 = vrot.slane %v2230, 6
      %v3095 = vsel %vm1560, %v3093, %v3094
      %v3096 = vrot.slane %v2231, 6
      %v3097 = vsel %vm1560, %v3094, %v3096
      %v3098 = vrot.slane %v2232, 6
      %v3099 = vsel %vm1560, %v3096, %v3098
      %v3100 = vrot.slane %v2233, 6
      %v3101 = vsel %vm1560, %v3098, %v3100
      %v3102 = vrot.slane %v2234, 6
      %v3103 = vsel %vm1560, %v3100, %v3102
      %v3104 = vrot.slane %v2235, 6
      %v3105 = vsel %vm1560, %v3102, %v3104
      %v3106 = vrot.slane %v2236, 6
      %v3107 = vsel %vm1560, %v3104, %v3106
      %3115 = vmatprep.subr.mxu0 0.0
      %3116 = vmatpush1.msra.mxu0 %v3077
      %3117 = vmatprep.subr.mxu0 0.0
      %3118 = vmatpush1.msra.mxu0 %v3078
      %3119 = vmatprep.subr.mxu0 0.0
      %3120 = vmatpush1.msra.mxu0 %v3079
      %3121 = vmatprep.subr.mxu0 0.0
      %3122 = vmatpush1.msra.mxu0 %v3080
      %3123 = vmatprep.subr.mxu0 0.0
      %3124 = vmatpush1.msra.mxu0 %v3081
      %3125 = vmatprep.subr.mxu0 0.0
      %3126 = vmatpush1.msra.mxu0 %v3082
      %3127 = vmatprep.subr.mxu0 0.0
      %3128 = vmatpush1.msra.mxu0 %v3083
      %3129 = vmatprep.subr.mxu0 0.0
      %3130 = vmatpush1.msra.mxu0 %v3084
      %3131 = vmatprep.subr.mxu0 0.0
      %3132 = vmatpush1.msra.mxu0 %v3085
      %3133 = vmatprep.subr.mxu0 0.0
      %3134 = vmatpush1.msra.mxu0 %v3086
      %3135 = vmatprep.subr.mxu0 0.0
      %3136 = vmatpush1.msra.mxu0 %v3087
      %3137 = vmatprep.subr.mxu0 0.0
      %3138 = vmatpush1.msra.mxu0 %v3088
      %3139 = vmatprep.subr.mxu0 0.0
      %3140 = vmatpush1.msra.mxu0 %v3089
      %3141 = vmatprep.subr.mxu0 0.0
      %3142 = vmatpush1.msra.mxu0 %v3090
      %3143 = vmatprep.subr.mxu0 0.0
      %3144 = vmatpush1.msra.mxu0 %v3091
      %3145 = vmatprep.subr.mxu0 0.0
      %3146 = vmatpush1.msra.mxu0 %v3092
      %3147 = vmatprep.subr.mxu0 0.0
      %3148 = vmatpush1.msra.mxu0 0.0
      %3149 = vmatprep.subr.mxu0 0.0
      %3150 = vmatpush1.msra.mxu0 0.0
      %3151 = vmatprep.subr.mxu0 0.0
      %3152 = vmatpush1.msra.mxu0 0.0
      %3153 = vmatprep.subr.mxu0 0.0
      %3154 = vmatpush1.msra.mxu0 0.0
      %3155 = vmatprep.subr.mxu0 0.0
      %3156 = vmatpush1.msra.mxu0 0.0
      %3157 = vmatprep.subr.mxu0 0.0
      %3158 = vmatpush1.msra.mxu0 0.0
      %3159 = vmatprep.subr.mxu0 0.0
      %3160 = vmatpush1.msra.mxu0 0.0
      %3161 = vmatprep.subr.mxu0 0.0
      %3162 = vmatpush1.msra.mxu0 0.0
      %3163 = vmatprep.subr.mxu0 0.0
      %3164 = vmatpush1.msra.mxu0 0.0
      %3165 = vmatprep.subr.mxu0 0.0
      %3166 = vmatpush1.msra.mxu0 0.0
      %3167 = vmatprep.subr.mxu0 0.0
      %3168 = vmatpush1.msra.mxu0 0.0
      %3169 = vmatprep.subr.mxu0 0.0
      %3170 = vmatpush1.msra.mxu0 0.0
      %3171 = vmatprep.subr.mxu0 0.0
      %3172 = vmatpush1.msra.mxu0 0.0
      %3173 = vmatprep.subr.mxu0 0.0
      %3174 = vmatpush1.msra.mxu0 0.0
      %3175 = vmatprep.subr.mxu0 0.0
      %3176 = vmatpush1.msra.mxu0 0.0
      %3177 = vmatprep.subr.mxu0 0.0
      %3178 = vmatpush1.msra.mxu0 0.0
      %3179 = vmatprep.mubr.f32.mxu0 0.0
      %3180 = vmatmul.mubr.f32.gmra.mrb[0].mxu0 %v3095
      %v3181 = vpop.f32.mrb[0].mxu0
      %v3182 = vadd.f32 0.0, %v3181
      %v3183 = vpop.f32.mrb[0].mxu0
      %3184 = vmatprep.mubr.f32.mxu0 0.0
      %3185 = vmatmul.mubr.f32.gmra.mrb[0].mxu0 %v3097
      %v3186 = vpop.f32.mrb[0].mxu0
      %v3187 = vadd.f32 0.0, %v3186
      %v3188 = vpop.f32.mrb[0].mxu0
      %3189 = vmatprep.mubr.f32.mxu0 0.0
      %3190 = vmatmul.mubr.f32.gmra.mrb[0].mxu0 %v3099
      %v3191 = vpop.f32.mrb[0].mxu0
      %v3192 = vadd.f32 0.0, %v3191
      %v3193 = vpop.f32.mrb[0].mxu0
      %3194 = vmatprep.mubr.f32.mxu0 0.0
      %3195 = vmatmul.mubr.f32.gmra.mrb[0].mxu0 %v3101
      %v3196 = vpop.f32.mrb[0].mxu0
      %v3197 = vadd.f32 0.0, %v3196
      %v3198 = vpop.f32.mrb[0].mxu0
      %3199 = vmatprep.mubr.f32.mxu0 0.0
      %3200 = vmatmul.mubr.f32.gmra.mrb[0].mxu0 %v3103
      %v3201 = vpop.f32.mrb[0].mxu0
      %v3202 = vadd.f32 0.0, %v3201
      %v3203 = vpop.f32.mrb[0].mxu0
      %3204 = vmatprep.mubr.f32.mxu0 0.0
      %3205 = vmatmul.mubr.f32.gmra.mrb[0].mxu0 %v3105
      %v3206 = vpop.f32.mrb[0].mxu0
      %v3207 = vadd.f32 0.0, %v3206
      %v3208 = vpop.f32.mrb[0].mxu0
      %3209 = vmatprep.mubr.f32.mxu0 0.0
      %3210 = vmatmul.mubr.f32.gmra.mrb[0].mxu0 %v3107
      %v3211 = vpop.f32.mrb[0].mxu0
      %v3212 = vadd.f32 0.0, %v3211
      %v3213 = vpop.f32.mrb[0].mxu0
      %3214 = vdwg.mxu0
      %v3215 = vadd.f32 %v3069, %v3182
      %v3216 = vadd.f32 %v3070, %v3187
      %v3217 = vadd.f32 %v3071, %v3192
      %v3218 = vadd.f32 %v3072, %v3197
      %v3219 = vadd.f32 %v3073, %v3202
      %v3220 = vadd.f32 %v3074, %v3207
      %v3221 = vadd.f32 %v3075, %v3212
      %s3222 = scalar_lea.vmem %s3, 896
      %v3223 = vld [vmem:[%s3222] sm:$0xff]
      %v3224 = vld [vmem:[%s3222 + $0x8] sm:$0xff]
      %v3225 = vld [vmem:[%s3222 + $0x10] sm:$0xff]
      %v3226 = vld [vmem:[%s3222 + $0x18] sm:$0xff]
      %v3227 = vld [vmem:[%s3222 + $0x20] sm:$0xff]
      %v3228 = vld [vmem:[%s3222 + $0x28] sm:$0xff]
      %v3229 = vld [vmem:[%s3222 + $0x30] sm:$0xff]
      %v3230 = vld [vmem:[%s3222 + $0x38] sm:$0xff]
      %v3231 = vld [vmem:[%s3222 + $0x40] sm:$0xff]
      %v3232 = vld [vmem:[%s3222 + $0x48] sm:$0xff]
      %v3233 = vld [vmem:[%s3222 + $0x50] sm:$0xff]
      %v3234 = vld [vmem:[%s3222 + $0x58] sm:$0xff]
      %v3235 = vld [vmem:[%s3222 + $0x60] sm:$0xff]
      %v3236 = vld [vmem:[%s3222 + $0x68] sm:$0xff]
      %v3237 = vld [vmem:[%s3222 + $0x70] sm:$0xff]
      %v3238 = vld [vmem:[%s3222 + $0x78] sm:$0xff]
      %v3239 = vrot.slane %v2229, 7
      %v3240 = vrot.slane %v2230, 7
      %v3241 = vsel %vm1779, %v3239, %v3240
      %v3242 = vrot.slane %v2231, 7
      %v3243 = vsel %vm1779, %v3240, %v3242
      %v3244 = vrot.slane %v2232, 7
      %v3245 = vsel %vm1779, %v3242, %v3244
      %v3246 = vrot.slane %v2233, 7
      %v3247 = vsel %vm1779, %v3244, %v3246
      %v3248 = vrot.slane %v2234, 7
      %v3249 = vsel %vm1779, %v3246, %v3248
      %v3250 = vrot.slane %v2235, 7
      %v3251 = vsel %vm1779, %v3248, %v3250
      %v3252 = vrot.slane %v2236, 7
      %v3253 = vsel %vm1779, %v3250, %v3252
      %3261 = vmatprep.subr.mxu0 0.0
      %3262 = vmatpush1.msra.mxu0 %v3223
      %3263 = vmatprep.subr.mxu0 0.0
      %3264 = vmatpush1.msra.mxu0 %v3224
      %3265 = vmatprep.subr.mxu0 0.0
      %3266 = vmatpush1.msra.mxu0 %v3225
      %3267 = vmatprep.subr.mxu0 0.0
      %3268 = vmatpush1.msra.mxu0 %v3226
      %3269 = vmatprep.subr.mxu0 0.0
      %3270 = vmatpush1.msra.mxu0 %v3227
      %3271 = vmatprep.subr.mxu0 0.0
      %3272 = vmatpush1.msra.mxu0 %v3228
      %3273 = vmatprep.subr.mxu0 0.0
      %3274 = vmatpush1.msra.mxu0 %v3229
      %3275 = vmatprep.subr.mxu0 0.0
      %3276 = vmatpush1.msra.mxu0 %v3230
      %3277 = vmatprep.subr.mxu0 0.0
      %3278 = vmatpush1.msra.mxu0 %v3231
      %3279 = vmatprep.subr.mxu0 0.0
      %3280 = vmatpush1.msra.mxu0 %v3232
      %3281 = vmatprep.subr.mxu0 0.0
      %3282 = vmatpush1.msra.mxu0 %v3233
      %3283 = vmatprep.subr.mxu0 0.0
      %3284 = vmatpush1.msra.mxu0 %v3234
      %3285 = vmatprep.subr.mxu0 0.0
      %3286 = vmatpush1.msra.mxu0 %v3235
      %3287 = vmatprep.subr.mxu0 0.0
      %3288 = vmatpush1.msra.mxu0 %v3236
      %3289 = vmatprep.subr.mxu0 0.0
      %3290 = vmatpush1.msra.mxu0 %v3237
      %3291 = vmatprep.subr.mxu0 0.0
      %3292 = vmatpush1.msra.mxu0 %v3238
      %3293 = vmatprep.subr.mxu0 0.0
      %3294 = vmatpush1.msra.mxu0 0.0
      %3295 = vmatprep.subr.mxu0 0.0
      %3296 = vmatpush1.msra.mxu0 0.0
      %3297 = vmatprep.subr.mxu0 0.0
      %3298 = vmatpush1.msra.mxu0 0.0
      %3299 = vmatprep.subr.mxu0 0.0
      %3300 = vmatpush1.msra.mxu0 0.0
      %3301 = vmatprep.subr.mxu0 0.0
      %3302 = vmatpush1.msra.mxu0 0.0
      %3303 = vmatprep.subr.mxu0 0.0
      %3304 = vmatpush1.msra.mxu0 0.0
      %3305 = vmatprep.subr.mxu0 0.0
      %3306 = vmatpush1.msra.mxu0 0.0
      %3307 = vmatprep.subr.mxu0 0.0
      %3308 = vmatpush1.msra.mxu0 0.0
      %3309 = vmatprep.subr.mxu0 0.0
      %3310 = vmatpush1.msra.mxu0 0.0
      %3311 = vmatprep.subr.mxu0 0.0
      %3312 = vmatpush1.msra.mxu0 0.0
      %3313 = vmatprep.subr.mxu0 0.0
      %3314 = vmatpush1.msra.mxu0 0.0
      %3315 = vmatprep.subr.mxu0 0.0
      %3316 = vmatpush1.msra.mxu0 0.0
      %3317 = vmatprep.subr.mxu0 0.0
      %3318 = vmatpush1.msra.mxu0 0.0
      %3319 = vmatprep.subr.mxu0 0.0
      %3320 = vmatpush1.msra.mxu0 0.0
      %3321 = vmatprep.subr.mxu0 0.0
      %3322 = vmatpush1.msra.mxu0 0.0
      %3323 = vmatprep.subr.mxu0 0.0
      %3324 = vmatpush1.msra.mxu0 0.0
      %3325 = vmatprep.mubr.f32.mxu0 0.0
      %3326 = vmatmul.mubr.f32.gmra.mrb[0].mxu0 %v3241
      %v3327 = vpop.f32.mrb[0].mxu0
      %v3328 = vadd.f32 0.0, %v3327
      %v3329 = vpop.f32.mrb[0].mxu0
      %3330 = vmatprep.mubr.f32.mxu0 0.0
      %3331 = vmatmul.mubr.f32.gmra.mrb[0].mxu0 %v3243
      %v3332 = vpop.f32.mrb[0].mxu0
      %v3333 = vadd.f32 0.0, %v3332
      %v3334 = vpop.f32.mrb[0].mxu0
      %3335 = vmatprep.mubr.f32.mxu0 0.0
      %3336 = vmatmul.mubr.f32.gmra.mrb[0].mxu0 %v3245
      %v3337 = vpop.f32.mrb[0].mxu0
      %v3338 = vadd.f32 0.0, %v3337
      %v3339 = vpop.f32.mrb[0].mxu0
      %3340 = vmatprep.mubr.f32.mxu0 0.0
      %3341 = vmatmul.mubr.f32.gmra.mrb[0].mxu0 %v3247
      %v3342 = vpop.f32.mrb[0].mxu0
      %v3343 = vadd.f32 0.0, %v3342
      %v3344 = vpop.f32.mrb[0].mxu0
      %3345 = vmatprep.mubr.f32.mxu0 0.0
      %3346 = vmatmul.mubr.f32.gmra.mrb[0].mxu0 %v3249
      %v3347 = vpop.f32.mrb[0].mxu0
      %v3348 = vadd.f32 0.0, %v3347
      %v3349 = vpop.f32.mrb[0].mxu0
      %3350 = vmatprep.mubr.f32.mxu0 0.0
      %3351 = vmatmul.mubr.f32.gmra.mrb[0].mxu0 %v3251
      %v3352 = vpop.f32.mrb[0].mxu0
      %v3353 = vadd.f32 0.0, %v3352
      %v3354 = vpop.f32.mrb[0].mxu0
      %3355 = vmatprep.mubr.f32.mxu0 0.0
      %3356 = vmatmul.mubr.f32.gmra.mrb[0].mxu0 %v3253
      %v3357 = vpop.f32.mrb[0].mxu0
      %v3358 = vadd.f32 0.0, %v3357
      %v3359 = vpop.f32.mrb[0].mxu0
      %3360 = vdwg.mxu0
      %v3361 = vadd.f32 %v3215, %v3328
      %v3362 = vadd.f32 %v3216, %v3333
      %v3363 = vadd.f32 %v3217, %v3338
      %v3364 = vadd.f32 %v3218, %v3343
      %v3365 = vadd.f32 %v3219, %v3348
      %v3366 = vadd.f32 %v3220, %v3353
      %v3367 = vadd.f32 %v3221, %v3358
      %v3368 = vld [vmem:[%s4] sm:$0x1]
      %v3370 = vlaneseq
      %v3371 = vshrl.u32 %v3370, 7
      %v3372 = vsub.s32 0, %v3371
      %v3373 = vrot.slane %v3368, %v3372
      %v3375 = vadd.f32 %v3361, %v3373
      %v3376 = vadd.f32 %v3362, %v3373
      %v3377 = vadd.f32 %v3363, %v3373
      %v3378 = vadd.f32 %v3364, %v3373
      %v3379 = vadd.f32 %v3365, %v3373
      %v3380 = vadd.f32 %v3366, %v3373
      %v3381 = vadd.f32 %v3367, %v3373
      %3382 = vst [vmem:[#allocation3] sm:$0xff] %v3375
      %3383 = vst [vmem:[#allocation3 + $0x8] sm:$0xff] %v3376
      %3384 = vst [vmem:[#allocation3 + $0x10] sm:$0xff] %v3377
      %3385 = vst [vmem:[#allocation3 + $0x18] sm:$0xff] %v3378
      %3386 = vst [vmem:[#allocation3 + $0x20] sm:$0xff] %v3379
      %3387 = vst [vmem:[#allocation3 + $0x28] sm:$0xff] %v3380
      %3388 = vst [vmem:[#allocation3 + $0x30] sm:$0xf] %v3381
      %v3389 = vld [vmem:[#allocation3] ss:$2 sm:$0xff]
      %s3390 = scalar_lea.vmem [#allocation3], 16
      %v3391 = vld [vmem:[%s3390] ss:$2 sm:$0xff]
      %s3392 = scalar_lea.vmem [#allocation3], 32
      %v3393 = vld [vmem:[%s3392] ss:$2 sm:$0xff]
      %s3394 = scalar_lea.vmem [#allocation3], 48
      %v3395 = vld [vmem:[%s3394] ss:$2 sm:$0x3]
      %s3396 = scalar_lea.vmem [#allocation3], 1
      %v3397 = vld [vmem:[%s3396] ss:$2 sm:$0xff]
      %s3398 = scalar_lea.vmem [#allocation3], 17
      %v3399 = vld [vmem:[%s3398] ss:$2 sm:$0xff]
      %s3400 = scalar_lea.vmem [#allocation3], 33
      %v3401 = vld [vmem:[%s3400] ss:$2 sm:$0xff]
      %s3402 = scalar_lea.vmem [#allocation3], 49
      %v3403 = vld [vmem:[%s3402] ss:$2 sm:$0x3]
      %v3404 = vmax.f32 %v3389, %v3397
      %v3405 = vmax.f32 %v3391, %v3399
      %v3406 = vmax.f32 %v3393, %v3401
      %v3407 = vmax.f32 %v3395, %v3403
      %v3408 = vmax.f32 %v3404, 0.0
      %v3409 = vmax.f32 %v3405, 0.0
      %v3410 = vmax.f32 %v3406, 0.0
      %v3411 = vmax.f32 %v3407, 0.0
      %v3412 = vld [vmem:[%s5] sm:$0xff]
      %v3413 = vld [vmem:[%s5 + $0x8] sm:$0xff]
      %v3414 = vld [vmem:[%s5 + $0x10] sm:$0xff]
      %v3415 = vld [vmem:[%s5 + $0x18] sm:$0xff]
      %v3416 = vld [vmem:[%s5 + $0x20] sm:$0xff]
      %v3417 = vld [vmem:[%s5 + $0x28] sm:$0xff]
      %v3418 = vld [vmem:[%s5 + $0x30] sm:$0xff]
      %v3419 = vld [vmem:[%s5 + $0x38] sm:$0xff]
      %v3420 = vld [vmem:[%s5 + $0x40] sm:$0xff]
      %v3421 = vld [vmem:[%s5 + $0x48] sm:$0xff]
      %v3422 = vld [vmem:[%s5 + $0x50] sm:$0xff]
      %v3423 = vld [vmem:[%s5 + $0x58] sm:$0xff]
      %v3424 = vld [vmem:[%s5 + $0x60] sm:$0xff]
      %v3425 = vld [vmem:[%s5 + $0x68] sm:$0xff]
      %v3426 = vld [vmem:[%s5 + $0x70] sm:$0xff]
      %v3427 = vld [vmem:[%s5 + $0x78] sm:$0xff]
      %s3428 = scalar_lea.vmem %s5, 128
      %v3429 = vld [vmem:[%s3428] sm:$0xff]
      %v3430 = vld [vmem:[%s3428 + $0x8] sm:$0xff]
      %v3431 = vld [vmem:[%s3428 + $0x10] sm:$0xff]
      %v3432 = vld [vmem:[%s3428 + $0x18] sm:$0xff]
      %v3433 = vld [vmem:[%s3428 + $0x20] sm:$0xff]
      %v3434 = vld [vmem:[%s3428 + $0x28] sm:$0xff]
      %v3435 = vld [vmem:[%s3428 + $0x30] sm:$0xff]
      %v3436 = vld [vmem:[%s3428 + $0x38] sm:$0xff]
      %v3437 = vld [vmem:[%s3428 + $0x40] sm:$0xff]
      %v3438 = vld [vmem:[%s3428 + $0x48] sm:$0xff]
      %v3439 = vld [vmem:[%s3428 + $0x50] sm:$0xff]
      %v3440 = vld [vmem:[%s3428 + $0x58] sm:$0xff]
      %v3441 = vld [vmem:[%s3428 + $0x60] sm:$0xff]
      %v3442 = vld [vmem:[%s3428 + $0x68] sm:$0xff]
      %v3443 = vld [vmem:[%s3428 + $0x70] sm:$0xff]
      %v3444 = vld [vmem:[%s3428 + $0x78] sm:$0xff]
      %v3448 = vrot.slane %v3408, 1
      %v3449 = vrot.slane %v3409, 1
      %v3450 = vsel %vm343, %v3448, %v3449
      %v3451 = vrot.slane %v3410, 1
      %v3452 = vsel %vm343, %v3449, %v3451
      %3456 = vmatprep.subr.mxu0 0.0
      %3457 = vmatpush1.msra.mxu0 %v3429
      %3458 = vmatprep.subr.mxu0 0.0
      %3459 = vmatpush1.msra.mxu0 %v3430
      %3460 = vmatprep.subr.mxu0 0.0
      %3461 = vmatpush1.msra.mxu0 %v3431
      %3462 = vmatprep.subr.mxu0 0.0
      %3463 = vmatpush1.msra.mxu0 %v3432
      %3464 = vmatprep.subr.mxu0 0.0
      %3465 = vmatpush1.msra.mxu0 %v3433
      %3466 = vmatprep.subr.mxu0 0.0
      %3467 = vmatpush1.msra.mxu0 %v3434
      %3468 = vmatprep.subr.mxu0 0.0
      %3469 = vmatpush1.msra.mxu0 %v3435
      %3470 = vmatprep.subr.mxu0 0.0
      %3471 = vmatpush1.msra.mxu0 %v3436
      %3472 = vmatprep.subr.mxu0 0.0
      %3473 = vmatpush1.msra.mxu0 %v3437
      %3474 = vmatprep.subr.mxu0 0.0
      %3475 = vmatpush1.msra.mxu0 %v3438
      %3476 = vmatprep.subr.mxu0 0.0
      %3477 = vmatpush1.msra.mxu0 %v3439
      %3478 = vmatprep.subr.mxu0 0.0
      %3479 = vmatpush1.msra.mxu0 %v3440
      %3480 = vmatprep.subr.mxu0 0.0
      %3481 = vmatpush1.msra.mxu0 %v3441
      %3482 = vmatprep.subr.mxu0 0.0
      %3483 = vmatpush1.msra.mxu0 %v3442
      %3484 = vmatprep.subr.mxu0 0.0
      %3485 = vmatpush1.msra.mxu0 %v3443
      %3486 = vmatprep.subr.mxu0 0.0
      %3487 = vmatpush1.msra.mxu0 %v3444
      %3488 = vmatprep.subr.mxu0 0.0
      %3489 = vmatpush1.msra.mxu0 0.0
      %3490 = vmatprep.subr.mxu0 0.0
      %3491 = vmatpush1.msra.mxu0 0.0
      %3492 = vmatprep.subr.mxu0 0.0
      %3493 = vmatpush1.msra.mxu0 0.0
      %3494 = vmatprep.subr.mxu0 0.0
      %3495 = vmatpush1.msra.mxu0 0.0
      %3496 = vmatprep.subr.mxu0 0.0
      %3497 = vmatpush1.msra.mxu0 0.0
      %3498 = vmatprep.subr.mxu0 0.0
      %3499 = vmatpush1.msra.mxu0 0.0
      %3500 = vmatprep.subr.mxu0 0.0
      %3501 = vmatpush1.msra.mxu0 0.0
      %3502 = vmatprep.subr.mxu0 0.0
      %3503 = vmatpush1.msra.mxu0 0.0
      %3504 = vmatprep.subr.mxu0 0.0
      %3505 = vmatpush1.msra.mxu0 0.0
      %3506 = vmatprep.subr.mxu0 0.0
      %3507 = vmatpush1.msra.mxu0 0.0
      %3508 = vmatprep.subr.mxu0 0.0
      %3509 = vmatpush1.msra.mxu0 0.0
      %3510 = vmatprep.subr.mxu0 0.0
      %3511 = vmatpush1.msra.mxu0 0.0
      %3512 = vmatprep.subr.mxu0 0.0
      %3513 = vmatpush1.msra.mxu0 0.0
      %3514 = vmatprep.subr.mxu0 0.0
      %3515 = vmatpush1.msra.mxu0 0.0
      %3516 = vmatprep.subr.mxu0 0.0
      %3517 = vmatpush1.msra.mxu0 0.0
      %3518 = vmatprep.subr.mxu0 0.0
      %3519 = vmatpush1.msra.mxu0 0.0
      %3520 = vmatprep.mubr.f32.mxu0 0.0
      %3521 = vmatmul.mubr.f32.gmra.mrb[0].mxu0 %v3450
      %v3522 = vpop.f32.mrb[0].mxu0
      %v3523 = vadd.f32 0.0, %v3522
      %v3524 = vpop.f32.mrb[0].mxu0
      %3525 = vmatprep.mubr.f32.mxu0 0.0
      %3526 = vmatmul.mubr.f32.gmra.mrb[0].mxu0 %v3452
      %v3527 = vpop.f32.mrb[0].mxu0
      %v3528 = vadd.f32 0.0, %v3527
      %v3529 = vpop.f32.mrb[0].mxu0
      %3530 = vmatprep.mubr.f32.mxu0 0.0
      %3531 = vmatmul.mubr.f32.gmra.mrb[0].mxu0 %v3451
      %v3532 = vpop.f32.mrb[0].mxu0
      %v3533 = vadd.f32 0.0, %v3532
      %v3534 = vpop.f32.mrb[0].mxu0
      %3535 = vdwg.mxu0
      %3536 = vmatprep.subr.mxu0 0.0
      %3537 = vmatpush1.msra.mxu0 %v3412
      %3538 = vmatprep.subr.mxu0 0.0
      %3539 = vmatpush1.msra.mxu0 %v3413
      %3540 = vmatprep.subr.mxu0 0.0
      %3541 = vmatpush1.msra.mxu0 %v3414
      %3542 = vmatprep.subr.mxu0 0.0
      %3543 = vmatpush1.msra.mxu0 %v3415
      %3544 = vmatprep.subr.mxu0 0.0
      %3545 = vmatpush1.msra.mxu0 %v3416
      %3546 = vmatprep.subr.mxu0 0.0
      %3547 = vmatpush1.msra.mxu0 %v3417
      %3548 = vmatprep.subr.mxu0 0.0
      %3549 = vmatpush1.msra.mxu0 %v3418
      %3550 = vmatprep.subr.mxu0 0.0
      %3551 = vmatpush1.msra.mxu0 %v3419
      %3552 = vmatprep.subr.mxu0 0.0
      %3553 = vmatpush1.msra.mxu0 %v3420
      %3554 = vmatprep.subr.mxu0 0.0
      %3555 = vmatpush1.msra.mxu0 %v3421
      %3556 = vmatprep.subr.mxu0 0.0
      %3557 = vmatpush1.msra.mxu0 %v3422
      %3558 = vmatprep.subr.mxu0 0.0
      %3559 = vmatpush1.msra.mxu0 %v3423
      %3560 = vmatprep.subr.mxu0 0.0
      %3561 = vmatpush1.msra.mxu0 %v3424
      %3562 = vmatprep.subr.mxu0 0.0
      %3563 = vmatpush1.msra.mxu0 %v3425
      %3564 = vmatprep.subr.mxu0 0.0
      %3565 = vmatpush1.msra.mxu0 %v3426
      %3566 = vmatprep.subr.mxu0 0.0
      %3567 = vmatpush1.msra.mxu0 %v3427
      %3568 = vmatprep.subr.mxu0 0.0
      %3569 = vmatpush1.msra.mxu0 0.0
      %3570 = vmatprep.subr.mxu0 0.0
      %3571 = vmatpush1.msra.mxu0 0.0
      %3572 = vmatprep.subr.mxu0 0.0
      %3573 = vmatpush1.msra.mxu0 0.0
      %3574 = vmatprep.subr.mxu0 0.0
      %3575 = vmatpush1.msra.mxu0 0.0
      %3576 = vmatprep.subr.mxu0 0.0
      %3577 = vmatpush1.msra.mxu0 0.0
      %3578 = vmatprep.subr.mxu0 0.0
      %3579 = vmatpush1.msra.mxu0 0.0
      %3580 = vmatprep.subr.mxu0 0.0
      %3581 = vmatpush1.msra.mxu0 0.0
      %3582 = vmatprep.subr.mxu0 0.0
      %3583 = vmatpush1.msra.mxu0 0.0
      %3584 = vmatprep.subr.mxu0 0.0
      %3585 = vmatpush1.msra.mxu0 0.0
      %3586 = vmatprep.subr.mxu0 0.0
      %3587 = vmatpush1.msra.mxu0 0.0
      %3588 = vmatprep.subr.mxu0 0.0
      %3589 = vmatpush1.msra.mxu0 0.0
      %3590 = vmatprep.subr.mxu0 0.0
      %3591 = vmatpush1.msra.mxu0 0.0
      %3592 = vmatprep.subr.mxu0 0.0
      %3593 = vmatpush1.msra.mxu0 0.0
      %3594 = vmatprep.subr.mxu0 0.0
      %3595 = vmatpush1.msra.mxu0 0.0
      %3596 = vmatprep.subr.mxu0 0.0
      %3597 = vmatpush1.msra.mxu0 0.0
      %3598 = vmatprep.subr.mxu0 0.0
      %3599 = vmatpush1.msra.mxu0 0.0
      %3600 = vmatprep.mubr.f32.mxu0 0.0
      %3601 = vmatmul.mubr.f32.gmra.mrb[0].mxu0 %v3408
      %v3602 = vpop.f32.mrb[0].mxu0
      %v3603 = vadd.f32 %v3523, %v3602
      %v3604 = vpop.f32.mrb[0].mxu0
      %3605 = vmatprep.mubr.f32.mxu0 0.0
      %3606 = vmatmul.mubr.f32.gmra.mrb[0].mxu0 %v3409
      %v3607 = vpop.f32.mrb[0].mxu0
      %v3608 = vadd.f32 %v3528, %v3607
      %v3609 = vpop.f32.mrb[0].mxu0
      %3610 = vmatprep.mubr.f32.mxu0 0.0
      %3611 = vmatmul.mubr.f32.gmra.mrb[0].mxu0 %v3410
      %v3612 = vpop.f32.mrb[0].mxu0
      %v3613 = vadd.f32 %v3533, %v3612
      %v3614 = vpop.f32.mrb[0].mxu0
      %3615 = vdwg.mxu0
      %s3616 = scalar_lea.vmem %s5, 256
      %v3617 = vld [vmem:[%s3616] sm:$0xff]
      %v3618 = vld [vmem:[%s3616 + $0x8] sm:$0xff]
      %v3619 = vld [vmem:[%s3616 + $0x10] sm:$0xff]
      %v3620 = vld [vmem:[%s3616 + $0x18] sm:$0xff]
      %v3621 = vld [vmem:[%s3616 + $0x20] sm:$0xff]
      %v3622 = vld [vmem:[%s3616 + $0x28] sm:$0xff]
      %v3623 = vld [vmem:[%s3616 + $0x30] sm:$0xff]
      %v3624 = vld [vmem:[%s3616 + $0x38] sm:$0xff]
      %v3625 = vld [vmem:[%s3616 + $0x40] sm:$0xff]
      %v3626 = vld [vmem:[%s3616 + $0x48] sm:$0xff]
      %v3627 = vld [vmem:[%s3616 + $0x50] sm:$0xff]
      %v3628 = vld [vmem:[%s3616 + $0x58] sm:$0xff]
      %v3629 = vld [vmem:[%s3616 + $0x60] sm:$0xff]
      %v3630 = vld [vmem:[%s3616 + $0x68] sm:$0xff]
      %v3631 = vld [vmem:[%s3616 + $0x70] sm:$0xff]
      %v3632 = vld [vmem:[%s3616 + $0x78] sm:$0xff]
      %v3633 = vrot.slane %v3408, 2
      %v3634 = vrot.slane %v3409, 2
      %v3635 = vsel %vm685, %v3633, %v3634
      %v3636 = vrot.slane %v3410, 2
      %v3637 = vsel %vm685, %v3634, %v3636
      %3641 = vmatprep.subr.mxu0 0.0
      %3642 = vmatpush1.msra.mxu0 %v3617
      %3643 = vmatprep.subr.mxu0 0.0
      %3644 = vmatpush1.msra.mxu0 %v3618
      %3645 = vmatprep.subr.mxu0 0.0
      %3646 = vmatpush1.msra.mxu0 %v3619
      %3647 = vmatprep.subr.mxu0 0.0
      %3648 = vmatpush1.msra.mxu0 %v3620
      %3649 = vmatprep.subr.mxu0 0.0
      %3650 = vmatpush1.msra.mxu0 %v3621
      %3651 = vmatprep.subr.mxu0 0.0
      %3652 = vmatpush1.msra.mxu0 %v3622
      %3653 = vmatprep.subr.mxu0 0.0
      %3654 = vmatpush1.msra.mxu0 %v3623
      %3655 = vmatprep.subr.mxu0 0.0
      %3656 = vmatpush1.msra.mxu0 %v3624
      %3657 = vmatprep.subr.mxu0 0.0
      %3658 = vmatpush1.msra.mxu0 %v3625
      %3659 = vmatprep.subr.mxu0 0.0
      %3660 = vmatpush1.msra.mxu0 %v3626
      %3661 = vmatprep.subr.mxu0 0.0
      %3662 = vmatpush1.msra.mxu0 %v3627
      %3663 = vmatprep.subr.mxu0 0.0
      %3664 = vmatpush1.msra.mxu0 %v3628
      %3665 = vmatprep.subr.mxu0 0.0
      %3666 = vmatpush1.msra.mxu0 %v3629
      %3667 = vmatprep.subr.mxu0 0.0
      %3668 = vmatpush1.msra.mxu0 %v3630
      %3669 = vmatprep.subr.mxu0 0.0
      %3670 = vmatpush1.msra.mxu0 %v3631
      %3671 = vmatprep.subr.mxu0 0.0
      %3672 = vmatpush1.msra.mxu0 %v3632
      %3673 = vmatprep.subr.mxu0 0.0
      %3674 = vmatpush1.msra.mxu0 0.0
      %3675 = vmatprep.subr.mxu0 0.0
      %3676 = vmatpush1.msra.mxu0 0.0
      %3677 = vmatprep.subr.mxu0 0.0
      %3678 = vmatpush1.msra.mxu0 0.0
      %3679 = vmatprep.subr.mxu0 0.0
      %3680 = vmatpush1.msra.mxu0 0.0
      %3681 = vmatprep.subr.mxu0 0.0
      %3682 = vmatpush1.msra.mxu0 0.0
      %3683 = vmatprep.subr.mxu0 0.0
      %3684 = vmatpush1.msra.mxu0 0.0
      %3685 = vmatprep.subr.mxu0 0.0
      %3686 = vmatpush1.msra.mxu0 0.0
      %3687 = vmatprep.subr.mxu0 0.0
      %3688 = vmatpush1.msra.mxu0 0.0
      %3689 = vmatprep.subr.mxu0 0.0
      %3690 = vmatpush1.msra.mxu0 0.0
      %3691 = vmatprep.subr.mxu0 0.0
      %3692 = vmatpush1.msra.mxu0 0.0
      %3693 = vmatprep.subr.mxu0 0.0
      %3694 = vmatpush1.msra.mxu0 0.0
      %3695 = vmatprep.subr.mxu0 0.0
      %3696 = vmatpush1.msra.mxu0 0.0
      %3697 = vmatprep.subr.mxu0 0.0
      %3698 = vmatpush1.msra.mxu0 0.0
      %3699 = vmatprep.subr.mxu0 0.0
      %3700 = vmatpush1.msra.mxu0 0.0
      %3701 = vmatprep.subr.mxu0 0.0
      %3702 = vmatpush1.msra.mxu0 0.0
      %3703 = vmatprep.subr.mxu0 0.0
      %3704 = vmatpush1.msra.mxu0 0.0
      %3705 = vmatprep.mubr.f32.mxu0 0.0
      %3706 = vmatmul.mubr.f32.gmra.mrb[0].mxu0 %v3635
      %v3707 = vpop.f32.mrb[0].mxu0
      %v3708 = vadd.f32 0.0, %v3707
      %v3709 = vpop.f32.mrb[0].mxu0
      %3710 = vmatprep.mubr.f32.mxu0 0.0
      %3711 = vmatmul.mubr.f32.gmra.mrb[0].mxu0 %v3637
      %v3712 = vpop.f32.mrb[0].mxu0
      %v3713 = vadd.f32 0.0, %v3712
      %v3714 = vpop.f32.mrb[0].mxu0
      %3715 = vmatprep.mubr.f32.mxu0 0.0
      %3716 = vmatmul.mubr.f32.gmra.mrb[0].mxu0 %v3636
      %v3717 = vpop.f32.mrb[0].mxu0
      %v3718 = vadd.f32 0.0, %v3717
      %v3719 = vpop.f32.mrb[0].mxu0
      %3720 = vdwg.mxu0
      %v3721 = vadd.f32 %v3603, %v3708
      %v3722 = vadd.f32 %v3608, %v3713
      %v3723 = vadd.f32 %v3613, %v3718
      %s3724 = scalar_lea.vmem %s5, 384
      %v3725 = vld [vmem:[%s3724] sm:$0xff]
      %v3726 = vld [vmem:[%s3724 + $0x8] sm:$0xff]
      %v3727 = vld [vmem:[%s3724 + $0x10] sm:$0xff]
      %v3728 = vld [vmem:[%s3724 + $0x18] sm:$0xff]
      %v3729 = vld [vmem:[%s3724 + $0x20] sm:$0xff]
      %v3730 = vld [vmem:[%s3724 + $0x28] sm:$0xff]
      %v3731 = vld [vmem:[%s3724 + $0x30] sm:$0xff]
      %v3732 = vld [vmem:[%s3724 + $0x38] sm:$0xff]
      %v3733 = vld [vmem:[%s3724 + $0x40] sm:$0xff]
      %v3734 = vld [vmem:[%s3724 + $0x48] sm:$0xff]
      %v3735 = vld [vmem:[%s3724 + $0x50] sm:$0xff]
      %v3736 = vld [vmem:[%s3724 + $0x58] sm:$0xff]
      %v3737 = vld [vmem:[%s3724 + $0x60] sm:$0xff]
      %v3738 = vld [vmem:[%s3724 + $0x68] sm:$0xff]
      %v3739 = vld [vmem:[%s3724 + $0x70] sm:$0xff]
      %v3740 = vld [vmem:[%s3724 + $0x78] sm:$0xff]
      %v3741 = vrot.slane %v3408, 3
      %v3742 = vrot.slane %v3409, 3
      %v3743 = vsel %vm903, %v3741, %v3742
      %v3744 = vrot.slane %v3410, 3
      %v3745 = vsel %vm903, %v3742, %v3744
      %3749 = vmatprep.subr.mxu0 0.0
      %3750 = vmatpush1.msra.mxu0 %v3725
      %3751 = vmatprep.subr.mxu0 0.0
      %3752 = vmatpush1.msra.mxu0 %v3726
      %3753 = vmatprep.subr.mxu0 0.0
      %3754 = vmatpush1.msra.mxu0 %v3727
      %3755 = vmatprep.subr.mxu0 0.0
      %3756 = vmatpush1.msra.mxu0 %v3728
      %3757 = vmatprep.subr.mxu0 0.0
      %3758 = vmatpush1.msra.mxu0 %v3729
      %3759 = vmatprep.subr.mxu0 0.0
      %3760 = vmatpush1.msra.mxu0 %v3730
      %3761 = vmatprep.subr.mxu0 0.0
      %3762 = vmatpush1.msra.mxu0 %v3731
      %3763 = vmatprep.subr.mxu0 0.0
      %3764 = vmatpush1.msra.mxu0 %v3732
      %3765 = vmatprep.subr.mxu0 0.0
      %3766 = vmatpush1.msra.mxu0 %v3733
      %3767 = vmatprep.subr.mxu0 0.0
      %3768 = vmatpush1.msra.mxu0 %v3734
      %3769 = vmatprep.subr.mxu0 0.0
      %3770 = vmatpush1.msra.mxu0 %v3735
      %3771 = vmatprep.subr.mxu0 0.0
      %3772 = vmatpush1.msra.mxu0 %v3736
      %3773 = vmatprep.subr.mxu0 0.0
      %3774 = vmatpush1.msra.mxu0 %v3737
      %3775 = vmatprep.subr.mxu0 0.0
      %3776 = vmatpush1.msra.mxu0 %v3738
      %3777 = vmatprep.subr.mxu0 0.0
      %3778 = vmatpush1.msra.mxu0 %v3739
      %3779 = vmatprep.subr.mxu0 0.0
      %3780 = vmatpush1.msra.mxu0 %v3740
      %3781 = vmatprep.subr.mxu0 0.0
      %3782 = vmatpush1.msra.mxu0 0.0
      %3783 = vmatprep.subr.mxu0 0.0
      %3784 = vmatpush1.msra.mxu0 0.0
      %3785 = vmatprep.subr.mxu0 0.0
      %3786 = vmatpush1.msra.mxu0 0.0
      %3787 = vmatprep.subr.mxu0 0.0
      %3788 = vmatpush1.msra.mxu0 0.0
      %3789 = vmatprep.subr.mxu0 0.0
      %3790 = vmatpush1.msra.mxu0 0.0
      %3791 = vmatprep.subr.mxu0 0.0
      %3792 = vmatpush1.msra.mxu0 0.0
      %3793 = vmatprep.subr.mxu0 0.0
      %3794 = vmatpush1.msra.mxu0 0.0
      %3795 = vmatprep.subr.mxu0 0.0
      %3796 = vmatpush1.msra.mxu0 0.0
      %3797 = vmatprep.subr.mxu0 0.0
      %3798 = vmatpush1.msra.mxu0 0.0
      %3799 = vmatprep.subr.mxu0 0.0
      %3800 = vmatpush1.msra.mxu0 0.0
      %3801 = vmatprep.subr.mxu0 0.0
      %3802 = vmatpush1.msra.mxu0 0.0
      %3803 = vmatprep.subr.mxu0 0.0
      %3804 = vmatpush1.msra.mxu0 0.0
      %3805 = vmatprep.subr.mxu0 0.0
      %3806 = vmatpush1.msra.mxu0 0.0
      %3807 = vmatprep.subr.mxu0 0.0
      %3808 = vmatpush1.msra.mxu0 0.0
      %3809 = vmatprep.subr.mxu0 0.0
      %3810 = vmatpush1.msra.mxu0 0.0
      %3811 = vmatprep.subr.mxu0 0.0
      %3812 = vmatpush1.msra.mxu0 0.0
      %3813 = vmatprep.mubr.f32.mxu0 0.0
      %3814 = vmatmul.mubr.f32.gmra.mrb[0].mxu0 %v3743
      %v3815 = vpop.f32.mrb[0].mxu0
      %v3816 = vadd.f32 0.0, %v3815
      %v3817 = vpop.f32.mrb[0].mxu0
      %3818 = vmatprep.mubr.f32.mxu0 0.0
      %3819 = vmatmul.mubr.f32.gmra.mrb[0].mxu0 %v3745
      %v3820 = vpop.f32.mrb[0].mxu0
      %v3821 = vadd.f32 0.0, %v3820
      %v3822 = vpop.f32.mrb[0].mxu0
      %3823 = vmatprep.mubr.f32.mxu0 0.0
      %3824 = vmatmul.mubr.f32.gmra.mrb[0].mxu0 %v3744
      %v3825 = vpop.f32.mrb[0].mxu0
      %v3826 = vadd.f32 0.0, %v3825
      %v3827 = vpop.f32.mrb[0].mxu0
      %3828 = vdwg.mxu0
      %v3829 = vadd.f32 %v3721, %v3816
      %v3830 = vadd.f32 %v3722, %v3821
      %v3831 = vadd.f32 %v3723, %v3826
      %s3832 = scalar_lea.vmem %s5, 512
      %v3833 = vld [vmem:[%s3832] sm:$0xff]
      %v3834 = vld [vmem:[%s3832 + $0x8] sm:$0xff]
      %v3835 = vld [vmem:[%s3832 + $0x10] sm:$0xff]
      %v3836 = vld [vmem:[%s3832 + $0x18] sm:$0xff]
      %v3837 = vld [vmem:[%s3832 + $0x20] sm:$0xff]
      %v3838 = vld [vmem:[%s3832 + $0x28] sm:$0xff]
      %v3839 = vld [vmem:[%s3832 + $0x30] sm:$0xff]
      %v3840 = vld [vmem:[%s3832 + $0x38] sm:$0xff]
      %v3841 = vld [vmem:[%s3832 + $0x40] sm:$0xff]
      %v3842 = vld [vmem:[%s3832 + $0x48] sm:$0xff]
      %v3843 = vld [vmem:[%s3832 + $0x50] sm:$0xff]
      %v3844 = vld [vmem:[%s3832 + $0x58] sm:$0xff]
      %v3845 = vld [vmem:[%s3832 + $0x60] sm:$0xff]
      %v3846 = vld [vmem:[%s3832 + $0x68] sm:$0xff]
      %v3847 = vld [vmem:[%s3832 + $0x70] sm:$0xff]
      %v3848 = vld [vmem:[%s3832 + $0x78] sm:$0xff]
      %v3849 = vrot.slane %v3408, 4
      %v3850 = vrot.slane %v3409, 4
      %v3851 = vsel %vm1122, %v3849, %v3850
      %v3852 = vrot.slane %v3410, 4
      %v3853 = vsel %vm1122, %v3850, %v3852
      %3857 = vmatprep.subr.mxu0 0.0
      %3858 = vmatpush1.msra.mxu0 %v3833
      %3859 = vmatprep.subr.mxu0 0.0
      %3860 = vmatpush1.msra.mxu0 %v3834
      %3861 = vmatprep.subr.mxu0 0.0
      %3862 = vmatpush1.msra.mxu0 %v3835
      %3863 = vmatprep.subr.mxu0 0.0
      %3864 = vmatpush1.msra.mxu0 %v3836
      %3865 = vmatprep.subr.mxu0 0.0
      %3866 = vmatpush1.msra.mxu0 %v3837
      %3867 = vmatprep.subr.mxu0 0.0
      %3868 = vmatpush1.msra.mxu0 %v3838
      %3869 = vmatprep.subr.mxu0 0.0
      %3870 = vmatpush1.msra.mxu0 %v3839
      %3871 = vmatprep.subr.mxu0 0.0
      %3872 = vmatpush1.msra.mxu0 %v3840
      %3873 = vmatprep.subr.mxu0 0.0
      %3874 = vmatpush1.msra.mxu0 %v3841
      %3875 = vmatprep.subr.mxu0 0.0
      %3876 = vmatpush1.msra.mxu0 %v3842
      %3877 = vmatprep.subr.mxu0 0.0
      %3878 = vmatpush1.msra.mxu0 %v3843
      %3879 = vmatprep.subr.mxu0 0.0
      %3880 = vmatpush1.msra.mxu0 %v3844
      %3881 = vmatprep.subr.mxu0 0.0
      %3882 = vmatpush1.msra.mxu0 %v3845
      %3883 = vmatprep.subr.mxu0 0.0
      %3884 = vmatpush1.msra.mxu0 %v3846
      %3885 = vmatprep.subr.mxu0 0.0
      %3886 = vmatpush1.msra.mxu0 %v3847
      %3887 = vmatprep.subr.mxu0 0.0
      %3888 = vmatpush1.msra.mxu0 %v3848
      %3889 = vmatprep.subr.mxu0 0.0
      %3890 = vmatpush1.msra.mxu0 0.0
      %3891 = vmatprep.subr.mxu0 0.0
      %3892 = vmatpush1.msra.mxu0 0.0
      %3893 = vmatprep.subr.mxu0 0.0
      %3894 = vmatpush1.msra.mxu0 0.0
      %3895 = vmatprep.subr.mxu0 0.0
      %3896 = vmatpush1.msra.mxu0 0.0
      %3897 = vmatprep.subr.mxu0 0.0
      %3898 = vmatpush1.msra.mxu0 0.0
      %3899 = vmatprep.subr.mxu0 0.0
      %3900 = vmatpush1.msra.mxu0 0.0
      %3901 = vmatprep.subr.mxu0 0.0
      %3902 = vmatpush1.msra.mxu0 0.0
      %3903 = vmatprep.subr.mxu0 0.0
      %3904 = vmatpush1.msra.mxu0 0.0
      %3905 = vmatprep.subr.mxu0 0.0
      %3906 = vmatpush1.msra.mxu0 0.0
      %3907 = vmatprep.subr.mxu0 0.0
      %3908 = vmatpush1.msra.mxu0 0.0
      %3909 = vmatprep.subr.mxu0 0.0
      %3910 = vmatpush1.msra.mxu0 0.0
      %3911 = vmatprep.subr.mxu0 0.0
      %3912 = vmatpush1.msra.mxu0 0.0
      %3913 = vmatprep.subr.mxu0 0.0
      %3914 = vmatpush1.msra.mxu0 0.0
      %3915 = vmatprep.subr.mxu0 0.0
      %3916 = vmatpush1.msra.mxu0 0.0
      %3917 = vmatprep.subr.mxu0 0.0
      %3918 = vmatpush1.msra.mxu0 0.0
      %3919 = vmatprep.subr.mxu0 0.0
      %3920 = vmatpush1.msra.mxu0 0.0
      %3921 = vmatprep.mubr.f32.mxu0 0.0
      %3922 = vmatmul.mubr.f32.gmra.mrb[0].mxu0 %v3851
      %v3923 = vpop.f32.mrb[0].mxu0
      %v3924 = vadd.f32 0.0, %v3923
      %v3925 = vpop.f32.mrb[0].mxu0
      %3926 = vmatprep.mubr.f32.mxu0 0.0
      %3927 = vmatmul.mubr.f32.gmra.mrb[0].mxu0 %v3853
      %v3928 = vpop.f32.mrb[0].mxu0
      %v3929 = vadd.f32 0.0, %v3928
      %v3930 = vpop.f32.mrb[0].mxu0
      %3931 = vmatprep.mubr.f32.mxu0 0.0
      %3932 = vmatmul.mubr.f32.gmra.mrb[0].mxu0 %v3852
      %v3933 = vpop.f32.mrb[0].mxu0
      %v3934 = vadd.f32 0.0, %v3933
      %v3935 = vpop.f32.mrb[0].mxu0
      %3936 = vdwg.mxu0
      %v3937 = vadd.f32 %v3829, %v3924
      %v3938 = vadd.f32 %v3830, %v3929
      %v3939 = vadd.f32 %v3831, %v3934
      %s3940 = scalar_lea.vmem %s5, 640
      %v3941 = vld [vmem:[%s3940] sm:$0xff]
      %v3942 = vld [vmem:[%s3940 + $0x8] sm:$0xff]
      %v3943 = vld [vmem:[%s3940 + $0x10] sm:$0xff]
      %v3944 = vld [vmem:[%s3940 + $0x18] sm:$0xff]
      %v3945 = vld [vmem:[%s3940 + $0x20] sm:$0xff]
      %v3946 = vld [vmem:[%s3940 + $0x28] sm:$0xff]
      %v3947 = vld [vmem:[%s3940 + $0x30] sm:$0xff]
      %v3948 = vld [vmem:[%s3940 + $0x38] sm:$0xff]
      %v3949 = vld [vmem:[%s3940 + $0x40] sm:$0xff]
      %v3950 = vld [vmem:[%s3940 + $0x48] sm:$0xff]
      %v3951 = vld [vmem:[%s3940 + $0x50] sm:$0xff]
      %v3952 = vld [vmem:[%s3940 + $0x58] sm:$0xff]
      %v3953 = vld [vmem:[%s3940 + $0x60] sm:$0xff]
      %v3954 = vld [vmem:[%s3940 + $0x68] sm:$0xff]
      %v3955 = vld [vmem:[%s3940 + $0x70] sm:$0xff]
      %v3956 = vld [vmem:[%s3940 + $0x78] sm:$0xff]
      %v3957 = vrot.slane %v3408, 5
      %v3958 = vrot.slane %v3409, 5
      %v3959 = vsel %vm1341, %v3957, %v3958
      %v3960 = vrot.slane %v3410, 5
      %v3961 = vsel %vm1341, %v3958, %v3960
      %3965 = vmatprep.subr.mxu0 0.0
      %3966 = vmatpush1.msra.mxu0 %v3941
      %3967 = vmatprep.subr.mxu0 0.0
      %3968 = vmatpush1.msra.mxu0 %v3942
      %3969 = vmatprep.subr.mxu0 0.0
      %3970 = vmatpush1.msra.mxu0 %v3943
      %3971 = vmatprep.subr.mxu0 0.0
      %3972 = vmatpush1.msra.mxu0 %v3944
      %3973 = vmatprep.subr.mxu0 0.0
      %3974 = vmatpush1.msra.mxu0 %v3945
      %3975 = vmatprep.subr.mxu0 0.0
      %3976 = vmatpush1.msra.mxu0 %v3946
      %3977 = vmatprep.subr.mxu0 0.0
      %3978 = vmatpush1.msra.mxu0 %v3947
      %3979 = vmatprep.subr.mxu0 0.0
      %3980 = vmatpush1.msra.mxu0 %v3948
      %3981 = vmatprep.subr.mxu0 0.0
      %3982 = vmatpush1.msra.mxu0 %v3949
      %3983 = vmatprep.subr.mxu0 0.0
      %3984 = vmatpush1.msra.mxu0 %v3950
      %3985 = vmatprep.subr.mxu0 0.0
      %3986 = vmatpush1.msra.mxu0 %v3951
      %3987 = vmatprep.subr.mxu0 0.0
      %3988 = vmatpush1.msra.mxu0 %v3952
      %3989 = vmatprep.subr.mxu0 0.0
      %3990 = vmatpush1.msra.mxu0 %v3953
      %3991 = vmatprep.subr.mxu0 0.0
      %3992 = vmatpush1.msra.mxu0 %v3954
      %3993 = vmatprep.subr.mxu0 0.0
      %3994 = vmatpush1.msra.mxu0 %v3955
      %3995 = vmatprep.subr.mxu0 0.0
      %3996 = vmatpush1.msra.mxu0 %v3956
      %3997 = vmatprep.subr.mxu0 0.0
      %3998 = vmatpush1.msra.mxu0 0.0
      %3999 = vmatprep.subr.mxu0 0.0
      %4000 = vmatpush1.msra.mxu0 0.0
      %4001 = vmatprep.subr.mxu0 0.0
      %4002 = vmatpush1.msra.mxu0 0.0
      %4003 = vmatprep.subr.mxu0 0.0
      %4004 = vmatpush1.msra.mxu0 0.0
      %4005 = vmatprep.subr.mxu0 0.0
      %4006 = vmatpush1.msra.mxu0 0.0
      %4007 = vmatprep.subr.mxu0 0.0
      %4008 = vmatpush1.msra.mxu0 0.0
      %4009 = vmatprep.subr.mxu0 0.0
      %4010 = vmatpush1.msra.mxu0 0.0
      %4011 = vmatprep.subr.mxu0 0.0
      %4012 = vmatpush1.msra.mxu0 0.0
      %4013 = vmatprep.subr.mxu0 0.0
      %4014 = vmatpush1.msra.mxu0 0.0
      %4015 = vmatprep.subr.mxu0 0.0
      %4016 = vmatpush1.msra.mxu0 0.0
      %4017 = vmatprep.subr.mxu0 0.0
      %4018 = vmatpush1.msra.mxu0 0.0
      %4019 = vmatprep.subr.mxu0 0.0
      %4020 = vmatpush1.msra.mxu0 0.0
      %4021 = vmatprep.subr.mxu0 0.0
      %4022 = vmatpush1.msra.mxu0 0.0
      %4023 = vmatprep.subr.mxu0 0.0
      %4024 = vmatpush1.msra.mxu0 0.0
      %4025 = vmatprep.subr.mxu0 0.0
      %4026 = vmatpush1.msra.mxu0 0.0
      %4027 = vmatprep.subr.mxu0 0.0
      %4028 = vmatpush1.msra.mxu0 0.0
      %4029 = vmatprep.mubr.f32.mxu0 0.0
      %4030 = vmatmul.mubr.f32.gmra.mrb[0].mxu0 %v3959
      %v4031 = vpop.f32.mrb[0].mxu0
      %v4032 = vadd.f32 0.0, %v4031
      %v4033 = vpop.f32.mrb[0].mxu0
      %4034 = vmatprep.mubr.f32.mxu0 0.0
      %4035 = vmatmul.mubr.f32.gmra.mrb[0].mxu0 %v3961
      %v4036 = vpop.f32.mrb[0].mxu0
      %v4037 = vadd.f32 0.0, %v4036
      %v4038 = vpop.f32.mrb[0].mxu0
      %4039 = vmatprep.mubr.f32.mxu0 0.0
      %4040 = vmatmul.mubr.f32.gmra.mrb[0].mxu0 %v3960
      %v4041 = vpop.f32.mrb[0].mxu0
      %v4042 = vadd.f32 0.0, %v4041
      %v4043 = vpop.f32.mrb[0].mxu0
      %4044 = vdwg.mxu0
      %v4045 = vadd.f32 %v3937, %v4032
      %v4046 = vadd.f32 %v3938, %v4037
      %v4047 = vadd.f32 %v3939, %v4042
      %s4048 = scalar_lea.vmem %s5, 768
      %v4049 = vld [vmem:[%s4048] sm:$0xff]
      %v4050 = vld [vmem:[%s4048 + $0x8] sm:$0xff]
      %v4051 = vld [vmem:[%s4048 + $0x10] sm:$0xff]
      %v4052 = vld [vmem:[%s4048 + $0x18] sm:$0xff]
      %v4053 = vld [vmem:[%s4048 + $0x20] sm:$0xff]
      %v4054 = vld [vmem:[%s4048 + $0x28] sm:$0xff]
      %v4055 = vld [vmem:[%s4048 + $0x30] sm:$0xff]
      %v4056 = vld [vmem:[%s4048 + $0x38] sm:$0xff]
      %v4057 = vld [vmem:[%s4048 + $0x40] sm:$0xff]
      %v4058 = vld [vmem:[%s4048 + $0x48] sm:$0xff]
      %v4059 = vld [vmem:[%s4048 + $0x50] sm:$0xff]
      %v4060 = vld [vmem:[%s4048 + $0x58] sm:$0xff]
      %v4061 = vld [vmem:[%s4048 + $0x60] sm:$0xff]
      %v4062 = vld [vmem:[%s4048 + $0x68] sm:$0xff]
      %v4063 = vld [vmem:[%s4048 + $0x70] sm:$0xff]
      %v4064 = vld [vmem:[%s4048 + $0x78] sm:$0xff]
      %v4065 = vrot.slane %v3408, 6
      %v4066 = vrot.slane %v3409, 6
      %v4067 = vsel %vm1560, %v4065, %v4066
      %v4068 = vrot.slane %v3410, 6
      %v4069 = vsel %vm1560, %v4066, %v4068
      %4073 = vmatprep.subr.mxu0 0.0
      %4074 = vmatpush1.msra.mxu0 %v4049
      %4075 = vmatprep.subr.mxu0 0.0
      %4076 = vmatpush1.msra.mxu0 %v4050
      %4077 = vmatprep.subr.mxu0 0.0
      %4078 = vmatpush1.msra.mxu0 %v4051
      %4079 = vmatprep.subr.mxu0 0.0
      %4080 = vmatpush1.msra.mxu0 %v4052
      %4081 = vmatprep.subr.mxu0 0.0
      %4082 = vmatpush1.msra.mxu0 %v4053
      %4083 = vmatprep.subr.mxu0 0.0
      %4084 = vmatpush1.msra.mxu0 %v4054
      %4085 = vmatprep.subr.mxu0 0.0
      %4086 = vmatpush1.msra.mxu0 %v4055
      %4087 = vmatprep.subr.mxu0 0.0
      %4088 = vmatpush1.msra.mxu0 %v4056
      %4089 = vmatprep.subr.mxu0 0.0
      %4090 = vmatpush1.msra.mxu0 %v4057
      %4091 = vmatprep.subr.mxu0 0.0
      %4092 = vmatpush1.msra.mxu0 %v4058
      %4093 = vmatprep.subr.mxu0 0.0
      %4094 = vmatpush1.msra.mxu0 %v4059
      %4095 = vmatprep.subr.mxu0 0.0
      %4096 = vmatpush1.msra.mxu0 %v4060
      %4097 = vmatprep.subr.mxu0 0.0
      %4098 = vmatpush1.msra.mxu0 %v4061
      %4099 = vmatprep.subr.mxu0 0.0
      %4100 = vmatpush1.msra.mxu0 %v4062
      %4101 = vmatprep.subr.mxu0 0.0
      %4102 = vmatpush1.msra.mxu0 %v4063
      %4103 = vmatprep.subr.mxu0 0.0
      %4104 = vmatpush1.msra.mxu0 %v4064
      %4105 = vmatprep.subr.mxu0 0.0
      %4106 = vmatpush1.msra.mxu0 0.0
      %4107 = vmatprep.subr.mxu0 0.0
      %4108 = vmatpush1.msra.mxu0 0.0
      %4109 = vmatprep.subr.mxu0 0.0
      %4110 = vmatpush1.msra.mxu0 0.0
      %4111 = vmatprep.subr.mxu0 0.0
      %4112 = vmatpush1.msra.mxu0 0.0
      %4113 = vmatprep.subr.mxu0 0.0
      %4114 = vmatpush1.msra.mxu0 0.0
      %4115 = vmatprep.subr.mxu0 0.0
      %4116 = vmatpush1.msra.mxu0 0.0
      %4117 = vmatprep.subr.mxu0 0.0
      %4118 = vmatpush1.msra.mxu0 0.0
      %4119 = vmatprep.subr.mxu0 0.0
      %4120 = vmatpush1.msra.mxu0 0.0
      %4121 = vmatprep.subr.mxu0 0.0
      %4122 = vmatpush1.msra.mxu0 0.0
      %4123 = vmatprep.subr.mxu0 0.0
      %4124 = vmatpush1.msra.mxu0 0.0
      %4125 = vmatprep.subr.mxu0 0.0
      %4126 = vmatpush1.msra.mxu0 0.0
      %4127 = vmatprep.subr.mxu0 0.0
      %4128 = vmatpush1.msra.mxu0 0.0
      %4129 = vmatprep.subr.mxu0 0.0
      %4130 = vmatpush1.msra.mxu0 0.0
      %4131 = vmatprep.subr.mxu0 0.0
      %4132 = vmatpush1.msra.mxu0 0.0
      %4133 = vmatprep.subr.mxu0 0.0
      %4134 = vmatpush1.msra.mxu0 0.0
      %4135 = vmatprep.subr.mxu0 0.0
      %4136 = vmatpush1.msra.mxu0 0.0
      %4137 = vmatprep.mubr.f32.mxu0 0.0
      %4138 = vmatmul.mubr.f32.gmra.mrb[0].mxu0 %v4067
      %v4139 = vpop.f32.mrb[0].mxu0
      %v4140 = vadd.f32 0.0, %v4139
      %v4141 = vpop.f32.mrb[0].mxu0
      %4142 = vmatprep.mubr.f32.mxu0 0.0
      %4143 = vmatmul.mubr.f32.gmra.mrb[0].mxu0 %v4069
      %v4144 = vpop.f32.mrb[0].mxu0
      %v4145 = vadd.f32 0.0, %v4144
      %v4146 = vpop.f32.mrb[0].mxu0
      %4147 = vmatprep.mubr.f32.mxu0 0.0
      %4148 = vmatmul.mubr.f32.gmra.mrb[0].mxu0 %v4068
      %v4149 = vpop.f32.mrb[0].mxu0
      %v4150 = vadd.f32 0.0, %v4149
      %v4151 = vpop.f32.mrb[0].mxu0
      %4152 = vdwg.mxu0
      %v4153 = vadd.f32 %v4045, %v4140
      %v4154 = vadd.f32 %v4046, %v4145
      %v4155 = vadd.f32 %v4047, %v4150
      %s4156 = scalar_lea.vmem %s5, 896
      %v4157 = vld [vmem:[%s4156] sm:$0xff]
      %v4158 = vld [vmem:[%s4156 + $0x8] sm:$0xff]
      %v4159 = vld [vmem:[%s4156 + $0x10] sm:$0xff]
      %v4160 = vld [vmem:[%s4156 + $0x18] sm:$0xff]
      %v4161 = vld [vmem:[%s4156 + $0x20] sm:$0xff]
      %v4162 = vld [vmem:[%s4156 + $0x28] sm:$0xff]
      %v4163 = vld [vmem:[%s4156 + $0x30] sm:$0xff]
      %v4164 = vld [vmem:[%s4156 + $0x38] sm:$0xff]
      %v4165 = vld [vmem:[%s4156 + $0x40] sm:$0xff]
      %v4166 = vld [vmem:[%s4156 + $0x48] sm:$0xff]
      %v4167 = vld [vmem:[%s4156 + $0x50] sm:$0xff]
      %v4168 = vld [vmem:[%s4156 + $0x58] sm:$0xff]
      %v4169 = vld [vmem:[%s4156 + $0x60] sm:$0xff]
      %v4170 = vld [vmem:[%s4156 + $0x68] sm:$0xff]
      %v4171 = vld [vmem:[%s4156 + $0x70] sm:$0xff]
      %v4172 = vld [vmem:[%s4156 + $0x78] sm:$0xff]
      %v4174 = vrot.slane %v3408, 7
      %v4175 = vrot.slane %v3409, 7
      %v4176 = vsel %vm1779, %v4174, %v4175
      %v4177 = vrot.slane %v3410, 7
      %v4178 = vsel %vm1779, %v4175, %v4177
      %v4179 = vrot.slane %v3411, 7
      %v4180 = vsel %vm1779, %v4177, %v4179
      %4184 = vmatprep.subr.mxu0 0.0
      %4185 = vmatpush1.msra.mxu0 %v4157
      %4186 = vmatprep.subr.mxu0 0.0
      %4187 = vmatpush1.msra.mxu0 %v4158
      %4188 = vmatprep.subr.mxu0 0.0
      %4189 = vmatpush1.msra.mxu0 %v4159
      %4190 = vmatprep.subr.mxu0 0.0
      %4191 = vmatpush1.msra.mxu0 %v4160
      %4192 = vmatprep.subr.mxu0 0.0
      %4193 = vmatpush1.msra.mxu0 %v4161
      %4194 = vmatprep.subr.mxu0 0.0
      %4195 = vmatpush1.msra.mxu0 %v4162
      %4196 = vmatprep.subr.mxu0 0.0
      %4197 = vmatpush1.msra.mxu0 %v4163
      %4198 = vmatprep.subr.mxu0 0.0
      %4199 = vmatpush1.msra.mxu0 %v4164
      %4200 = vmatprep.subr.mxu0 0.0
      %4201 = vmatpush1.msra.mxu0 %v4165
      %4202 = vmatprep.subr.mxu0 0.0
      %4203 = vmatpush1.msra.mxu0 %v4166
      %4204 = vmatprep.subr.mxu0 0.0
      %4205 = vmatpush1.msra.mxu0 %v4167
      %4206 = vmatprep.subr.mxu0 0.0
      %4207 = vmatpush1.msra.mxu0 %v4168
      %4208 = vmatprep.subr.mxu0 0.0
      %4209 = vmatpush1.msra.mxu0 %v4169
      %4210 = vmatprep.subr.mxu0 0.0
      %4211 = vmatpush1.msra.mxu0 %v4170
      %4212 = vmatprep.subr.mxu0 0.0
      %4213 = vmatpush1.msra.mxu0 %v4171
      %4214 = vmatprep.subr.mxu0 0.0
      %4215 = vmatpush1.msra.mxu0 %v4172
      %4216 = vmatprep.subr.mxu0 0.0
      %4217 = vmatpush1.msra.mxu0 0.0
      %4218 = vmatprep.subr.mxu0 0.0
      %4219 = vmatpush1.msra.mxu0 0.0
      %4220 = vmatprep.subr.mxu0 0.0
      %4221 = vmatpush1.msra.mxu0 0.0
      %4222 = vmatprep.subr.mxu0 0.0
      %4223 = vmatpush1.msra.mxu0 0.0
      %4224 = vmatprep.subr.mxu0 0.0
      %4225 = vmatpush1.msra.mxu0 0.0
      %4226 = vmatprep.subr.mxu0 0.0
      %4227 = vmatpush1.msra.mxu0 0.0
      %4228 = vmatprep.subr.mxu0 0.0
      %4229 = vmatpush1.msra.mxu0 0.0
      %4230 = vmatprep.subr.mxu0 0.0
      %4231 = vmatpush1.msra.mxu0 0.0
      %4232 = vmatprep.subr.mxu0 0.0
      %4233 = vmatpush1.msra.mxu0 0.0
      %4234 = vmatprep.subr.mxu0 0.0
      %4235 = vmatpush1.msra.mxu0 0.0
      %4236 = vmatprep.subr.mxu0 0.0
      %4237 = vmatpush1.msra.mxu0 0.0
      %4238 = vmatprep.subr.mxu0 0.0
      %4239 = vmatpush1.msra.mxu0 0.0
      %4240 = vmatprep.subr.mxu0 0.0
      %4241 = vmatpush1.msra.mxu0 0.0
      %4242 = vmatprep.subr.mxu0 0.0
      %4243 = vmatpush1.msra.mxu0 0.0
      %4244 = vmatprep.subr.mxu0 0.0
      %4245 = vmatpush1.msra.mxu0 0.0
      %4246 = vmatprep.subr.mxu0 0.0
      %4247 = vmatpush1.msra.mxu0 0.0
      %4248 = vmatprep.mubr.f32.mxu0 0.0
      %4249 = vmatmul.mubr.f32.gmra.mrb[0].mxu0 %v4176
      %v4250 = vpop.f32.mrb[0].mxu0
      %v4251 = vadd.f32 0.0, %v4250
      %v4252 = vpop.f32.mrb[0].mxu0
      %4253 = vmatprep.mubr.f32.mxu0 0.0
      %4254 = vmatmul.mubr.f32.gmra.mrb[0].mxu0 %v4178
      %v4255 = vpop.f32.mrb[0].mxu0
      %v4256 = vadd.f32 0.0, %v4255
      %v4257 = vpop.f32.mrb[0].mxu0
      %4258 = vmatprep.mubr.f32.mxu0 0.0
      %4259 = vmatmul.mubr.f32.gmra.mrb[0].mxu0 %v4180
      %v4260 = vpop.f32.mrb[0].mxu0
      %v4261 = vadd.f32 0.0, %v4260
      %v4262 = vpop.f32.mrb[0].mxu0
      %4263 = vdwg.mxu0
      %v4264 = vadd.f32 %v4153, %v4251
      %v4265 = vadd.f32 %v4154, %v4256
      %v4266 = vadd.f32 %v4155, %v4261
      %v4267 = vld [vmem:[%s6] sm:$0x1]
      %v4269 = vlaneseq
      %v4270 = vshrl.u32 %v4269, 7
      %v4271 = vsub.s32 0, %v4270
      %v4272 = vrot.slane %v4267, %v4271
      %v4274 = vadd.f32 %v4264, %v4272
      %v4275 = vadd.f32 %v4265, %v4272
      %v4276 = vadd.f32 %v4266, %v4272
      %4277 = vst [vmem:[#allocation4] sm:$0xff] %v4274
      %4278 = vst [vmem:[#allocation4 + $0x8] sm:$0xff] %v4275
      %4279 = vst [vmem:[#allocation4 + $0x10] sm:$0x3] %v4276
      %v4280 = vld [vmem:[#allocation4] ss:$2 sm:$0xff]
      %s4281 = scalar_lea.vmem [#allocation4], 16
      %v4282 = vld [vmem:[%s4281] ss:$2 sm:$0x1]
      %s4283 = scalar_lea.vmem [#allocation4], 1
      %v4284 = vld [vmem:[%s4283] ss:$2 sm:$0xff]
      %s4285 = scalar_lea.vmem [#allocation4], 17
      %v4286 = vld [vmem:[%s4285] ss:$2 sm:$0x1]
      %v4287 = vmax.f32 %v4280, %v4284
      %v4288 = vmax.f32 %v4282, %v4286
      %v4289 = vmax.f32 %v4287, 0.0
      %v4290 = vmax.f32 %v4288, 0.0
      %4291 = vst [vmem:[%s278] sm:$0xff] %v4289
      %4292 = vst [vmem:[%s278 + $0x8] sm:$0x1] %v4290
      %p4293 = scmp.lt.s32.totalorder %s18, 1
      %s4294 = scalar_select %p4293, %s18, 1
      %s4295 = smul.addr %s4294, 2
      %s4296 = smul.addr %s4295, 8
      %s4297 = scalar_lea.vmem %s7, %s4296
      // Predicated region
      $region49: #{conv_bottleneck_forward.1} parent=47 // pred_check
        %p4298 = pneg %p188
      $region50: #{conv_bottleneck_forward.1} parent=47 // pred_check_branch
        %4300 = sbr.rel (%p4298) target = $region52
      $region51: #{conv_bottleneck_forward.1} parent=47 // pred_region
        _
      $region52: #{conv_bottleneck_forward.1} parent=47 // pred_fallthru
        _
    $region48: #{conv_bottleneck_forward.1} parent=5 // pred_fallthru
      _
    %p4301 = scmp.le.s32.totalorder 2, %s13
    // Predicated region
    $region53: #{conv_bottleneck_forward.1} parent=5 // pred_check
      %p4302 = pneg %p4301
    $region54: #{conv_bottleneck_forward.1} parent=5 // pred_check_branch
      %4304 = sbr.rel (%p4302) target = $region56
    $region55: #{conv_bottleneck_forward.1} parent=5 // pred_region
      %s4305 = ssub.s32 %s13, 2
      // Predicated region
      $region57: #{conv_bottleneck_forward.1} parent=55 // pred_check
        %p4306 = pneg %p194
      $region58: #{conv_bottleneck_forward.1} parent=55 // pred_check_branch
        %4308 = sbr.rel (%p4306) target = $region60
      $region59: #{conv_bottleneck_forward.1} parent=55 // pred_region
        %p4309 = scmp.lt.s32.totalorder %s19, 1
        %s4310 = scalar_select %p4309, %s19, 1
        %s4311 = smul.addr %s4310, 2
        %s4312 = smul.addr %s4311, 8
        %s4313 = scalar_lea.vmem %s7, %s4312
      $region60: #{conv_bottleneck_forward.1} parent=55 // pred_fallthru
        _
    $region56: #{conv_bottleneck_forward.1} parent=5 // pred_fallthru
      _
  $region6: #{conv_bottleneck_forward.1} parent=0 // loop_footer
    %s17 = sadd.s32 1, %s13
  $region7: #{conv_bottleneck_forward.1} parent=0 // loop_footer_branch
    %12 = sbr.rel target = $region3
  $region8: #{conv_bottleneck_forward.1} parent=0 // loop_exit
    _

</llo_original>
